<compile_context>
chip_gen: v7x
topology: tpu7x:2x2x1
jax: 0.10.0
libtpu: 0.0.40
codegen_flags: <defaults>
</compile_context>

<pallas_src>
import functools

import jax
import jax.numpy as jnp
from jax.experimental import pallas as pl
from jax.experimental.pallas import tpu as pltpu

LANE = 128                       # lane-aligned feature padding
NODE_PAD = 256                   # node-count padding multiple
VMEM_LIMIT = 32 * 1024 * 1024    # explicit scoped-VMEM budget (fits v5e/v6e/v7x)
RESIDENT_H_BYTES = 4 * 1024 * 1024  # keep H fully VMEM-resident below this size


def _round_up(x, m):
    return ((x + m - 1) // m) * m


def _pick_tile(n, candidates, prefer_multi=False):
    """Largest candidate dividing n; optionally require >=2 blocks (v7x megacore)."""
    if prefer_multi:
        for cand in candidates:
            if cand <= n and n % cand == 0 and n // cand >= 2:
                return cand
    for cand in candidates:
        if cand <= n and n % cand == 0:
            return cand
    return n


# ----------------------------- Pallas kernels ------------------------------ #

def _linear_kernel(x_ref, wt_ref, b_ref, o_ref):
    # H = X @ W^T + b  (bf16 matmul, f32 accumulate, f32 bias add)
    h = jnp.dot(x_ref[...], wt_ref[...], preferred_element_type=jnp.float32)
    o_ref[...] = (h + b_ref[...]).astype(o_ref.dtype)


def linear_padded(x_p, wt_p, b_p, *, row_tile):
    n_p, fin = x_p.shape
    fout = wt_p.shape[1]
    return pl.pallas_call(
        _linear_kernel,
        out_shape=jax.ShapeDtypeStruct((n_p, fout), jnp.bfloat16),
        grid_spec=pltpu.PrefetchScalarGridSpec(
            num_scalar_prefetch=0,
            grid=(n_p // row_tile,),
            in_specs=[
                pl.BlockSpec((row_tile, fin), lambda i: (i, 0)),
                pl.BlockSpec((fin, fout), lambda i: (0, 0)),   # W^T resident
                pl.BlockSpec((1, fout), lambda i: (0, 0)),     # bias resident
            ],
            out_specs=pl.BlockSpec((row_tile, fout), lambda i: (i, 0)),
        ),
        compiler_params=pltpu.CompilerParams(
            dimension_semantics=("parallel",),
            vmem_limit_bytes=VMEM_LIMIT,
        ),
    )(x_p, wt_p, b_p)


def _aggregate_kernel(a_ref, h_ref, o_ref, acc_ref, *, apply_relu, k_tile,
                      resident_h):
    # out = A_hat @ H, accumulated over contraction tiles in f32 scratch.
    k = pl.program_id(1)

    @pl.when(k == 0)
    def _():
        acc_ref[...] = jnp.zeros_like(acc_ref)

    if resident_h:
        start = pl.multiple_of(k * k_tile, k_tile)
        h = h_ref[pl.ds(start, k_tile), :]
    else:
        h = h_ref[...]
    acc_ref[...] += jnp.dot(a_ref[...], h, preferred_element_type=jnp.float32)

    @pl.when(k == pl.num_programs(1) - 1)
    def _():
        out = acc_ref[...]
        if apply_relu:
            out = jnp.maximum(out, 0.0)
        o_ref[...] = out.astype(o_ref.dtype)


def aggregate_padded(a_p, h_p, *, apply_relu, row_tile, k_tile, f_width,
                     col_block=0):
    n_p = a_p.shape[0]
    resident_h = n_p * f_width * 2 <= RESIDENT_H_BYTES
    if resident_h:
        # Constant block index -> H is DMA'd once and stays VMEM-resident.
        h_spec = pl.BlockSpec((n_p, f_width), lambda i, k: (0, col_block))
    else:
        h_spec = pl.BlockSpec((k_tile, f_width), lambda i, k: (k, col_block))
    kern = functools.partial(_aggregate_kernel, apply_relu=apply_relu,
                             k_tile=k_tile, resident_h=resident_h)
    return pl.pallas_call(
        kern,
        out_shape=jax.ShapeDtypeStruct((n_p, f_width), jnp.bfloat16),
        grid_spec=pltpu.PrefetchScalarGridSpec(
            num_scalar_prefetch=0,
            grid=(n_p // row_tile, n_p // k_tile),
            in_specs=[
                pl.BlockSpec((row_tile, k_tile), lambda i, k: (i, k)),
                h_spec,
            ],
            out_specs=pl.BlockSpec((row_tile, f_width), lambda i, k: (i, 0)),
            scratch_shapes=[pltpu.VMEM((row_tile, f_width), jnp.float32)],
        ),
        compiler_params=pltpu.CompilerParams(
            dimension_semantics=("parallel", "arbitrary"),
            vmem_limit_bytes=VMEM_LIMIT,
        ),
    )(a_p, h_p)


def _aggregate_dual_kernel(a_ref, h1_ref, h2_ref, o1_ref, o2_ref,
                           acc1_ref, acc2_ref, *, relu1, relu2, k_tile,
                           resident_h):
    # One pass over A producing two outputs: O1 = A @ H1, O2 = A @ H2.
    k = pl.program_id(1)

    @pl.when(k == 0)
    def _():
        acc1_ref[...] = jnp.zeros_like(acc1_ref)
        acc2_ref[...] = jnp.zeros_like(acc2_ref)

    a = a_ref[...]
    if resident_h:
        start = pl.multiple_of(k * k_tile, k_tile)
        h1 = h1_ref[pl.ds(start, k_tile), :]
        h2 = h2_ref[pl.ds(start, k_tile), :]
    else:
        h1 = h1_ref[...]
        h2 = h2_ref[...]
    acc1_ref[...] += jnp.dot(a, h1, preferred_element_type=jnp.float32)
    acc2_ref[...] += jnp.dot(a, h2, preferred_element_type=jnp.float32)

    @pl.when(k == pl.num_programs(1) - 1)
    def _():
        o1 = acc1_ref[...]
        o2 = acc2_ref[...]
        if relu1:
            o1 = jnp.maximum(o1, 0.0)
        if relu2:
            o2 = jnp.maximum(o2, 0.0)
        o1_ref[...] = o1.astype(o1_ref.dtype)
        o2_ref[...] = o2.astype(o2_ref.dtype)


def aggregate_dual_padded(a_p, h1_p, h2_p, *, relu1, relu2, row_tile, k_tile,
                          f1, f2, col_block1=0, col_block2=0):
    n_p = a_p.shape[0]
    resident_h = n_p * (f1 + f2) * 2 <= RESIDENT_H_BYTES
    if resident_h:
        h1_spec = pl.BlockSpec((n_p, f1), lambda i, k: (0, col_block1))
        h2_spec = pl.BlockSpec((n_p, f2), lambda i, k: (0, col_block2))
    else:
        h1_spec = pl.BlockSpec((k_tile, f1), lambda i, k: (k, col_block1))
        h2_spec = pl.BlockSpec((k_tile, f2), lambda i, k: (k, col_block2))
    kern = functools.partial(_aggregate_dual_kernel, relu1=relu1, relu2=relu2,
                             k_tile=k_tile, resident_h=resident_h)
    return pl.pallas_call(
        kern,
        out_shape=(jax.ShapeDtypeStruct((n_p, f1), jnp.bfloat16),
                   jax.ShapeDtypeStruct((n_p, f2), jnp.bfloat16)),
        grid_spec=pltpu.PrefetchScalarGridSpec(
            num_scalar_prefetch=0,
            grid=(n_p // row_tile, n_p // k_tile),
            in_specs=[
                pl.BlockSpec((row_tile, k_tile), lambda i, k: (i, k)),
                h1_spec,
                h2_spec,
            ],
            out_specs=(pl.BlockSpec((row_tile, f1), lambda i, k: (i, 0)),
                       pl.BlockSpec((row_tile, f2), lambda i, k: (i, 0))),
            scratch_shapes=[pltpu.VMEM((row_tile, f1), jnp.float32),
                            pltpu.VMEM((row_tile, f2), jnp.float32)],
        ),
        compiler_params=pltpu.CompilerParams(
            dimension_semantics=("parallel", "arbitrary"),
            vmem_limit_bytes=VMEM_LIMIT,
        ),
    )(a_p, h1_p, h2_p)


def _decoder_kernel(s_ref, tt_ref, o_ref):
    # adj_pred tile = sigmoid(s @ t^T); t pre-transposed outside -> plain dot.
    logits = jnp.dot(s_ref[...], tt_ref[...], preferred_element_type=jnp.float32)
    o_ref[...] = jax.nn.sigmoid(logits).astype(o_ref.dtype)


def inner_product_decoder_padded(s_p, t_t_p, *, row_tile):
    n_p, f = s_p.shape
    return pl.pallas_call(
        _decoder_kernel,
        out_shape=jax.ShapeDtypeStruct((n_p, n_p), jnp.bfloat16),  # bf16 halves HBM writes
        grid_spec=pltpu.PrefetchScalarGridSpec(
            num_scalar_prefetch=0,
            grid=(n_p // row_tile, n_p // row_tile),
            in_specs=[
                pl.BlockSpec((row_tile, f), lambda i, j: (i, 0)),
                pl.BlockSpec((f, row_tile), lambda i, j: (0, j)),
            ],
            out_specs=pl.BlockSpec((row_tile, row_tile), lambda i, j: (i, j)),
        ),
        compiler_params=pltpu.CompilerParams(
            dimension_semantics=("parallel", "parallel"),
            vmem_limit_bytes=VMEM_LIMIT,
        ),
    )(s_p, t_t_p)


# ------------------------------ JAX glue ----------------------------------- #

def build_norm_adj(edge_index, num_nodes, alpha, beta):
    """Dense normalized adjacency matching DirectedGCNConv (with self-loops)."""
    # TODO(synk): edge-wise sparse scatter (MessagePassing.propagate) has no clean
    # Pallas equivalent here; adjacency is densified in plain JAX.
    loops = jnp.arange(num_nodes, dtype=edge_index.dtype)
    row = jnp.concatenate([edge_index[0], loops])   # source
    col = jnp.concatenate([edge_index[1], loops])   # target
    ones = jnp.ones(row.shape, jnp.float32)
    in_deg = jnp.zeros((num_nodes,), jnp.float32).at[col].add(ones)
    out_deg = jnp.zeros((num_nodes,), jnp.float32).at[row].add(ones)
    in_norm_inv = jnp.power(in_deg, -alpha)     # self-loops guarantee deg >= 1
    out_norm_inv = jnp.power(out_deg, -beta)
    norm = in_norm_inv[col] * out_norm_inv[row]
    a_hat = jnp.zeros((num_nodes, num_nodes), jnp.float32).at[col, row].add(norm)
    return a_hat


def _pad2(x, r, c):
    return jnp.pad(x, ((0, r - x.shape[0]), (0, c - x.shape[1])))


def digae_forward(x, edge_index, params, alpha=1.0, beta=0.0):
    """DiGAE.forward: x [N,Cin], edge_index [2,E] -> adj_pred [N,N] (bf16)."""
    n, c_in = x.shape
    hidden = params["bs1"].shape[0]
    embed = params["bs2"].shape[0]

    n_p = _round_up(max(n, NODE_PAD), NODE_PAD)
    cin_p = _round_up(c_in, LANE)
    hid_p = _round_up(hidden, LANE)
    emb_p = _round_up(embed, LANE)

    agg_row_tile = _pick_tile(n_p, (1024, 512, 256), prefer_multi=True)
    k_tile = _pick_tile(n_p, (1024, 512, 256))
    lin_row_tile = _pick_tile(n_p, (2048, 1024, 512, 256))
    dec_row_tile = _pick_tile(n_p, (512, 256), prefer_multi=True)

    # Normalized adjacencies, bf16 to halve HBM streaming (f32 accumulation in-kernel).
    a_fwd_p = _pad2(build_norm_adj(edge_index, n, alpha, beta),
                    n_p, n_p).astype(jnp.bfloat16)
    a_rev_p = _pad2(build_norm_adj(edge_index[::-1], n, alpha, beta),
                    n_p, n_p).astype(jnp.bfloat16)

    x_p = _pad2(x.astype(jnp.float32), n_p, cin_p).astype(jnp.bfloat16)

    def pack_wt_b(w, b, fin_p, fout_p):
        wt = _pad2(w.T.astype(jnp.bfloat16), fin_p, fout_p)
        bp = jnp.pad(b.astype(jnp.float32), (0, fout_p - b.shape[0])).reshape(1, fout_p)
        return wt, bp

    # ---- fused first-layer linear: one pass over X -> [hs1 | ht1] ----
    wt_s1, b_s1 = pack_wt_b(params["ws1"], params["bs1"], cin_p, hid_p)
    wt_t1, b_t1 = pack_wt_b(params["wt1"], params["bt1"], cin_p, hid_p)
    wt_st1 = jnp.concatenate([wt_s1, wt_t1], axis=1)    # tiny weight concat only
    b_st1 = jnp.concatenate([b_s1, b_t1], axis=1)
    h_st1 = linear_padded(x_p, wt_st1, b_st1, row_tile=lin_row_tile)  # [n_p, 2*hid_p]

    # ---- encoder: 3 adjacency passes (A_rev shared between both branches) ----
    # pass 1 (A_fwd): s1 = relu(A_fwd @ hs1)   (hs1 = columns [0:hid_p) of h_st1)
    s1 = aggregate_padded(a_fwd_p, h_st1, apply_relu=True,
                          row_tile=agg_row_tile, k_tile=k_tile,
                          f_width=hid_p, col_block=0)

    # second-layer source linear: hs2 = s1 @ Ws2^T + bs2
    wt_s2, b_s2 = pack_wt_b(params["ws2"], params["bs2"], hid_p, emb_p)
    hs2 = linear_padded(s1, wt_s2, b_s2, row_tile=lin_row_tile)

    # pass 2 (A_rev, fused, two H inputs / two accumulators):
    #   t1 = relu(A_rev @ ht1),  s = A_rev @ hs2
    t1, s = aggregate_dual_padded(a_rev_p, h_st1, hs2, relu1=True, relu2=False,
                                  row_tile=agg_row_tile, k_tile=k_tile,
                                  f1=hid_p, f2=emb_p, col_block1=1, col_block2=0)

    # second-layer target linear: ht2 = t1 @ Wt2^T + bt2
    wt_t2, b_t2 = pack_wt_b(params["wt2"], params["bt2"], hid_p, emb_p)
    ht2 = linear_padded(t1, wt_t2, b_t2, row_tile=lin_row_tile)

    # pass 3 (A_fwd): t = A_fwd @ ht2
    t = aggregate_padded(a_fwd_p, ht2, apply_relu=False,
                         row_tile=agg_row_tile, k_tile=k_tile,
                         f_width=emb_p, col_block=0)

    # ---- decoder: sigmoid(s @ t^T), t transposed once outside (n_p x 128 bf16) ----
    adj_pred_p = inner_product_decoder_padded(s, t.T, row_tile=dec_row_tile)
    # bf16 output halves the n_p^2 decoder write; cast outside only if needed.
    return adj_pred_p[:n, :n]


# -------------------------- pure-JAX reference ------------------------------ #

def digae_reference(x, edge_index, params, alpha=1.0, beta=0.0):
    n = x.shape[0]
    a_fwd = build_norm_adj(edge_index, n, alpha, beta)
    a_rev = build_norm_adj(edge_index[::-1], n, alpha, beta)

    def conv(a, h, w, b, relu):
        out = a @ (h @ w.T + b)
        return jnp.maximum(out, 0.0) if relu else out

    s1 = conv(a_fwd, x, params["ws1"], params["bs1"], True)
    s = conv(a_rev, s1, params["ws2"], params["bs2"], False)
    t1 = conv(a_rev, x, params["wt1"], params["bt1"], True)
    t = conv(a_fwd, t1, params["wt2"], params["bt2"], False)
    return jax.nn.sigmoid(s @ t.T)


# --------------------------------- main ------------------------------------ #

if __name__ == "__main__":
    # Small graph consistent with DiGAE.forward: x [N, input_dim], edge_index [2,E].
    N, E = 12, 30
    IN_DIM, HIDDEN, EMBED = 4, 8, 16

    key = jax.random.PRNGKey(0)
    k_x, k_e, k1, k2, k3, k4, k5, k6, k7, k8 = jax.random.split(key, 10)

    x = jax.random.normal(k_x, (N, IN_DIM), dtype=jnp.float32)
    edge_index = jax.random.randint(k_e, (2, E), 0, N, dtype=jnp.int32)

    def linear_init(kw, kb, out_c, in_c):
        w = 0.1 * jax.random.normal(kw, (out_c, in_c), dtype=jnp.float32)
        b = 0.1 * jax.random.normal(kb, (out_c,), dtype=jnp.float32)
        return w, b

    ws1, bs1 = linear_init(k1, k2, HIDDEN, IN_DIM)
    ws2, bs2 = linear_init(k3, k4, EMBED, HIDDEN)
    wt1, bt1 = linear_init(k5, k6, HIDDEN, IN_DIM)
    wt2, bt2 = linear_init(k7, k8, EMBED, HIDDEN)
    params = dict(ws1=ws1, bs1=bs1, ws2=ws2, bs2=bs2,
                  wt1=wt1, bt1=bt1, wt2=wt2, bt2=bt2)

    adj_pred = jax.jit(digae_forward)(x, edge_index, params)
    adj_pred = jax.block_until_ready(adj_pred)

    ref = digae_reference(x, edge_index, params)
    assert adj_pred.shape == (N, N)
    # bf16 matmul operands / bf16 output (f32 accumulation) -> loosened tolerance.
    assert jnp.allclose(adj_pred.astype(jnp.float32), ref,
                        atol=2e-2, rtol=2e-2), "mismatch vs reference"

    print("KERNEL_OK")
</pallas_src>

<mosaic_0001>
module attributes {stable_mosaic.version = 11 : i64} {
  func.func @_linear_kernel(%arg0: i32, %arg1: memref<256x128xbf16, #tpu.memory_space<vmem>>, %arg2: memref<128x256xbf16, #tpu.memory_space<vmem>>, %arg3: memref<1x256xf32, #tpu.memory_space<vmem>>, %arg4: memref<256x256xbf16, #tpu.memory_space<vmem>>) attributes {dimension_semantics = [#tpu.dimension_semantics<parallel>], iteration_bounds = array<i64: 1>, scalar_prefetch = 0 : i64, scratch_operands = 0 : i64, tpu.core_type = #tpu.core_type<tc>, window_params = [{transform_indices = @transform_0, window_bounds = array<i64: 256, 128>}, {pipeline_mode = #tpu.pipeline_mode<synchronous>, transform_indices = @transform_1, window_bounds = array<i64: 128, 256>}, {pipeline_mode = #tpu.pipeline_mode<synchronous>, transform_indices = @transform_2, window_bounds = array<i64: 1, 256>}, {transform_indices = @transform_3, window_bounds = array<i64: 256, 256>}]} {
    %c0 = arith.constant 0 : index
    %c0_0 = arith.constant 0 : index
    %0 = vector.load %arg1[%c0, %c0_0] : memref<256x128xbf16, #tpu.memory_space<vmem>>, vector<256x128xbf16>
    %c0_1 = arith.constant 0 : index
    %c0_2 = arith.constant 0 : index
    %1 = vector.load %arg2[%c0_1, %c0_2] : memref<128x256xbf16, #tpu.memory_space<vmem>>, vector<128x256xbf16>
    %cst = arith.constant dense<0.000000e+00> : vector<256x256xf32>
    %2 = tpu.matmul %0, %1, %cst {dimension_numbers = #tpu.dot_dimension_numbers<[1], [0], [0], [1], [0, 0, 1, 1], [], []>} : vector<256x128xbf16>, vector<128x256xbf16>, vector<256x256xf32> -> vector<256x256xf32>
    %c0_3 = arith.constant 0 : index
    %c0_4 = arith.constant 0 : index
    %3 = vector.load %arg3[%c0_3, %c0_4] : memref<1x256xf32, #tpu.memory_space<vmem>>, vector<1x256xf32>
    %4 = vector.broadcast %3 : vector<1x256xf32> to vector<256x256xf32>
    %5 = arith.addf %2, %4 : vector<256x256xf32>
    %6 = arith.truncf %5 : vector<256x256xf32> to vector<256x256xbf16>
    %c0_5 = arith.constant 0 : index
    %c0_6 = arith.constant 0 : index
    %7 = vector.load %arg4[%c0_5, %c0_6] : memref<256x256xbf16, #tpu.memory_space<vmem>>, vector<256x256xbf16>
    tpu.vector_store %arg4[%c0_5, %c0_6], %6 {strides = array<i32>} : memref<256x256xbf16, #tpu.memory_space<vmem>>, vector<256x256xbf16>,
    return
  }
  func.func @transform_0(%arg0: i32) -> (i32, i32) {
    %c0_i32 = arith.constant 0 : i32
    %c0_i32_0 = arith.constant 0 : i32
    return %arg0, %c0_i32 : i32, i32
  }
  func.func @transform_1(%arg0: i32) -> (i32, i32) {
    %c0_i32 = arith.constant 0 : i32
    %c0_i32_0 = arith.constant 0 : i32
    %c0_i32_1 = arith.constant 0 : i32
    return %c0_i32, %c0_i32_0 : i32, i32
  }
  func.func @transform_2(%arg0: i32) -> (i32, i32) {
    %c0_i32 = arith.constant 0 : i32
    %c0_i32_0 = arith.constant 0 : i32
    %c0_i32_1 = arith.constant 0 : i32
    return %c0_i32, %c0_i32_0 : i32, i32
  }
  func.func @transform_3(%arg0: i32) -> (i32, i32) {
    %c0_i32 = arith.constant 0 : i32
    %c0_i32_0 = arith.constant 0 : i32
    return %arg0, %c0_i32 : i32, i32
  }
}

module attributes {stable_mosaic.version = 11 : i64} {
  func.func @_aggregate_kernel(%arg0: i32, %arg1: i32, %arg2: memref<256x256xbf16, #tpu.memory_space<vmem>>, %arg3: memref<256x128xbf16, #tpu.memory_space<vmem>>, %arg4: memref<256x128xbf16, #tpu.memory_space<vmem>>, %arg5: memref<256x128xf32, #tpu.memory_space<vmem>>) attributes {dimension_semantics = [#tpu.dimension_semantics<parallel>, #tpu.dimension_semantics<arbitrary>], iteration_bounds = array<i64: 1, 1>, scalar_prefetch = 0 : i64, scratch_operands = 1 : i64, tpu.core_type = #tpu.core_type<tc>, window_params = [{transform_indices = @transform_0, window_bounds = array<i64: 256, 256>}, {transform_indices = @transform_1, window_bounds = array<i64: 256, 128>}, {transform_indices = @transform_2, window_bounds = array<i64: 256, 128>}]} {
    %c0_i32 = arith.constant 0 : i32
    %0 = arith.cmpi eq, %arg1, %c0_i32 : i32
    %1 = arith.extui %0 : i1 to i32
    %c0_i32_0 = arith.constant 0 : i32
    %2 = arith.cmpi ne, %1, %c0_i32_0 : i32
    scf.if %2 {
      %cst_9 = arith.constant 0.000000e+00 : f32
      %15 = vector.broadcast %cst_9 : f32 to vector<256x128xf32>
      %c0_10 = arith.constant 0 : index
      %c0_11 = arith.constant 0 : index
      %16 = vector.load %arg5[%c0_10, %c0_11] : memref<256x128xf32, #tpu.memory_space<vmem>>, vector<256x128xf32>
      tpu.vector_store %arg5[%c0_10, %c0_11], %15 {strides = array<i32>} : memref<256x128xf32, #tpu.memory_space<vmem>>, vector<256x128xf32>,
    } else {
    }
    %c256_i32 = arith.constant 256 : i32
    %3 = arith.muli %arg1, %c256_i32 : i32
    %4 = tpu.assume_multiple %3, 256 : i32
    %5 = arith.index_cast %4 : i32 to index
    %c0 = arith.constant 0 : index
    %6 = vector.load %arg3[%5, %c0] : memref<256x128xbf16, #tpu.memory_space<vmem>>, vector<256x128xbf16>
    %c0_1 = arith.constant 0 : index
    %c0_2 = arith.constant 0 : index
    %7 = vector.load %arg5[%c0_1, %c0_2] : memref<256x128xf32, #tpu.memory_space<vmem>>, vector<256x128xf32>
    %c0_3 = arith.constant 0 : index
    %c0_4 = arith.constant 0 : index
    %8 = vector.load %arg2[%c0_3, %c0_4] : memref<256x256xbf16, #tpu.memory_space<vmem>>, vector<256x256xbf16>
    %cst = arith.constant dense<0.000000e+00> : vector<256x128xf32>
    %9 = tpu.matmul %8, %6, %cst {dimension_numbers = #tpu.dot_dimension_numbers<[1], [0], [0], [1], [0, 0, 1, 1], [], []>} : vector<256x256xbf16>, vector<256x128xbf16>, vector<256x128xf32> -> vector<256x128xf32>
    %10 = arith.addf %7, %9 : vector<256x128xf32>
    %c0_5 = arith.constant 0 : index
    %c0_6 = arith.constant 0 : index
    %11 = vector.load %arg5[%c0_5, %c0_6] : memref<256x128xf32, #tpu.memory_space<vmem>>, vector<256x128xf32>
    tpu.vector_store %arg5[%c0_5, %c0_6], %10 {strides = array<i32>} : memref<256x128xf32, #tpu.memory_space<vmem>>, vector<256x128xf32>,
    %c0_i32_7 = arith.constant 0 : i32
    %12 = arith.cmpi eq, %arg1, %c0_i32_7 : i32
    %13 = arith.extui %12 : i1 to i32
    %c0_i32_8 = arith.constant 0 : i32
    %14 = arith.cmpi ne, %13, %c0_i32_8 : i32
    scf.if %14 {
      %c0_9 = arith.constant 0 : index
      %c0_10 = arith.constant 0 : index
      %15 = vector.load %arg5[%c0_9, %c0_10] : memref<256x128xf32, #tpu.memory_space<vmem>>, vector<256x128xf32>
      %cst_11 = arith.constant 0.000000e+00 : f32
      %16 = vector.broadcast %cst_11 : f32 to vector<256x128xf32>
      %17 = arith.maximumf %15, %16 : vector<256x128xf32>
      %18 = arith.truncf %17 : vector<256x128xf32> to vector<256x128xbf16>
      %c0_12 = arith.constant 0 : index
      %c0_13 = arith.constant 0 : index
      %19 = vector.load %arg4[%c0_12, %c0_13] : memref<256x128xbf16, #tpu.memory_space<vmem>>, vector<256x128xbf16>
      tpu.vector_store %arg4[%c0_12, %c0_13], %18 {strides = array<i32>} : memref<256x128xbf16, #tpu.memory_space<vmem>>, vector<256x128xbf16>,
    } else {
    }
    return
  }
  func.func @transform_0(%arg0: i32, %arg1: i32) -> (i32, i32) {
    %c0_i32 = arith.constant 0 : i32
    return %arg0, %arg1 : i32, i32
  }
  func.func @transform_1(%arg0: i32, %arg1: i32) -> (i32, i32) {
    %c0_i32 = arith.constant 0 : i32
    %c0_i32_0 = arith.constant 0 : i32
    %c0_i32_1 = arith.constant 0 : i32
    return %c0_i32, %c0_i32_0 : i32, i32
  }
  func.func @transform_2(%arg0: i32, %arg1: i32) -> (i32, i32) {
    %c0_i32 = arith.constant 0 : i32
    %c0_i32_0 = arith.constant 0 : i32
    return %arg0, %c0_i32 : i32, i32
  }
}

module attributes {stable_mosaic.version = 11 : i64} {
  func.func @_linear_kernel(%arg0: i32, %arg1: memref<256x128xbf16, #tpu.memory_space<vmem>>, %arg2: memref<128x128xbf16, #tpu.memory_space<vmem>>, %arg3: memref<1x128xf32, #tpu.memory_space<vmem>>, %arg4: memref<256x128xbf16, #tpu.memory_space<vmem>>) attributes {dimension_semantics = [#tpu.dimension_semantics<parallel>], iteration_bounds = array<i64: 1>, scalar_prefetch = 0 : i64, scratch_operands = 0 : i64, tpu.core_type = #tpu.core_type<tc>, window_params = [{transform_indices = @transform_0, window_bounds = array<i64: 256, 128>}, {pipeline_mode = #tpu.pipeline_mode<synchronous>, transform_indices = @transform_1, window_bounds = array<i64: 128, 128>}, {pipeline_mode = #tpu.pipeline_mode<synchronous>, transform_indices = @transform_2, window_bounds = array<i64: 1, 128>}, {transform_indices = @transform_3, window_bounds = array<i64: 256, 128>}]} {
    %c0 = arith.constant 0 : index
    %c0_0 = arith.constant 0 : index
    %0 = vector.load %arg1[%c0, %c0_0] : memref<256x128xbf16, #tpu.memory_space<vmem>>, vector<256x128xbf16>
    %c0_1 = arith.constant 0 : index
    %c0_2 = arith.constant 0 : index
    %1 = vector.load %arg2[%c0_1, %c0_2] : memref<128x128xbf16, #tpu.memory_space<vmem>>, vector<128x128xbf16>
    %cst = arith.constant dense<0.000000e+00> : vector<256x128xf32>
    %2 = tpu.matmul %0, %1, %cst {dimension_numbers = #tpu.dot_dimension_numbers<[1], [0], [0], [1], [0, 0, 1, 1], [], []>} : vector<256x128xbf16>, vector<128x128xbf16>, vector<256x128xf32> -> vector<256x128xf32>
    %c0_3 = arith.constant 0 : index
    %c0_4 = arith.constant 0 : index
    %3 = vector.load %arg3[%c0_3, %c0_4] : memref<1x128xf32, #tpu.memory_space<vmem>>, vector<1x128xf32>
    %4 = vector.broadcast %3 : vector<1x128xf32> to vector<256x128xf32>
    %5 = arith.addf %2, %4 : vector<256x128xf32>
    %6 = arith.truncf %5 : vector<256x128xf32> to vector<256x128xbf16>
    %c0_5 = arith.constant 0 : index
    %c0_6 = arith.constant 0 : index
    %7 = vector.load %arg4[%c0_5, %c0_6] : memref<256x128xbf16, #tpu.memory_space<vmem>>, vector<256x128xbf16>
    tpu.vector_store %arg4[%c0_5, %c0_6], %6 {strides = array<i32>} : memref<256x128xbf16, #tpu.memory_space<vmem>>, vector<256x128xbf16>,
    return
  }
  func.func @transform_0(%arg0: i32) -> (i32, i32) {
    %c0_i32 = arith.constant 0 : i32
    %c0_i32_0 = arith.constant 0 : i32
    return %arg0, %c0_i32 : i32, i32
  }
  func.func @transform_1(%arg0: i32) -> (i32, i32) {
    %c0_i32 = arith.constant 0 : i32
    %c0_i32_0 = arith.constant 0 : i32
    %c0_i32_1 = arith.constant 0 : i32
    return %c0_i32, %c0_i32_0 : i32, i32
  }
  func.func @transform_2(%arg0: i32) -> (i32, i32) {
    %c0_i32 = arith.constant 0 : i32
    %c0_i32_0 = arith.constant 0 : i32
    %c0_i32_1 = arith.constant 0 : i32
    return %c0_i32, %c0_i32_0 : i32, i32
  }
  func.func @transform_3(%arg0: i32) -> (i32, i32) {
    %c0_i32 = arith.constant 0 : i32
    %c0_i32_0 = arith.constant 0 : i32
    return %arg0, %c0_i32 : i32, i32
  }
}

module attributes {stable_mosaic.version = 11 : i64} {
  func.func @_aggregate_dual_kernel(%arg0: i32, %arg1: i32, %arg2: memref<256x256xbf16, #tpu.memory_space<vmem>>, %arg3: memref<256x128xbf16, #tpu.memory_space<vmem>>, %arg4: memref<256x128xbf16, #tpu.memory_space<vmem>>, %arg5: memref<256x128xbf16, #tpu.memory_space<vmem>>, %arg6: memref<256x128xbf16, #tpu.memory_space<vmem>>, %arg7: memref<256x128xf32, #tpu.memory_space<vmem>>, %arg8: memref<256x128xf32, #tpu.memory_space<vmem>>) attributes {dimension_semantics = [#tpu.dimension_semantics<parallel>, #tpu.dimension_semantics<arbitrary>], iteration_bounds = array<i64: 1, 1>, scalar_prefetch = 0 : i64, scratch_operands = 2 : i64, tpu.core_type = #tpu.core_type<tc>, window_params = [{transform_indices = @transform_0, window_bounds = array<i64: 256, 256>}, {transform_indices = @transform_1, window_bounds = array<i64: 256, 128>}, {pipeline_mode = #tpu.pipeline_mode<synchronous>, transform_indices = @transform_2, window_bounds = array<i64: 256, 128>}, {transform_indices = @transform_3, window_bounds = array<i64: 256, 128>}, {transform_indices = @transform_4, window_bounds = array<i64: 256, 128>}]} {
    %c0_i32 = arith.constant 0 : i32
    %0 = arith.cmpi eq, %arg1, %c0_i32 : i32
    %1 = arith.extui %0 : i1 to i32
    %c0_i32_0 = arith.constant 0 : i32
    %2 = arith.cmpi ne, %1, %c0_i32_0 : i32
    scf.if %2 {
      %cst_15 = arith.constant 0.000000e+00 : f32
      %21 = vector.broadcast %cst_15 : f32 to vector<256x128xf32>
      %c0_16 = arith.constant 0 : index
      %c0_17 = arith.constant 0 : index
      %22 = vector.load %arg7[%c0_16, %c0_17] : memref<256x128xf32, #tpu.memory_space<vmem>>, vector<256x128xf32>
      tpu.vector_store %arg7[%c0_16, %c0_17], %21 {strides = array<i32>} : memref<256x128xf32, #tpu.memory_space<vmem>>, vector<256x128xf32>,
      %cst_18 = arith.constant 0.000000e+00 : f32
      %23 = vector.broadcast %cst_18 : f32 to vector<256x128xf32>
      %c0_19 = arith.constant 0 : index
      %c0_20 = arith.constant 0 : index
      %24 = vector.load %arg8[%c0_19, %c0_20] : memref<256x128xf32, #tpu.memory_space<vmem>>, vector<256x128xf32>
      tpu.vector_store %arg8[%c0_19, %c0_20], %23 {strides = array<i32>} : memref<256x128xf32, #tpu.memory_space<vmem>>, vector<256x128xf32>,
    } else {
    }
    %c0 = arith.constant 0 : index
    %c0_1 = arith.constant 0 : index
    %3 = vector.load %arg2[%c0, %c0_1] : memref<256x256xbf16, #tpu.memory_space<vmem>>, vector<256x256xbf16>
    %c256_i32 = arith.constant 256 : i32
    %4 = arith.muli %arg1, %c256_i32 : i32
    %5 = tpu.assume_multiple %4, 256 : i32
    %6 = arith.index_cast %5 : i32 to index
    %c0_2 = arith.constant 0 : index
    %7 = vector.load %arg3[%6, %c0_2] : memref<256x128xbf16, #tpu.memory_space<vmem>>, vector<256x128xbf16>
    %8 = arith.index_cast %5 : i32 to index
    %c0_3 = arith.constant 0 : index
    %9 = vector.load %arg4[%8, %c0_3] : memref<256x128xbf16, #tpu.memory_space<vmem>>, vector<256x128xbf16>
    %c0_4 = arith.constant 0 : index
    %c0_5 = arith.constant 0 : index
    %10 = vector.load %arg7[%c0_4, %c0_5] : memref<256x128xf32, #tpu.memory_space<vmem>>, vector<256x128xf32>
    %cst = arith.constant dense<0.000000e+00> : vector<256x128xf32>
    %11 = tpu.matmul %3, %7, %cst {dimension_numbers = #tpu.dot_dimension_numbers<[1], [0], [0], [1], [0, 0, 1, 1], [], []>} : vector<256x256xbf16>, vector<256x128xbf16>, vector<256x128xf32> -> vector<256x128xf32>
    %12 = arith.addf %10, %11 : vector<256x128xf32>
    %c0_6 = arith.constant 0 : index
    %c0_7 = arith.constant 0 : index
    %13 = vector.load %arg7[%c0_6, %c0_7] : memref<256x128xf32, #tpu.memory_space<vmem>>, vector<256x128xf32>
    tpu.vector_store %arg7[%c0_6, %c0_7], %12 {strides = array<i32>} : memref<256x128xf32, #tpu.memory_space<vmem>>, vector<256x128xf32>,
    %c0_8 = arith.constant 0 : index
    %c0_9 = arith.constant 0 : index
    %14 = vector.load %arg8[%c0_8, %c0_9] : memref<256x128xf32, #tpu.memory_space<vmem>>, vector<256x128xf32>
    %cst_10 = arith.constant dense<0.000000e+00> : vector<256x128xf32>
    %15 = tpu.matmul %3, %9, %cst_10 {dimension_numbers = #tpu.dot_dimension_numbers<[1], [0], [0], [1], [0, 0, 1, 1], [], []>} : vector<256x256xbf16>, vector<256x128xbf16>, vector<256x128xf32> -> vector<256x128xf32>
    %16 = arith.addf %14, %15 : vector<256x128xf32>
    %c0_11 = arith.constant 0 : index
    %c0_12 = arith.constant 0 : index
    %17 = vector.load %arg8[%c0_11, %c0_12] : memref<256x128xf32, #tpu.memory_space<vmem>>, vector<256x128xf32>
    tpu.vector_store %arg8[%c0_11, %c0_12], %16 {strides = array<i32>} : memref<256x128xf32, #tpu.memory_space<vmem>>, vector<256x128xf32>,
    %c0_i32_13 = arith.constant 0 : i32
    %18 = arith.cmpi eq, %arg1, %c0_i32_13 : i32
    %19 = arith.extui %18 : i1 to i32
    %c0_i32_14 = arith.constant 0 : i32
    %20 = arith.cmpi ne, %19, %c0_i32_14 : i32
    scf.if %20 {
      %c0_15 = arith.constant 0 : index
      %c0_16 = arith.constant 0 : index
      %21 = vector.load %arg7[%c0_15, %c0_16] : memref<256x128xf32, #tpu.memory_space<vmem>>, vector<256x128xf32>
      %c0_17 = arith.constant 0 : index
      %c0_18 = arith.constant 0 : index
      %22 = vector.load %arg8[%c0_17, %c0_18] : memref<256x128xf32, #tpu.memory_space<vmem>>, vector<256x128xf32>
      %cst_19 = arith.constant 0.000000e+00 : f32
      %23 = vector.broadcast %cst_19 : f32 to vector<256x128xf32>
      %24 = arith.maximumf %21, %23 : vector<256x128xf32>
      %25 = arith.truncf %24 : vector<256x128xf32> to vector<256x128xbf16>
      %c0_20 = arith.constant 0 : index
      %c0_21 = arith.constant 0 : index
      %26 = vector.load %arg5[%c0_20, %c0_21] : memref<256x128xbf16, #tpu.memory_space<vmem>>, vector<256x128xbf16>
      tpu.vector_store %arg5[%c0_20, %c0_21], %25 {strides = array<i32>} : memref<256x128xbf16, #tpu.memory_space<vmem>>, vector<256x128xbf16>,
      %27 = arith.truncf %22 : vector<256x128xf32> to vector<256x128xbf16>
      %c0_22 = arith.constant 0 : index
      %c0_23 = arith.constant 0 : index
      %28 = vector.load %arg6[%c0_22, %c0_23] : memref<256x128xbf16, #tpu.memory_space<vmem>>, vector<256x128xbf16>
      tpu.vector_store %arg6[%c0_22, %c0_23], %27 {strides = array<i32>} : memref<256x128xbf16, #tpu.memory_space<vmem>>, vector<256x128xbf16>,
    } else {
    }
    return
  }
  func.func @transform_0(%arg0: i32, %arg1: i32) -> (i32, i32) {
    %c0_i32 = arith.constant 0 : i32
    return %arg0, %arg1 : i32, i32
  }
  func.func @transform_1(%arg0: i32, %arg1: i32) -> (i32, i32) {
    %c0_i32 = arith.constant 0 : i32
    %c1_i32 = arith.constant 1 : i32
    %c0_i32_0 = arith.constant 0 : i32
    return %c0_i32, %c1_i32 : i32, i32
  }
  func.func @transform_2(%arg0: i32, %arg1: i32) -> (i32, i32) {
    %c0_i32 = arith.constant 0 : i32
    %c0_i32_0 = arith.constant 0 : i32
    %c0_i32_1 = arith.constant 0 : i32
    return %c0_i32, %c0_i32_0 : i32, i32
  }
  func.func @transform_3(%arg0: i32, %arg1: i32) -> (i32, i32) {
    %c0_i32 = arith.constant 0 : i32
    %c0_i32_0 = arith.constant 0 : i32
    return %arg0, %c0_i32 : i32, i32
  }
  func.func @transform_4(%arg0: i32, %arg1: i32) -> (i32, i32) {
    %c0_i32 = arith.constant 0 : i32
    %c0_i32_0 = arith.constant 0 : i32
    return %arg0, %c0_i32 : i32, i32
  }
}

module attributes {stable_mosaic.version = 11 : i64} {
  func.func @_aggregate_kernel(%arg0: i32, %arg1: i32, %arg2: memref<256x256xbf16, #tpu.memory_space<vmem>>, %arg3: memref<256x128xbf16, #tpu.memory_space<vmem>>, %arg4: memref<256x128xbf16, #tpu.memory_space<vmem>>, %arg5: memref<256x128xf32, #tpu.memory_space<vmem>>) attributes {dimension_semantics = [#tpu.dimension_semantics<parallel>, #tpu.dimension_semantics<arbitrary>], iteration_bounds = array<i64: 1, 1>, scalar_prefetch = 0 : i64, scratch_operands = 1 : i64, tpu.core_type = #tpu.core_type<tc>, window_params = [{transform_indices = @transform_0, window_bounds = array<i64: 256, 256>}, {pipeline_mode = #tpu.pipeline_mode<synchronous>, transform_indices = @transform_1, window_bounds = array<i64: 256, 128>}, {transform_indices = @transform_2, window_bounds = array<i64: 256, 128>}]} {
    %c0_i32 = arith.constant 0 : i32
    %0 = arith.cmpi eq, %arg1, %c0_i32 : i32
    %1 = arith.extui %0 : i1 to i32
    %c0_i32_0 = arith.constant 0 : i32
    %2 = arith.cmpi ne, %1, %c0_i32_0 : i32
    scf.if %2 {
      %cst_9 = arith.constant 0.000000e+00 : f32
      %15 = vector.broadcast %cst_9 : f32 to vector<256x128xf32>
      %c0_10 = arith.constant 0 : index
      %c0_11 = arith.constant 0 : index
      %16 = vector.load %arg5[%c0_10, %c0_11] : memref<256x128xf32, #tpu.memory_space<vmem>>, vector<256x128xf32>
      tpu.vector_store %arg5[%c0_10, %c0_11], %15 {strides = array<i32>} : memref<256x128xf32, #tpu.memory_space<vmem>>, vector<256x128xf32>,
    } else {
    }
    %c256_i32 = arith.constant 256 : i32
    %3 = arith.muli %arg1, %c256_i32 : i32
    %4 = tpu.assume_multiple %3, 256 : i32
    %5 = arith.index_cast %4 : i32 to index
    %c0 = arith.constant 0 : index
    %6 = vector.load %arg3[%5, %c0] : memref<256x128xbf16, #tpu.memory_space<vmem>>, vector<256x128xbf16>
    %c0_1 = arith.constant 0 : index
    %c0_2 = arith.constant 0 : index
    %7 = vector.load %arg5[%c0_1, %c0_2] : memref<256x128xf32, #tpu.memory_space<vmem>>, vector<256x128xf32>
    %c0_3 = arith.constant 0 : index
    %c0_4 = arith.constant 0 : index
    %8 = vector.load %arg2[%c0_3, %c0_4] : memref<256x256xbf16, #tpu.memory_space<vmem>>, vector<256x256xbf16>
    %cst = arith.constant dense<0.000000e+00> : vector<256x128xf32>
    %9 = tpu.matmul %8, %6, %cst {dimension_numbers = #tpu.dot_dimension_numbers<[1], [0], [0], [1], [0, 0, 1, 1], [], []>} : vector<256x256xbf16>, vector<256x128xbf16>, vector<256x128xf32> -> vector<256x128xf32>
    %10 = arith.addf %7, %9 : vector<256x128xf32>
    %c0_5 = arith.constant 0 : index
    %c0_6 = arith.constant 0 : index
    %11 = vector.load %arg5[%c0_5, %c0_6] : memref<256x128xf32, #tpu.memory_space<vmem>>, vector<256x128xf32>
    tpu.vector_store %arg5[%c0_5, %c0_6], %10 {strides = array<i32>} : memref<256x128xf32, #tpu.memory_space<vmem>>, vector<256x128xf32>,
    %c0_i32_7 = arith.constant 0 : i32
    %12 = arith.cmpi eq, %arg1, %c0_i32_7 : i32
    %13 = arith.extui %12 : i1 to i32
    %c0_i32_8 = arith.constant 0 : i32
    %14 = arith.cmpi ne, %13, %c0_i32_8 : i32
    scf.if %14 {
      %c0_9 = arith.constant 0 : index
      %c0_10 = arith.constant 0 : index
      %15 = vector.load %arg5[%c0_9, %c0_10] : memref<256x128xf32, #tpu.memory_space<vmem>>, vector<256x128xf32>
      %16 = arith.truncf %15 : vector<256x128xf32> to vector<256x128xbf16>
      %c0_11 = arith.constant 0 : index
      %c0_12 = arith.constant 0 : index
      %17 = vector.load %arg4[%c0_11, %c0_12] : memref<256x128xbf16, #tpu.memory_space<vmem>>, vector<256x128xbf16>
      tpu.vector_store %arg4[%c0_11, %c0_12], %16 {strides = array<i32>} : memref<256x128xbf16, #tpu.memory_space<vmem>>, vector<256x128xbf16>,
    } else {
    }
    return
  }
  func.func @transform_0(%arg0: i32, %arg1: i32) -> (i32, i32) {
    %c0_i32 = arith.constant 0 : i32
    return %arg0, %arg1 : i32, i32
  }
  func.func @transform_1(%arg0: i32, %arg1: i32) -> (i32, i32) {
    %c0_i32 = arith.constant 0 : i32
    %c0_i32_0 = arith.constant 0 : i32
    %c0_i32_1 = arith.constant 0 : i32
    return %c0_i32, %c0_i32_0 : i32, i32
  }
  func.func @transform_2(%arg0: i32, %arg1: i32) -> (i32, i32) {
    %c0_i32 = arith.constant 0 : i32
    %c0_i32_0 = arith.constant 0 : i32
    return %arg0, %c0_i32 : i32, i32
  }
}

module attributes {stable_mosaic.version = 11 : i64} {
  func.func @_decoder_kernel(%arg0: i32, %arg1: i32, %arg2: memref<256x128xbf16, #tpu.memory_space<vmem>>, %arg3: memref<128x256xbf16, #tpu.memory_space<vmem>>, %arg4: memref<256x256xbf16, #tpu.memory_space<vmem>>) attributes {dimension_semantics = [#tpu.dimension_semantics<parallel>, #tpu.dimension_semantics<parallel>], iteration_bounds = array<i64: 1, 1>, scalar_prefetch = 0 : i64, scratch_operands = 0 : i64, tpu.core_type = #tpu.core_type<tc>, window_params = [{transform_indices = @transform_0, window_bounds = array<i64: 256, 128>}, {transform_indices = @transform_1, window_bounds = array<i64: 128, 256>}, {transform_indices = @transform_2, window_bounds = array<i64: 256, 256>}]} {
    %c0 = arith.constant 0 : index
    %c0_0 = arith.constant 0 : index
    %0 = vector.load %arg2[%c0, %c0_0] : memref<256x128xbf16, #tpu.memory_space<vmem>>, vector<256x128xbf16>
    %c0_1 = arith.constant 0 : index
    %c0_2 = arith.constant 0 : index
    %1 = vector.load %arg3[%c0_1, %c0_2] : memref<128x256xbf16, #tpu.memory_space<vmem>>, vector<128x256xbf16>
    %cst = arith.constant dense<0.000000e+00> : vector<256x256xf32>
    %2 = tpu.matmul %0, %1, %cst {dimension_numbers = #tpu.dot_dimension_numbers<[1], [0], [0], [1], [0, 0, 1, 1], [], []>} : vector<256x128xbf16>, vector<128x256xbf16>, vector<256x256xf32> -> vector<256x256xf32>
    %3 = arith.negf %2 : vector<256x256xf32>
    %4 = math.exp %3 : vector<256x256xf32>
    %cst_3 = arith.constant 1.000000e+00 : f32
    %5 = vector.broadcast %cst_3 : f32 to vector<256x256xf32>
    %6 = arith.addf %5, %4 : vector<256x256xf32>
    %7 = arith.divf %5, %6 : vector<256x256xf32>
    %8 = arith.truncf %7 : vector<256x256xf32> to vector<256x256xbf16>
    %c0_4 = arith.constant 0 : index
    %c0_5 = arith.constant 0 : index
    %9 = vector.load %arg4[%c0_4, %c0_5] : memref<256x256xbf16, #tpu.memory_space<vmem>>, vector<256x256xbf16>
    tpu.vector_store %arg4[%c0_4, %c0_5], %8 {strides = array<i32>} : memref<256x256xbf16, #tpu.memory_space<vmem>>, vector<256x256xbf16>,
    return
  }
  func.func @transform_0(%arg0: i32, %arg1: i32) -> (i32, i32) {
    %c0_i32 = arith.constant 0 : i32
    %c0_i32_0 = arith.constant 0 : i32
    return %arg0, %c0_i32 : i32, i32
  }
  func.func @transform_1(%arg0: i32, %arg1: i32) -> (i32, i32) {
    %c0_i32 = arith.constant 0 : i32
    %c0_i32_0 = arith.constant 0 : i32
    return %c0_i32, %arg1 : i32, i32
  }
  func.func @transform_2(%arg0: i32, %arg1: i32) -> (i32, i32) {
    %c0_i32 = arith.constant 0 : i32
    return %arg0, %arg1 : i32, i32
  }
}

</mosaic_0001>

<llo_original>
// kernel: mul.2
$region0: #{mul.2}
  #allocation0 [shape = 's32[1]{0}', space=sflag, size = 0x4, scoped, tag = 'scoped memory for mul.2']
  %s0 = inlined_call_operand.vmem [shape: f32[42], index: 0, kind: input, shape index: {}]
  %s1 = inlined_call_operand.vmem [shape: f32[42], index: 1, kind: input, shape index: {}]
  %s2 = inlined_call_operand.vmem [shape: f32[42], index: 2, kind: output, shape index: {}]
  %v3 = vld [vmem:[%s0] sm:$0x1]
  %v4 = vld [vmem:[%s1] sm:$0x1]
  %5 = xla_tuple %v3, %v4
  %6 = xla_tuple %5
  %v7 = vmul.f32 %v3, %v4
  %8 = xla_tuple %v7
  %9 = vst [vmem:[%s2] sm:$0x1] %v7

// kernel: digae_forward.7
$region0: #{digae_forward.7}
  #allocation0 [shape = 'u32[]', space=smem, size = 0x4, offset = 0x4, fixed_abs, tag = 'smem constant byte address 0x4 - core index']
  #allocation1 [shape = 'u32[144,128]{1,0:T(1,128)}', space=vmem, size = 0x12000, scoped, tag = 'internal scratch']
  %s0 = inlined_call_operand.vmem [shape: bf16[256,128], index: 0, kind: input, shape index: {}]
  %s1 = inlined_call_operand.vmem [shape: bf16[128,256], index: 1, kind: input, shape index: {}]
  %s2 = inlined_call_operand.vmem [shape: f32[1,256], index: 2, kind: input, shape index: {}]
  %s3 = inlined_call_operand.vmem [shape: bf16[256,256], index: 3, kind: output, shape index: {}]
  %s4 = sld [smem:[#allocation0]]
  $region22: #{digae_forward.7} parent=0
    _
  %s6 = ssub.s32 1, %s4
  %s7 = scalar_select 0, %s6, %s4
  // Predicated region
  $region2: #{digae_forward.7} parent=0 // pred_check
    _
  $region3: #{digae_forward.7} parent=0 // pred_check_branch
    %9 = sbr.rel (0) target = $region5
  $region4: #{digae_forward.7} parent=0 // pred_region
    _
  $region5: #{digae_forward.7} parent=0 // pred_fallthru
    _
  // Predicated region
  $region6: #{digae_forward.7} parent=0 // pred_check
    _
  $region7: #{digae_forward.7} parent=0 // pred_check_branch
    %11 = sbr.rel (0) target = $region9
  $region8: #{digae_forward.7} parent=0 // pred_region
    _
  $region9: #{digae_forward.7} parent=0 // pred_fallthru
    _
  // Predicated region
  $region10: #{digae_forward.7} parent=0 // pred_check
    _
  $region11: #{digae_forward.7} parent=0 // pred_check_branch
    %13 = sbr.rel (0) target = $region13
  $region12: #{digae_forward.7} parent=0 // pred_region
    _
  $region13: #{digae_forward.7} parent=0 // pred_fallthru
    _
  %v15 = vld [vmem:[%s0] sm:$0xf]
  %v16 = vld [vmem:[%s0 + $0x4] sm:$0xf]
  %v17 = vld [vmem:[%s0 + $0x8] sm:$0xf]
  %v18 = vld [vmem:[%s0 + $0xc] sm:$0xf]
  %v19 = vld [vmem:[%s0 + $0x10] sm:$0xf]
  %v20 = vld [vmem:[%s0 + $0x14] sm:$0xf]
  %v21 = vld [vmem:[%s0 + $0x18] sm:$0xf]
  %v22 = vld [vmem:[%s0 + $0x1c] sm:$0xf]
  %v23 = vld [vmem:[%s0 + $0x20] sm:$0xf]
  %v24 = vld [vmem:[%s0 + $0x24] sm:$0xf]
  %v25 = vld [vmem:[%s0 + $0x28] sm:$0xf]
  %v26 = vld [vmem:[%s0 + $0x2c] sm:$0xf]
  %v27 = vld [vmem:[%s0 + $0x30] sm:$0xf]
  %v28 = vld [vmem:[%s0 + $0x34] sm:$0xf]
  %v29 = vld [vmem:[%s0 + $0x38] sm:$0xf]
  %v30 = vld [vmem:[%s0 + $0x3c] sm:$0xf]
  %v31 = vld [vmem:[%s0 + $0x40] sm:$0xf]
  %v32 = vld [vmem:[%s0 + $0x44] sm:$0xf]
  %v33 = vld [vmem:[%s0 + $0x48] sm:$0xf]
  %v34 = vld [vmem:[%s0 + $0x4c] sm:$0xf]
  %v35 = vld [vmem:[%s0 + $0x50] sm:$0xf]
  %v36 = vld [vmem:[%s0 + $0x54] sm:$0xf]
  %v37 = vld [vmem:[%s0 + $0x58] sm:$0xf]
  %v38 = vld [vmem:[%s0 + $0x5c] sm:$0xf]
  %v39 = vld [vmem:[%s0 + $0x60] sm:$0xf]
  %v40 = vld [vmem:[%s0 + $0x64] sm:$0xf]
  %v41 = vld [vmem:[%s0 + $0x68] sm:$0xf]
  %v42 = vld [vmem:[%s0 + $0x6c] sm:$0xf]
  %v43 = vld [vmem:[%s0 + $0x70] sm:$0xf]
  %v44 = vld [vmem:[%s0 + $0x74] sm:$0xf]
  %v45 = vld [vmem:[%s0 + $0x78] sm:$0xf]
  %v46 = vld [vmem:[%s0 + $0x7c] sm:$0xf]
  %v47 = vld [vmem:[%s1] sm:$0xff]
  %v48 = vld [vmem:[%s1 + $0x8] sm:$0xff]
  %v49 = vld [vmem:[%s1 + $0x10] sm:$0xff]
  %v50 = vld [vmem:[%s1 + $0x18] sm:$0xff]
  %v51 = vld [vmem:[%s1 + $0x20] sm:$0xff]
  %v52 = vld [vmem:[%s1 + $0x28] sm:$0xff]
  %v53 = vld [vmem:[%s1 + $0x30] sm:$0xff]
  %v54 = vld [vmem:[%s1 + $0x38] sm:$0xff]
  %v55 = vld [vmem:[%s1 + $0x40] sm:$0xff]
  %v56 = vld [vmem:[%s1 + $0x48] sm:$0xff]
  %v57 = vld [vmem:[%s1 + $0x50] sm:$0xff]
  %v58 = vld [vmem:[%s1 + $0x58] sm:$0xff]
  %v59 = vld [vmem:[%s1 + $0x60] sm:$0xff]
  %v60 = vld [vmem:[%s1 + $0x68] sm:$0xff]
  %v61 = vld [vmem:[%s1 + $0x70] sm:$0xff]
  %v62 = vld [vmem:[%s1 + $0x78] sm:$0xff]
  %v63 = vld [vmem:[%s2] sm:$0x3]
  %v65 = vlaneseq
  %v66 = vshrl.u32 %v65, 7
  %v67 = vsub.s32 0, %v66
  %v68 = vrot.slane %v63, %v67
  %v69 = vlaneseq
  %v70 = vshrl.u32 %v69, 7
  %v71 = vsub.s32 1, %v70
  %v72 = vrot.slane %v63, %v71
  %v107 = vunpack.c.l.b16 %v15
  %v108 = vunpack.c.l.b16 %v16
  %v109 = vunpack.c.l.b16 %v17
  %v110 = vunpack.c.l.b16 %v18
  %v111 = vunpack.c.l.b16 %v19
  %v112 = vunpack.c.l.b16 %v20
  %v113 = vunpack.c.l.b16 %v21
  %v114 = vunpack.c.l.b16 %v22
  %v115 = vunpack.c.l.b16 %v23
  %v116 = vunpack.c.l.b16 %v24
  %v117 = vunpack.c.l.b16 %v25
  %v118 = vunpack.c.l.b16 %v26
  %v119 = vunpack.c.l.b16 %v27
  %v120 = vunpack.c.l.b16 %v28
  %v121 = vunpack.c.l.b16 %v29
  %v122 = vunpack.c.l.b16 %v30
  %v123 = vunpack.c.l.b16 %v31
  %v124 = vunpack.c.l.b16 %v32
  %v125 = vunpack.c.l.b16 %v33
  %v126 = vunpack.c.l.b16 %v34
  %v127 = vunpack.c.l.b16 %v35
  %v128 = vunpack.c.l.b16 %v36
  %v129 = vunpack.c.l.b16 %v37
  %v130 = vunpack.c.l.b16 %v38
  %v131 = vunpack.c.l.b16 %v39
  %v132 = vunpack.c.l.b16 %v40
  %v133 = vunpack.c.l.b16 %v41
  %v134 = vunpack.c.l.b16 %v42
  %v135 = vunpack.c.l.b16 %v43
  %v136 = vunpack.c.l.b16 %v44
  %v137 = vunpack.c.l.b16 %v45
  %v138 = vunpack.c.l.b16 %v46
  %v139 = vpack.c.b16 %v108, %v107
  %v140 = vpack.c.b16 %v110, %v109
  %v141 = vpack.c.b16 %v112, %v111
  %v142 = vpack.c.b16 %v114, %v113
  %v143 = vpack.c.b16 %v116, %v115
  %v144 = vpack.c.b16 %v118, %v117
  %v145 = vpack.c.b16 %v120, %v119
  %v146 = vpack.c.b16 %v122, %v121
  %v147 = vpack.c.b16 %v124, %v123
  %v148 = vpack.c.b16 %v126, %v125
  %v149 = vpack.c.b16 %v128, %v127
  %v150 = vpack.c.b16 %v130, %v129
  %v151 = vpack.c.b16 %v132, %v131
  %v152 = vpack.c.b16 %v134, %v133
  %v153 = vpack.c.b16 %v136, %v135
  %v154 = vpack.c.b16 %v138, %v137
  %v187 = vunpack.c.l.b16 %v47
  %v188 = vunpack.c.h.b16 %v47
  %v189 = vunpack.c.l.b16 %v48
  %v190 = vunpack.c.h.b16 %v48
  %v191 = vunpack.c.l.b16 %v49
  %v192 = vunpack.c.h.b16 %v49
  %v193 = vunpack.c.l.b16 %v50
  %v194 = vunpack.c.h.b16 %v50
  %v195 = vunpack.c.l.b16 %v51
  %v196 = vunpack.c.h.b16 %v51
  %v197 = vunpack.c.l.b16 %v52
  %v198 = vunpack.c.h.b16 %v52
  %v199 = vunpack.c.l.b16 %v53
  %v200 = vunpack.c.h.b16 %v53
  %v201 = vunpack.c.l.b16 %v54
  %v202 = vunpack.c.h.b16 %v54
  %v203 = vunpack.c.l.b16 %v55
  %v204 = vunpack.c.h.b16 %v55
  %v205 = vunpack.c.l.b16 %v56
  %v206 = vunpack.c.h.b16 %v56
  %v207 = vunpack.c.l.b16 %v57
  %v208 = vunpack.c.h.b16 %v57
  %v209 = vunpack.c.l.b16 %v58
  %v210 = vunpack.c.h.b16 %v58
  %v211 = vunpack.c.l.b16 %v59
  %v212 = vunpack.c.h.b16 %v59
  %v213 = vunpack.c.l.b16 %v60
  %v214 = vunpack.c.h.b16 %v60
  %v215 = vunpack.c.l.b16 %v61
  %v216 = vunpack.c.h.b16 %v61
  %v217 = vunpack.c.l.b16 %v62
  %v218 = vunpack.c.h.b16 %v62
  %v219 = vpack.c.b16 %v189, %v187
  %v220 = vpack.c.b16 %v190, %v188
  %v221 = vpack.c.b16 %v193, %v191
  %v222 = vpack.c.b16 %v194, %v192
  %v223 = vpack.c.b16 %v197, %v195
  %v224 = vpack.c.b16 %v198, %v196
  %v225 = vpack.c.b16 %v201, %v199
  %v226 = vpack.c.b16 %v202, %v200
  %v227 = vpack.c.b16 %v205, %v203
  %v228 = vpack.c.b16 %v206, %v204
  %v229 = vpack.c.b16 %v209, %v207
  %v230 = vpack.c.b16 %v210, %v208
  %v231 = vpack.c.b16 %v213, %v211
  %v232 = vpack.c.b16 %v214, %v212
  %v233 = vpack.c.b16 %v217, %v215
  %v234 = vpack.c.b16 %v218, %v216
  %251 = vmatprep.subr.bf16.mxu0 %v220
  %252 = vmatpush1.bf16.msra.mxu0 %v219
  %253 = vmatprep.subr.bf16.mxu0 %v222
  %254 = vmatpush1.bf16.msra.mxu0 %v221
  %255 = vmatprep.subr.bf16.mxu0 %v224
  %256 = vmatpush1.bf16.msra.mxu0 %v223
  %257 = vmatprep.subr.bf16.mxu0 %v226
  %258 = vmatpush1.bf16.msra.mxu0 %v225
  %259 = vmatprep.subr.bf16.mxu0 %v228
  %260 = vmatpush1.bf16.msra.mxu0 %v227
  %261 = vmatprep.subr.bf16.mxu0 %v230
  %262 = vmatpush1.bf16.msra.mxu0 %v229
  %263 = vmatprep.subr.bf16.mxu0 %v232
  %264 = vmatpush1.bf16.msra.mxu0 %v231
  %265 = vmatprep.subr.bf16.mxu0 %v234
  %266 = vmatpush1.bf16.msra.mxu0 %v233
  %267 = vmatprep.subr.bf16.mxu0 0
  %268 = vmatpush1.bf16.msra.mxu0 0
  %269 = vmatprep.subr.bf16.mxu0 0
  %270 = vmatpush1.bf16.msra.mxu0 0
  %271 = vmatprep.subr.bf16.mxu0 0
  %272 = vmatpush1.bf16.msra.mxu0 0
  %273 = vmatprep.subr.bf16.mxu0 0
  %274 = vmatpush1.bf16.msra.mxu0 0
  %275 = vmatprep.subr.bf16.mxu0 0
  %276 = vmatpush1.bf16.msra.mxu0 0
  %277 = vmatprep.subr.bf16.mxu0 0
  %278 = vmatpush1.bf16.msra.mxu0 0
  %279 = vmatprep.subr.bf16.mxu0 0
  %280 = vmatpush1.bf16.msra.mxu0 0
  %281 = vmatprep.subr.bf16.mxu0 0
  %282 = vmatpush1.bf16.msra.mxu0 0
  %283 = vmatprep.mubr.bf16.mxu0 0
  %284 = vmatmul.mubr.bf16.gmra.mrb[0].mxu0 %v139
  %v285 = vpop.f32.mrb[0].mxu0
  %v286 = vadd.f32 %v68, %v285
  %v287 = vpop.f32.mrb[0].mxu0
  %v288 = vadd.f32 %v72, %v287
  %v289 = vpop.f32.mrb[0].mxu0
  %v290 = vadd.f32 %v68, %v289
  %v291 = vpop.f32.mrb[0].mxu0
  %v292 = vadd.f32 %v72, %v291
  %293 = vmatprep.mubr.bf16.mxu0 0
  %294 = vmatmul.mubr.bf16.gmra.mrb[0].mxu0 %v140
  %v295 = vpop.f32.mrb[0].mxu0
  %v296 = vadd.f32 %v68, %v295
  %v297 = vpop.f32.mrb[0].mxu0
  %v298 = vadd.f32 %v72, %v297
  %v299 = vpop.f32.mrb[0].mxu0
  %v300 = vadd.f32 %v68, %v299
  %v301 = vpop.f32.mrb[0].mxu0
  %v302 = vadd.f32 %v72, %v301
  %303 = vmatprep.mubr.bf16.mxu0 0
  %304 = vmatmul.mubr.bf16.gmra.mrb[0].mxu0 %v141
  %v305 = vpop.f32.mrb[0].mxu0
  %v306 = vadd.f32 %v68, %v305
  %v307 = vpop.f32.mrb[0].mxu0
  %v308 = vadd.f32 %v72, %v307
  %v309 = vpop.f32.mrb[0].mxu0
  %v310 = vadd.f32 %v68, %v309
  %v311 = vpop.f32.mrb[0].mxu0
  %v312 = vadd.f32 %v72, %v311
  %313 = vmatprep.mubr.bf16.mxu0 0
  %314 = vmatmul.mubr.bf16.gmra.mrb[0].mxu0 %v142
  %v315 = vpop.f32.mrb[0].mxu0
  %v316 = vadd.f32 %v68, %v315
  %v317 = vpop.f32.mrb[0].mxu0
  %v318 = vadd.f32 %v72, %v317
  %v319 = vpop.f32.mrb[0].mxu0
  %v320 = vadd.f32 %v68, %v319
  %v321 = vpop.f32.mrb[0].mxu0
  %v322 = vadd.f32 %v72, %v321
  %323 = vmatprep.mubr.bf16.mxu0 0
  %324 = vmatmul.mubr.bf16.gmra.mrb[0].mxu0 %v143
  %v325 = vpop.f32.mrb[0].mxu0
  %v326 = vadd.f32 %v68, %v325
  %v327 = vpop.f32.mrb[0].mxu0
  %v328 = vadd.f32 %v72, %v327
  %v329 = vpop.f32.mrb[0].mxu0
  %v330 = vadd.f32 %v68, %v329
  %v331 = vpop.f32.mrb[0].mxu0
  %v332 = vadd.f32 %v72, %v331
  %333 = vmatprep.mubr.bf16.mxu0 0
  %334 = vmatmul.mubr.bf16.gmra.mrb[0].mxu0 %v144
  %v335 = vpop.f32.mrb[0].mxu0
  %v336 = vadd.f32 %v68, %v335
  %v337 = vpop.f32.mrb[0].mxu0
  %v338 = vadd.f32 %v72, %v337
  %v339 = vpop.f32.mrb[0].mxu0
  %v340 = vadd.f32 %v68, %v339
  %v341 = vpop.f32.mrb[0].mxu0
  %v342 = vadd.f32 %v72, %v341
  %343 = vmatprep.mubr.bf16.mxu0 0
  %344 = vmatmul.mubr.bf16.gmra.mrb[0].mxu0 %v145
  %v345 = vpop.f32.mrb[0].mxu0
  %v346 = vadd.f32 %v68, %v345
  %v347 = vpop.f32.mrb[0].mxu0
  %v348 = vadd.f32 %v72, %v347
  %v349 = vpop.f32.mrb[0].mxu0
  %v350 = vadd.f32 %v68, %v349
  %v351 = vpop.f32.mrb[0].mxu0
  %v352 = vadd.f32 %v72, %v351
  %353 = vmatprep.mubr.bf16.mxu0 0
  %354 = vmatmul.mubr.bf16.gmra.mrb[0].mxu0 %v146
  %v355 = vpop.f32.mrb[0].mxu0
  %v356 = vadd.f32 %v68, %v355
  %v357 = vpop.f32.mrb[0].mxu0
  %v358 = vadd.f32 %v72, %v357
  %v359 = vpop.f32.mrb[0].mxu0
  %v360 = vadd.f32 %v68, %v359
  %v361 = vpop.f32.mrb[0].mxu0
  %v362 = vadd.f32 %v72, %v361
  %363 = vmatprep.mubr.bf16.mxu0 0
  %364 = vmatmul.mubr.bf16.gmra.mrb[0].mxu0 %v147
  %v365 = vpop.f32.mrb[0].mxu0
  %v366 = vadd.f32 %v68, %v365
  %v367 = vpop.f32.mrb[0].mxu0
  %v368 = vadd.f32 %v72, %v367
  %v369 = vpop.f32.mrb[0].mxu0
  %v370 = vadd.f32 %v68, %v369
  %v371 = vpop.f32.mrb[0].mxu0
  %v372 = vadd.f32 %v72, %v371
  %373 = vmatprep.mubr.bf16.mxu0 0
  %374 = vmatmul.mubr.bf16.gmra.mrb[0].mxu0 %v148
  %v375 = vpop.f32.mrb[0].mxu0
  %v376 = vadd.f32 %v68, %v375
  %v377 = vpop.f32.mrb[0].mxu0
  %v378 = vadd.f32 %v72, %v377
  %v379 = vpop.f32.mrb[0].mxu0
  %v380 = vadd.f32 %v68, %v379
  %v381 = vpop.f32.mrb[0].mxu0
  %v382 = vadd.f32 %v72, %v381
  %383 = vmatprep.mubr.bf16.mxu0 0
  %384 = vmatmul.mubr.bf16.gmra.mrb[0].mxu0 %v149
  %v385 = vpop.f32.mrb[0].mxu0
  %v386 = vadd.f32 %v68, %v385
  %v387 = vpop.f32.mrb[0].mxu0
  %v388 = vadd.f32 %v72, %v387
  %v389 = vpop.f32.mrb[0].mxu0
  %v390 = vadd.f32 %v68, %v389
  %v391 = vpop.f32.mrb[0].mxu0
  %v392 = vadd.f32 %v72, %v391
  %393 = vmatprep.mubr.bf16.mxu0 0
  %394 = vmatmul.mubr.bf16.gmra.mrb[0].mxu0 %v150
  %v395 = vpop.f32.mrb[0].mxu0
  %v396 = vadd.f32 %v68, %v395
  %v397 = vpop.f32.mrb[0].mxu0
  %v398 = vadd.f32 %v72, %v397
  %v399 = vpop.f32.mrb[0].mxu0
  %v400 = vadd.f32 %v68, %v399
  %v401 = vpop.f32.mrb[0].mxu0
  %v402 = vadd.f32 %v72, %v401
  %403 = vmatprep.mubr.bf16.mxu0 0
  %404 = vmatmul.mubr.bf16.gmra.mrb[0].mxu0 %v151
  %v405 = vpop.f32.mrb[0].mxu0
  %v406 = vadd.f32 %v68, %v405
  %v407 = vpop.f32.mrb[0].mxu0
  %v408 = vadd.f32 %v72, %v407
  %v409 = vpop.f32.mrb[0].mxu0
  %v410 = vadd.f32 %v68, %v409
  %v411 = vpop.f32.mrb[0].mxu0
  %v412 = vadd.f32 %v72, %v411
  %413 = vmatprep.mubr.bf16.mxu0 0
  %414 = vmatmul.mubr.bf16.gmra.mrb[0].mxu0 %v152
  %v415 = vpop.f32.mrb[0].mxu0
  %v416 = vadd.f32 %v68, %v415
  %v417 = vpop.f32.mrb[0].mxu0
  %v418 = vadd.f32 %v72, %v417
  %v419 = vpop.f32.mrb[0].mxu0
  %v420 = vadd.f32 %v68, %v419
  %v421 = vpop.f32.mrb[0].mxu0
  %v422 = vadd.f32 %v72, %v421
  %423 = vmatprep.mubr.bf16.mxu0 0
  %424 = vmatmul.mubr.bf16.gmra.mrb[0].mxu0 %v153
  %v425 = vpop.f32.mrb[0].mxu0
  %v426 = vadd.f32 %v68, %v425
  %v427 = vpop.f32.mrb[0].mxu0
  %v428 = vadd.f32 %v72, %v427
  %v429 = vpop.f32.mrb[0].mxu0
  %v430 = vadd.f32 %v68, %v429
  %v431 = vpop.f32.mrb[0].mxu0
  %v432 = vadd.f32 %v72, %v431
  %433 = vmatprep.mubr.bf16.mxu0 0
  %434 = vmatmul.mubr.bf16.gmra.mrb[0].mxu0 %v154
  %v435 = vpop.f32.mrb[0].mxu0
  %v436 = vadd.f32 %v68, %v435
  %v437 = vpop.f32.mrb[0].mxu0
  %v438 = vadd.f32 %v72, %v437
  %v439 = vpop.f32.mrb[0].mxu0
  %v440 = vadd.f32 %v68, %v439
  %v441 = vpop.f32.mrb[0].mxu0
  %v442 = vadd.f32 %v72, %v441
  %443 = vdwg.mxu0
  %v444 = vpack.c.bf16 %v290, %v286
  %v445 = vpack.c.bf16 %v292, %v288
  %v446 = vpack.c.bf16 %v300, %v296
  %v447 = vpack.c.bf16 %v302, %v298
  %v448 = vpack.c.bf16 %v310, %v306
  %v449 = vpack.c.bf16 %v312, %v308
  %v450 = vpack.c.bf16 %v320, %v316
  %v451 = vpack.c.bf16 %v322, %v318
  %v452 = vpack.c.bf16 %v330, %v326
  %v453 = vpack.c.bf16 %v332, %v328
  %v454 = vpack.c.bf16 %v340, %v336
  %v455 = vpack.c.bf16 %v342, %v338
  %v456 = vpack.c.bf16 %v350, %v346
  %v457 = vpack.c.bf16 %v352, %v348
  %v458 = vpack.c.bf16 %v360, %v356
  %v459 = vpack.c.bf16 %v362, %v358
  %v460 = vpack.c.bf16 %v370, %v366
  %v461 = vpack.c.bf16 %v372, %v368
  %v462 = vpack.c.bf16 %v380, %v376
  %v463 = vpack.c.bf16 %v382, %v378
  %v464 = vpack.c.bf16 %v390, %v386
  %v465 = vpack.c.bf16 %v392, %v388
  %v466 = vpack.c.bf16 %v400, %v396
  %v467 = vpack.c.bf16 %v402, %v398
  %v468 = vpack.c.bf16 %v410, %v406
  %v469 = vpack.c.bf16 %v412, %v408
  %v470 = vpack.c.bf16 %v420, %v416
  %v471 = vpack.c.bf16 %v422, %v418
  %v472 = vpack.c.bf16 %v430, %v426
  %v473 = vpack.c.bf16 %v432, %v428
  %v474 = vpack.c.bf16 %v440, %v436
  %v475 = vpack.c.bf16 %v442, %v438
  %v508 = vunpack.c.l.b16 %v444
  %v509 = vunpack.c.l.b16 %v445
  %v510 = vunpack.c.h.b16 %v444
  %v511 = vunpack.c.h.b16 %v445
  %v512 = vunpack.c.l.b16 %v446
  %v513 = vunpack.c.l.b16 %v447
  %v514 = vunpack.c.h.b16 %v446
  %v515 = vunpack.c.h.b16 %v447
  %v516 = vunpack.c.l.b16 %v448
  %v517 = vunpack.c.l.b16 %v449
  %v518 = vunpack.c.h.b16 %v448
  %v519 = vunpack.c.h.b16 %v449
  %v520 = vunpack.c.l.b16 %v450
  %v521 = vunpack.c.l.b16 %v451
  %v522 = vunpack.c.h.b16 %v450
  %v523 = vunpack.c.h.b16 %v451
  %v524 = vunpack.c.l.b16 %v452
  %v525 = vunpack.c.l.b16 %v453
  %v526 = vunpack.c.h.b16 %v452
  %v527 = vunpack.c.h.b16 %v453
  %v528 = vunpack.c.l.b16 %v454
  %v529 = vunpack.c.l.b16 %v455
  %v530 = vunpack.c.h.b16 %v454
  %v531 = vunpack.c.h.b16 %v455
  %v532 = vunpack.c.l.b16 %v456
  %v533 = vunpack.c.l.b16 %v457
  %v534 = vunpack.c.h.b16 %v456
  %v535 = vunpack.c.h.b16 %v457
  %v536 = vunpack.c.l.b16 %v458
  %v537 = vunpack.c.l.b16 %v459
  %v538 = vunpack.c.h.b16 %v458
  %v539 = vunpack.c.h.b16 %v459
  %v540 = vunpack.c.l.b16 %v460
  %v541 = vunpack.c.l.b16 %v461
  %v542 = vunpack.c.h.b16 %v460
  %v543 = vunpack.c.h.b16 %v461
  %v544 = vunpack.c.l.b16 %v462
  %v545 = vunpack.c.l.b16 %v463
  %v546 = vunpack.c.h.b16 %v462
  %v547 = vunpack.c.h.b16 %v463
  %v548 = vunpack.c.l.b16 %v464
  %v549 = vunpack.c.l.b16 %v465
  %v550 = vunpack.c.h.b16 %v464
  %v551 = vunpack.c.h.b16 %v465
  %v552 = vunpack.c.l.b16 %v466
  %v553 = vunpack.c.l.b16 %v467
  %v554 = vunpack.c.h.b16 %v466
  %v555 = vunpack.c.h.b16 %v467
  %v556 = vunpack.c.l.b16 %v468
  %v557 = vunpack.c.l.b16 %v469
  %v558 = vunpack.c.h.b16 %v468
  %v559 = vunpack.c.h.b16 %v469
  %v560 = vunpack.c.l.b16 %v470
  %v561 = vunpack.c.l.b16 %v471
  %v562 = vunpack.c.h.b16 %v470
  %v563 = vunpack.c.h.b16 %v471
  %v564 = vunpack.c.l.b16 %v472
  %v565 = vunpack.c.l.b16 %v473
  %v566 = vunpack.c.h.b16 %v472
  %v567 = vunpack.c.h.b16 %v473
  %v568 = vunpack.c.l.b16 %v474
  %v569 = vunpack.c.l.b16 %v475
  %v570 = vunpack.c.h.b16 %v474
  %v571 = vunpack.c.h.b16 %v475
  %v572 = vpack.c.b16 %v509, %v508
  %v573 = vpack.c.b16 %v511, %v510
  %v574 = vpack.c.b16 %v513, %v512
  %v575 = vpack.c.b16 %v515, %v514
  %v576 = vpack.c.b16 %v517, %v516
  %v577 = vpack.c.b16 %v519, %v518
  %v578 = vpack.c.b16 %v521, %v520
  %v579 = vpack.c.b16 %v523, %v522
  %v580 = vpack.c.b16 %v525, %v524
  %v581 = vpack.c.b16 %v527, %v526
  %v582 = vpack.c.b16 %v529, %v528
  %v583 = vpack.c.b16 %v531, %v530
  %v584 = vpack.c.b16 %v533, %v532
  %v585 = vpack.c.b16 %v535, %v534
  %v586 = vpack.c.b16 %v537, %v536
  %v587 = vpack.c.b16 %v539, %v538
  %v588 = vpack.c.b16 %v541, %v540
  %v589 = vpack.c.b16 %v543, %v542
  %v590 = vpack.c.b16 %v545, %v544
  %v591 = vpack.c.b16 %v547, %v546
  %v592 = vpack.c.b16 %v549, %v548
  %v593 = vpack.c.b16 %v551, %v550
  %v594 = vpack.c.b16 %v553, %v552
  %v595 = vpack.c.b16 %v555, %v554
  %v596 = vpack.c.b16 %v557, %v556
  %v597 = vpack.c.b16 %v559, %v558
  %v598 = vpack.c.b16 %v561, %v560
  %v599 = vpack.c.b16 %v563, %v562
  %v600 = vpack.c.b16 %v565, %v564
  %v601 = vpack.c.b16 %v567, %v566
  %v602 = vpack.c.b16 %v569, %v568
  %v603 = vpack.c.b16 %v571, %v570
  %636 = vst [vmem:[%s3] sm:$0xff] %v572
  %637 = vst [vmem:[%s3 + $0x8] sm:$0xff] %v573
  %638 = vst [vmem:[%s3 + $0x10] sm:$0xff] %v574
  %639 = vst [vmem:[%s3 + $0x18] sm:$0xff] %v575
  %640 = vst [vmem:[%s3 + $0x20] sm:$0xff] %v576
  %641 = vst [vmem:[%s3 + $0x28] sm:$0xff] %v577
  %642 = vst [vmem:[%s3 + $0x30] sm:$0xff] %v578
  %643 = vst [vmem:[%s3 + $0x38] sm:$0xff] %v579
  %644 = vst [vmem:[%s3 + $0x40] sm:$0xff] %v580
  %645 = vst [vmem:[%s3 + $0x48] sm:$0xff] %v581
  %646 = vst [vmem:[%s3 + $0x50] sm:$0xff] %v582
  %647 = vst [vmem:[%s3 + $0x58] sm:$0xff] %v583
  %648 = vst [vmem:[%s3 + $0x60] sm:$0xff] %v584
  %649 = vst [vmem:[%s3 + $0x68] sm:$0xff] %v585
  %650 = vst [vmem:[%s3 + $0x70] sm:$0xff] %v586
  %651 = vst [vmem:[%s3 + $0x78] sm:$0xff] %v587
  %652 = vst [vmem:[%s3 + $0x80] sm:$0xff] %v588
  %653 = vst [vmem:[%s3 + $0x88] sm:$0xff] %v589
  %654 = vst [vmem:[%s3 + $0x90] sm:$0xff] %v590
  %655 = vst [vmem:[%s3 + $0x98] sm:$0xff] %v591
  %656 = vst [vmem:[%s3 + $0xa0] sm:$0xff] %v592
  %657 = vst [vmem:[%s3 + $0xa8] sm:$0xff] %v593
  %658 = vst [vmem:[%s3 + $0xb0] sm:$0xff] %v594
  %659 = vst [vmem:[%s3 + $0xb8] sm:$0xff] %v595
  %660 = vst [vmem:[%s3 + $0xc0] sm:$0xff] %v596
  %661 = vst [vmem:[%s3 + $0xc8] sm:$0xff] %v597
  %662 = vst [vmem:[%s3 + $0xd0] sm:$0xff] %v598
  %663 = vst [vmem:[%s3 + $0xd8] sm:$0xff] %v599
  %664 = vst [vmem:[%s3 + $0xe0] sm:$0xff] %v600
  %665 = vst [vmem:[%s3 + $0xe8] sm:$0xff] %v601
  %666 = vst [vmem:[%s3 + $0xf0] sm:$0xff] %v602
  %667 = vst [vmem:[%s3 + $0xf8] sm:$0xff] %v603
  // Predicated region
  $region14: #{digae_forward.7} parent=0 // pred_check
    _
  $region15: #{digae_forward.7} parent=0 // pred_check_branch
    %669 = sbr.rel (0) target = $region17
  $region16: #{digae_forward.7} parent=0 // pred_region
    _
  $region17: #{digae_forward.7} parent=0 // pred_fallthru
    _
  // Predicated region
  $region18: #{digae_forward.7} parent=0 // pred_check
    _
  $region19: #{digae_forward.7} parent=0 // pred_check_branch
    %671 = sbr.rel (0) target = $region21
  $region20: #{digae_forward.7} parent=0 // pred_region
    _
  $region21: #{digae_forward.7} parent=0 // pred_fallthru
    _

// kernel: digae_forward.9
$region0: #{digae_forward.9}
  #allocation0 [shape = 'u32[]', space=smem, size = 0x4, offset = 0x4, fixed_abs, tag = 'smem constant byte address 0x4 - core index']
  #allocation1 [shape = 'u32[144,128]{1,0:T(1,128)}', space=vmem, size = 0x12000, scoped, tag = 'internal scratch']
  %s0 = inlined_call_operand.vmem [shape: bf16[256,128], index: 0, kind: input, shape index: {}]
  %s1 = inlined_call_operand.vmem [shape: bf16[128,128], index: 1, kind: input, shape index: {}]
  %s2 = inlined_call_operand.vmem [shape: f32[1,128], index: 2, kind: input, shape index: {}]
  %s3 = inlined_call_operand.vmem [shape: bf16[256,128], index: 3, kind: output, shape index: {}]
  %s4 = sld [smem:[#allocation0]]
  $region22: #{digae_forward.9} parent=0
    _
  %s6 = ssub.s32 1, %s4
  %s7 = scalar_select 0, %s6, %s4
  // Predicated region
  $region2: #{digae_forward.9} parent=0 // pred_check
    _
  $region3: #{digae_forward.9} parent=0 // pred_check_branch
    %9 = sbr.rel (0) target = $region5
  $region4: #{digae_forward.9} parent=0 // pred_region
    _
  $region5: #{digae_forward.9} parent=0 // pred_fallthru
    _
  // Predicated region
  $region6: #{digae_forward.9} parent=0 // pred_check
    _
  $region7: #{digae_forward.9} parent=0 // pred_check_branch
    %11 = sbr.rel (0) target = $region9
  $region8: #{digae_forward.9} parent=0 // pred_region
    _
  $region9: #{digae_forward.9} parent=0 // pred_fallthru
    _
  // Predicated region
  $region10: #{digae_forward.9} parent=0 // pred_check
    _
  $region11: #{digae_forward.9} parent=0 // pred_check_branch
    %13 = sbr.rel (0) target = $region13
  $region12: #{digae_forward.9} parent=0 // pred_region
    _
  $region13: #{digae_forward.9} parent=0 // pred_fallthru
    _
  %v15 = vld [vmem:[%s0] sm:$0xf]
  %v16 = vld [vmem:[%s0 + $0x4] sm:$0xf]
  %v17 = vld [vmem:[%s0 + $0x8] sm:$0xf]
  %v18 = vld [vmem:[%s0 + $0xc] sm:$0xf]
  %v19 = vld [vmem:[%s0 + $0x10] sm:$0xf]
  %v20 = vld [vmem:[%s0 + $0x14] sm:$0xf]
  %v21 = vld [vmem:[%s0 + $0x18] sm:$0xf]
  %v22 = vld [vmem:[%s0 + $0x1c] sm:$0xf]
  %v23 = vld [vmem:[%s0 + $0x20] sm:$0xf]
  %v24 = vld [vmem:[%s0 + $0x24] sm:$0xf]
  %v25 = vld [vmem:[%s0 + $0x28] sm:$0xf]
  %v26 = vld [vmem:[%s0 + $0x2c] sm:$0xf]
  %v27 = vld [vmem:[%s0 + $0x30] sm:$0xf]
  %v28 = vld [vmem:[%s0 + $0x34] sm:$0xf]
  %v29 = vld [vmem:[%s0 + $0x38] sm:$0xf]
  %v30 = vld [vmem:[%s0 + $0x3c] sm:$0xf]
  %v31 = vld [vmem:[%s0 + $0x40] sm:$0xf]
  %v32 = vld [vmem:[%s0 + $0x44] sm:$0xf]
  %v33 = vld [vmem:[%s0 + $0x48] sm:$0xf]
  %v34 = vld [vmem:[%s0 + $0x4c] sm:$0xf]
  %v35 = vld [vmem:[%s0 + $0x50] sm:$0xf]
  %v36 = vld [vmem:[%s0 + $0x54] sm:$0xf]
  %v37 = vld [vmem:[%s0 + $0x58] sm:$0xf]
  %v38 = vld [vmem:[%s0 + $0x5c] sm:$0xf]
  %v39 = vld [vmem:[%s0 + $0x60] sm:$0xf]
  %v40 = vld [vmem:[%s0 + $0x64] sm:$0xf]
  %v41 = vld [vmem:[%s0 + $0x68] sm:$0xf]
  %v42 = vld [vmem:[%s0 + $0x6c] sm:$0xf]
  %v43 = vld [vmem:[%s0 + $0x70] sm:$0xf]
  %v44 = vld [vmem:[%s0 + $0x74] sm:$0xf]
  %v45 = vld [vmem:[%s0 + $0x78] sm:$0xf]
  %v46 = vld [vmem:[%s0 + $0x7c] sm:$0xf]
  %v47 = vld [vmem:[%s1] sm:$0xf]
  %v48 = vld [vmem:[%s1 + $0x4] sm:$0xf]
  %v49 = vld [vmem:[%s1 + $0x8] sm:$0xf]
  %v50 = vld [vmem:[%s1 + $0xc] sm:$0xf]
  %v51 = vld [vmem:[%s1 + $0x10] sm:$0xf]
  %v52 = vld [vmem:[%s1 + $0x14] sm:$0xf]
  %v53 = vld [vmem:[%s1 + $0x18] sm:$0xf]
  %v54 = vld [vmem:[%s1 + $0x1c] sm:$0xf]
  %v55 = vld [vmem:[%s1 + $0x20] sm:$0xf]
  %v56 = vld [vmem:[%s1 + $0x24] sm:$0xf]
  %v57 = vld [vmem:[%s1 + $0x28] sm:$0xf]
  %v58 = vld [vmem:[%s1 + $0x2c] sm:$0xf]
  %v59 = vld [vmem:[%s1 + $0x30] sm:$0xf]
  %v60 = vld [vmem:[%s1 + $0x34] sm:$0xf]
  %v61 = vld [vmem:[%s1 + $0x38] sm:$0xf]
  %v62 = vld [vmem:[%s1 + $0x3c] sm:$0xf]
  %v63 = vld [vmem:[%s2] sm:$0x1]
  %v65 = vlaneseq
  %v66 = vshrl.u32 %v65, 7
  %v67 = vsub.s32 0, %v66
  %v68 = vrot.slane %v63, %v67
  %v102 = vunpack.c.l.b16 %v15
  %v103 = vunpack.c.l.b16 %v16
  %v104 = vunpack.c.l.b16 %v17
  %v105 = vunpack.c.l.b16 %v18
  %v106 = vunpack.c.l.b16 %v19
  %v107 = vunpack.c.l.b16 %v20
  %v108 = vunpack.c.l.b16 %v21
  %v109 = vunpack.c.l.b16 %v22
  %v110 = vunpack.c.l.b16 %v23
  %v111 = vunpack.c.l.b16 %v24
  %v112 = vunpack.c.l.b16 %v25
  %v113 = vunpack.c.l.b16 %v26
  %v114 = vunpack.c.l.b16 %v27
  %v115 = vunpack.c.l.b16 %v28
  %v116 = vunpack.c.l.b16 %v29
  %v117 = vunpack.c.l.b16 %v30
  %v118 = vunpack.c.l.b16 %v31
  %v119 = vunpack.c.l.b16 %v32
  %v120 = vunpack.c.l.b16 %v33
  %v121 = vunpack.c.l.b16 %v34
  %v122 = vunpack.c.l.b16 %v35
  %v123 = vunpack.c.l.b16 %v36
  %v124 = vunpack.c.l.b16 %v37
  %v125 = vunpack.c.l.b16 %v38
  %v126 = vunpack.c.l.b16 %v39
  %v127 = vunpack.c.l.b16 %v40
  %v128 = vunpack.c.l.b16 %v41
  %v129 = vunpack.c.l.b16 %v42
  %v130 = vunpack.c.l.b16 %v43
  %v131 = vunpack.c.l.b16 %v44
  %v132 = vunpack.c.l.b16 %v45
  %v133 = vunpack.c.l.b16 %v46
  %v134 = vpack.c.b16 %v103, %v102
  %v135 = vpack.c.b16 %v105, %v104
  %v136 = vpack.c.b16 %v107, %v106
  %v137 = vpack.c.b16 %v109, %v108
  %v138 = vpack.c.b16 %v111, %v110
  %v139 = vpack.c.b16 %v113, %v112
  %v140 = vpack.c.b16 %v115, %v114
  %v141 = vpack.c.b16 %v117, %v116
  %v142 = vpack.c.b16 %v119, %v118
  %v143 = vpack.c.b16 %v121, %v120
  %v144 = vpack.c.b16 %v123, %v122
  %v145 = vpack.c.b16 %v125, %v124
  %v146 = vpack.c.b16 %v127, %v126
  %v147 = vpack.c.b16 %v129, %v128
  %v148 = vpack.c.b16 %v131, %v130
  %v149 = vpack.c.b16 %v133, %v132
  %v182 = vunpack.c.l.b16 %v47
  %v183 = vunpack.c.l.b16 %v48
  %v184 = vunpack.c.l.b16 %v49
  %v185 = vunpack.c.l.b16 %v50
  %v186 = vunpack.c.l.b16 %v51
  %v187 = vunpack.c.l.b16 %v52
  %v188 = vunpack.c.l.b16 %v53
  %v189 = vunpack.c.l.b16 %v54
  %v190 = vunpack.c.l.b16 %v55
  %v191 = vunpack.c.l.b16 %v56
  %v192 = vunpack.c.l.b16 %v57
  %v193 = vunpack.c.l.b16 %v58
  %v194 = vunpack.c.l.b16 %v59
  %v195 = vunpack.c.l.b16 %v60
  %v196 = vunpack.c.l.b16 %v61
  %v197 = vunpack.c.l.b16 %v62
  %v198 = vpack.c.b16 %v183, %v182
  %v199 = vpack.c.b16 %v185, %v184
  %v200 = vpack.c.b16 %v187, %v186
  %v201 = vpack.c.b16 %v189, %v188
  %v202 = vpack.c.b16 %v191, %v190
  %v203 = vpack.c.b16 %v193, %v192
  %v204 = vpack.c.b16 %v195, %v194
  %v205 = vpack.c.b16 %v197, %v196
  %214 = vmatprep.subr.bf16.mxu0 0
  %215 = vmatpush1.bf16.msra.mxu0 %v198
  %216 = vmatprep.subr.bf16.mxu0 0
  %217 = vmatpush1.bf16.msra.mxu0 %v199
  %218 = vmatprep.subr.bf16.mxu0 0
  %219 = vmatpush1.bf16.msra.mxu0 %v200
  %220 = vmatprep.subr.bf16.mxu0 0
  %221 = vmatpush1.bf16.msra.mxu0 %v201
  %222 = vmatprep.subr.bf16.mxu0 0
  %223 = vmatpush1.bf16.msra.mxu0 %v202
  %224 = vmatprep.subr.bf16.mxu0 0
  %225 = vmatpush1.bf16.msra.mxu0 %v203
  %226 = vmatprep.subr.bf16.mxu0 0
  %227 = vmatpush1.bf16.msra.mxu0 %v204
  %228 = vmatprep.subr.bf16.mxu0 0
  %229 = vmatpush1.bf16.msra.mxu0 %v205
  %230 = vmatprep.subr.bf16.mxu0 0
  %231 = vmatpush1.bf16.msra.mxu0 0
  %232 = vmatprep.subr.bf16.mxu0 0
  %233 = vmatpush1.bf16.msra.mxu0 0
  %234 = vmatprep.subr.bf16.mxu0 0
  %235 = vmatpush1.bf16.msra.mxu0 0
  %236 = vmatprep.subr.bf16.mxu0 0
  %237 = vmatpush1.bf16.msra.mxu0 0
  %238 = vmatprep.subr.bf16.mxu0 0
  %239 = vmatpush1.bf16.msra.mxu0 0
  %240 = vmatprep.subr.bf16.mxu0 0
  %241 = vmatpush1.bf16.msra.mxu0 0
  %242 = vmatprep.subr.bf16.mxu0 0
  %243 = vmatpush1.bf16.msra.mxu0 0
  %244 = vmatprep.subr.bf16.mxu0 0
  %245 = vmatpush1.bf16.msra.mxu0 0
  %246 = vmatprep.mubr.bf16.mxu0 0
  %247 = vmatmul.mubr.bf16.gmra.mrb[0].mxu0 %v134
  %v248 = vpop.f32.mrb[0].mxu0
  %v249 = vadd.f32 %v68, %v248
  %v250 = vpop.f32.mrb[0].mxu0
  %v251 = vpop.f32.mrb[0].mxu0
  %v252 = vadd.f32 %v68, %v251
  %v253 = vpop.f32.mrb[0].mxu0
  %254 = vmatprep.mubr.bf16.mxu0 0
  %255 = vmatmul.mubr.bf16.gmra.mrb[0].mxu0 %v135
  %v256 = vpop.f32.mrb[0].mxu0
  %v257 = vadd.f32 %v68, %v256
  %v258 = vpop.f32.mrb[0].mxu0
  %v259 = vpop.f32.mrb[0].mxu0
  %v260 = vadd.f32 %v68, %v259
  %v261 = vpop.f32.mrb[0].mxu0
  %262 = vmatprep.mubr.bf16.mxu0 0
  %263 = vmatmul.mubr.bf16.gmra.mrb[0].mxu0 %v136
  %v264 = vpop.f32.mrb[0].mxu0
  %v265 = vadd.f32 %v68, %v264
  %v266 = vpop.f32.mrb[0].mxu0
  %v267 = vpop.f32.mrb[0].mxu0
  %v268 = vadd.f32 %v68, %v267
  %v269 = vpop.f32.mrb[0].mxu0
  %270 = vmatprep.mubr.bf16.mxu0 0
  %271 = vmatmul.mubr.bf16.gmra.mrb[0].mxu0 %v137
  %v272 = vpop.f32.mrb[0].mxu0
  %v273 = vadd.f32 %v68, %v272
  %v274 = vpop.f32.mrb[0].mxu0
  %v275 = vpop.f32.mrb[0].mxu0
  %v276 = vadd.f32 %v68, %v275
  %v277 = vpop.f32.mrb[0].mxu0
  %278 = vmatprep.mubr.bf16.mxu0 0
  %279 = vmatmul.mubr.bf16.gmra.mrb[0].mxu0 %v138
  %v280 = vpop.f32.mrb[0].mxu0
  %v281 = vadd.f32 %v68, %v280
  %v282 = vpop.f32.mrb[0].mxu0
  %v283 = vpop.f32.mrb[0].mxu0
  %v284 = vadd.f32 %v68, %v283
  %v285 = vpop.f32.mrb[0].mxu0
  %286 = vmatprep.mubr.bf16.mxu0 0
  %287 = vmatmul.mubr.bf16.gmra.mrb[0].mxu0 %v139
  %v288 = vpop.f32.mrb[0].mxu0
  %v289 = vadd.f32 %v68, %v288
  %v290 = vpop.f32.mrb[0].mxu0
  %v291 = vpop.f32.mrb[0].mxu0
  %v292 = vadd.f32 %v68, %v291
  %v293 = vpop.f32.mrb[0].mxu0
  %294 = vmatprep.mubr.bf16.mxu0 0
  %295 = vmatmul.mubr.bf16.gmra.mrb[0].mxu0 %v140
  %v296 = vpop.f32.mrb[0].mxu0
  %v297 = vadd.f32 %v68, %v296
  %v298 = vpop.f32.mrb[0].mxu0
  %v299 = vpop.f32.mrb[0].mxu0
  %v300 = vadd.f32 %v68, %v299
  %v301 = vpop.f32.mrb[0].mxu0
  %302 = vmatprep.mubr.bf16.mxu0 0
  %303 = vmatmul.mubr.bf16.gmra.mrb[0].mxu0 %v141
  %v304 = vpop.f32.mrb[0].mxu0
  %v305 = vadd.f32 %v68, %v304
  %v306 = vpop.f32.mrb[0].mxu0
  %v307 = vpop.f32.mrb[0].mxu0
  %v308 = vadd.f32 %v68, %v307
  %v309 = vpop.f32.mrb[0].mxu0
  %310 = vmatprep.mubr.bf16.mxu0 0
  %311 = vmatmul.mubr.bf16.gmra.mrb[0].mxu0 %v142
  %v312 = vpop.f32.mrb[0].mxu0
  %v313 = vadd.f32 %v68, %v312
  %v314 = vpop.f32.mrb[0].mxu0
  %v315 = vpop.f32.mrb[0].mxu0
  %v316 = vadd.f32 %v68, %v315
  %v317 = vpop.f32.mrb[0].mxu0
  %318 = vmatprep.mubr.bf16.mxu0 0
  %319 = vmatmul.mubr.bf16.gmra.mrb[0].mxu0 %v143
  %v320 = vpop.f32.mrb[0].mxu0
  %v321 = vadd.f32 %v68, %v320
  %v322 = vpop.f32.mrb[0].mxu0
  %v323 = vpop.f32.mrb[0].mxu0
  %v324 = vadd.f32 %v68, %v323
  %v325 = vpop.f32.mrb[0].mxu0
  %326 = vmatprep.mubr.bf16.mxu0 0
  %327 = vmatmul.mubr.bf16.gmra.mrb[0].mxu0 %v144
  %v328 = vpop.f32.mrb[0].mxu0
  %v329 = vadd.f32 %v68, %v328
  %v330 = vpop.f32.mrb[0].mxu0
  %v331 = vpop.f32.mrb[0].mxu0
  %v332 = vadd.f32 %v68, %v331
  %v333 = vpop.f32.mrb[0].mxu0
  %334 = vmatprep.mubr.bf16.mxu0 0
  %335 = vmatmul.mubr.bf16.gmra.mrb[0].mxu0 %v145
  %v336 = vpop.f32.mrb[0].mxu0
  %v337 = vadd.f32 %v68, %v336
  %v338 = vpop.f32.mrb[0].mxu0
  %v339 = vpop.f32.mrb[0].mxu0
  %v340 = vadd.f32 %v68, %v339
  %v341 = vpop.f32.mrb[0].mxu0
  %342 = vmatprep.mubr.bf16.mxu0 0
  %343 = vmatmul.mubr.bf16.gmra.mrb[0].mxu0 %v146
  %v344 = vpop.f32.mrb[0].mxu0
  %v345 = vadd.f32 %v68, %v344
  %v346 = vpop.f32.mrb[0].mxu0
  %v347 = vpop.f32.mrb[0].mxu0
  %v348 = vadd.f32 %v68, %v347
  %v349 = vpop.f32.mrb[0].mxu0
  %350 = vmatprep.mubr.bf16.mxu0 0
  %351 = vmatmul.mubr.bf16.gmra.mrb[0].mxu0 %v147
  %v352 = vpop.f32.mrb[0].mxu0
  %v353 = vadd.f32 %v68, %v352
  %v354 = vpop.f32.mrb[0].mxu0
  %v355 = vpop.f32.mrb[0].mxu0
  %v356 = vadd.f32 %v68, %v355
  %v357 = vpop.f32.mrb[0].mxu0
  %358 = vmatprep.mubr.bf16.mxu0 0
  %359 = vmatmul.mubr.bf16.gmra.mrb[0].mxu0 %v148
  %v360 = vpop.f32.mrb[0].mxu0
  %v361 = vadd.f32 %v68, %v360
  %v362 = vpop.f32.mrb[0].mxu0
  %v363 = vpop.f32.mrb[0].mxu0
  %v364 = vadd.f32 %v68, %v363
  %v365 = vpop.f32.mrb[0].mxu0
  %366 = vmatprep.mubr.bf16.mxu0 0
  %367 = vmatmul.mubr.bf16.gmra.mrb[0].mxu0 %v149
  %v368 = vpop.f32.mrb[0].mxu0
  %v369 = vadd.f32 %v68, %v368
  %v370 = vpop.f32.mrb[0].mxu0
  %v371 = vpop.f32.mrb[0].mxu0
  %v372 = vadd.f32 %v68, %v371
  %v373 = vpop.f32.mrb[0].mxu0
  %374 = vdwg.mxu0
  %v375 = vpack.c.bf16 %v252, %v249
  %v376 = vpack.c.bf16 %v260, %v257
  %v377 = vpack.c.bf16 %v268, %v265
  %v378 = vpack.c.bf16 %v276, %v273
  %v379 = vpack.c.bf16 %v284, %v281
  %v380 = vpack.c.bf16 %v292, %v289
  %v381 = vpack.c.bf16 %v300, %v297
  %v382 = vpack.c.bf16 %v308, %v305
  %v383 = vpack.c.bf16 %v316, %v313
  %v384 = vpack.c.bf16 %v324, %v321
  %v385 = vpack.c.bf16 %v332, %v329
  %v386 = vpack.c.bf16 %v340, %v337
  %v387 = vpack.c.bf16 %v348, %v345
  %v388 = vpack.c.bf16 %v356, %v353
  %v389 = vpack.c.bf16 %v364, %v361
  %v390 = vpack.c.bf16 %v372, %v369
  %v407 = vunpack.c.l.b16 %v375
  %v408 = vunpack.c.h.b16 %v375
  %v409 = vunpack.c.l.b16 %v376
  %v410 = vunpack.c.h.b16 %v376
  %v411 = vunpack.c.l.b16 %v377
  %v412 = vunpack.c.h.b16 %v377
  %v413 = vunpack.c.l.b16 %v378
  %v414 = vunpack.c.h.b16 %v378
  %v415 = vunpack.c.l.b16 %v379
  %v416 = vunpack.c.h.b16 %v379
  %v417 = vunpack.c.l.b16 %v380
  %v418 = vunpack.c.h.b16 %v380
  %v419 = vunpack.c.l.b16 %v381
  %v420 = vunpack.c.h.b16 %v381
  %v421 = vunpack.c.l.b16 %v382
  %v422 = vunpack.c.h.b16 %v382
  %v423 = vunpack.c.l.b16 %v383
  %v424 = vunpack.c.h.b16 %v383
  %v425 = vunpack.c.l.b16 %v384
  %v426 = vunpack.c.h.b16 %v384
  %v427 = vunpack.c.l.b16 %v385
  %v428 = vunpack.c.h.b16 %v385
  %v429 = vunpack.c.l.b16 %v386
  %v430 = vunpack.c.h.b16 %v386
  %v431 = vunpack.c.l.b16 %v387
  %v432 = vunpack.c.h.b16 %v387
  %v433 = vunpack.c.l.b16 %v388
  %v434 = vunpack.c.h.b16 %v388
  %v435 = vunpack.c.l.b16 %v389
  %v436 = vunpack.c.h.b16 %v389
  %v437 = vunpack.c.l.b16 %v390
  %v438 = vunpack.c.h.b16 %v390
  %v439 = vpack.c.b16 %v407, %v407
  %v440 = vpack.c.b16 %v408, %v408
  %v441 = vpack.c.b16 %v409, %v409
  %v442 = vpack.c.b16 %v410, %v410
  %v443 = vpack.c.b16 %v411, %v411
  %v444 = vpack.c.b16 %v412, %v412
  %v445 = vpack.c.b16 %v413, %v413
  %v446 = vpack.c.b16 %v414, %v414
  %v447 = vpack.c.b16 %v415, %v415
  %v448 = vpack.c.b16 %v416, %v416
  %v449 = vpack.c.b16 %v417, %v417
  %v450 = vpack.c.b16 %v418, %v418
  %v451 = vpack.c.b16 %v419, %v419
  %v452 = vpack.c.b16 %v420, %v420
  %v453 = vpack.c.b16 %v421, %v421
  %v454 = vpack.c.b16 %v422, %v422
  %v455 = vpack.c.b16 %v423, %v423
  %v456 = vpack.c.b16 %v424, %v424
  %v457 = vpack.c.b16 %v425, %v425
  %v458 = vpack.c.b16 %v426, %v426
  %v459 = vpack.c.b16 %v427, %v427
  %v460 = vpack.c.b16 %v428, %v428
  %v461 = vpack.c.b16 %v429, %v429
  %v462 = vpack.c.b16 %v430, %v430
  %v463 = vpack.c.b16 %v431, %v431
  %v464 = vpack.c.b16 %v432, %v432
  %v465 = vpack.c.b16 %v433, %v433
  %v466 = vpack.c.b16 %v434, %v434
  %v467 = vpack.c.b16 %v435, %v435
  %v468 = vpack.c.b16 %v436, %v436
  %v469 = vpack.c.b16 %v437, %v437
  %v470 = vpack.c.b16 %v438, %v438
  %503 = vst [vmem:[%s3] sm:$0xf] %v439
  %504 = vst [vmem:[%s3 + $0x4] sm:$0xf] %v440
  %505 = vst [vmem:[%s3 + $0x8] sm:$0xf] %v441
  %506 = vst [vmem:[%s3 + $0xc] sm:$0xf] %v442
  %507 = vst [vmem:[%s3 + $0x10] sm:$0xf] %v443
  %508 = vst [vmem:[%s3 + $0x14] sm:$0xf] %v444
  %509 = vst [vmem:[%s3 + $0x18] sm:$0xf] %v445
  %510 = vst [vmem:[%s3 + $0x1c] sm:$0xf] %v446
  %511 = vst [vmem:[%s3 + $0x20] sm:$0xf] %v447
  %512 = vst [vmem:[%s3 + $0x24] sm:$0xf] %v448
  %513 = vst [vmem:[%s3 + $0x28] sm:$0xf] %v449
  %514 = vst [vmem:[%s3 + $0x2c] sm:$0xf] %v450
  %515 = vst [vmem:[%s3 + $0x30] sm:$0xf] %v451
  %516 = vst [vmem:[%s3 + $0x34] sm:$0xf] %v452
  %517 = vst [vmem:[%s3 + $0x38] sm:$0xf] %v453
  %518 = vst [vmem:[%s3 + $0x3c] sm:$0xf] %v454
  %519 = vst [vmem:[%s3 + $0x40] sm:$0xf] %v455
  %520 = vst [vmem:[%s3 + $0x44] sm:$0xf] %v456
  %521 = vst [vmem:[%s3 + $0x48] sm:$0xf] %v457
  %522 = vst [vmem:[%s3 + $0x4c] sm:$0xf] %v458
  %523 = vst [vmem:[%s3 + $0x50] sm:$0xf] %v459
  %524 = vst [vmem:[%s3 + $0x54] sm:$0xf] %v460
  %525 = vst [vmem:[%s3 + $0x58] sm:$0xf] %v461
  %526 = vst [vmem:[%s3 + $0x5c] sm:$0xf] %v462
  %527 = vst [vmem:[%s3 + $0x60] sm:$0xf] %v463
  %528 = vst [vmem:[%s3 + $0x64] sm:$0xf] %v464
  %529 = vst [vmem:[%s3 + $0x68] sm:$0xf] %v465
  %530 = vst [vmem:[%s3 + $0x6c] sm:$0xf] %v466
  %531 = vst [vmem:[%s3 + $0x70] sm:$0xf] %v467
  %532 = vst [vmem:[%s3 + $0x74] sm:$0xf] %v468
  %533 = vst [vmem:[%s3 + $0x78] sm:$0xf] %v469
  %534 = vst [vmem:[%s3 + $0x7c] sm:$0xf] %v470
  // Predicated region
  $region14: #{digae_forward.9} parent=0 // pred_check
    _
  $region15: #{digae_forward.9} parent=0 // pred_check_branch
    %536 = sbr.rel (0) target = $region17
  $region16: #{digae_forward.9} parent=0 // pred_region
    _
  $region17: #{digae_forward.9} parent=0 // pred_fallthru
    _
  // Predicated region
  $region18: #{digae_forward.9} parent=0 // pred_check
    _
  $region19: #{digae_forward.9} parent=0 // pred_check_branch
    %538 = sbr.rel (0) target = $region21
  $region20: #{digae_forward.9} parent=0 // pred_region
    _
  $region21: #{digae_forward.9} parent=0 // pred_fallthru
    _

// kernel: digae_forward.8
$region0: #{digae_forward.8}
  #allocation0 [shape = 'u32[]', space=smem, size = 0x4, offset = 0x4, fixed_abs, tag = 'smem constant byte address 0x4 - core index']
  #allocation1 [shape = 'u32[144,128]{1,0:T(1,128)}', space=vmem, size = 0x12000, scoped, tag = 'internal scratch']
  #allocation2 [shape = 'f32[256,128]{1,0:T(8,128)}', space=vmem, size = 0x20000, scoped, tag = 'scratch operand']
  %s0 = inlined_call_operand.vmem [shape: bf16[256,256], index: 0, kind: input, shape index: {}]
  %s1 = inlined_call_operand.vmem [shape: bf16[256,256], index: 1, kind: input, shape index: {}]
  %s2 = inlined_call_operand.vmem [shape: bf16[256,128], index: 2, kind: output, shape index: {}]
  %s3 = sld [smem:[#allocation0]]
  $region67: #{digae_forward.8} parent=0
    _
  %s5 = ssub.s32 1, %s3
  %s6 = scalar_select 0, %s5, %s3
  $region1: #{digae_forward.8} parent=0
    #allocation3 [shape = 'u8[65536]{0}', space=vmem, size = 0x10000, scoped, tag = 'input window, operand 1, single buffered']
    // Predicated region
    $region2: #{digae_forward.8} parent=1 // pred_check
      _
    $region3: #{digae_forward.8} parent=1 // pred_check_branch
      %8 = sbr.rel (0) target = $region5
    $region4: #{digae_forward.8} parent=1 // pred_region
      _
    $region5: #{digae_forward.8} parent=1 // pred_fallthru
      _
    // Predicated region
    $region6: #{digae_forward.8} parent=1 // pred_check
      _
    $region7: #{digae_forward.8} parent=1 // pred_check_branch
      %10 = sbr.rel (0) target = $region9
    $region8: #{digae_forward.8} parent=1 // pred_region
      // Predicated region
      $region10: #{digae_forward.8} parent=8 // pred_check
        _
      $region11: #{digae_forward.8} parent=8 // pred_check_branch
        %12 = sbr.rel (0) target = $region13
      $region12: #{digae_forward.8} parent=8 // pred_region
        // Predicated region
        $region14: #{digae_forward.8} parent=12 // pred_check
          _
        $region15: #{digae_forward.8} parent=12 // pred_check_branch
          %14 = sbr.rel target = $region17
        $region16: #{digae_forward.8} parent=12 // pred_region
          // Predicated region
          $region29: #{digae_forward.8} parent=16 // pred_check
            _
          $region30: #{digae_forward.8} parent=16 // pred_check_branch
            %91 = sbr.rel (0) target = $region32
          $region31: #{digae_forward.8} parent=16 // pred_region
            loop: start=0, step=1, limit=1
            $region33: #{digae_forward.8} parent=31 // loop_pre_header
              _
            $region34: #{digae_forward.8} parent=31 // loop_header
              %s93 = sphi 0, %s97
              %p94 = scmp.ge.s32.totalorder %s93, 1
              %s98 = sphi %s1, %s1
              %s99 = sphi [#allocation3], [#allocation3]
            $region35: #{digae_forward.8} parent=31 // loop_header_branch
              %96 = sbr.rel (%p94) target = $region39
            $region36: #{digae_forward.8} parent=31 // loop_body
              _
            $region37: #{digae_forward.8} parent=31 // loop_footer
              %s97 = sadd.s32 1, %s93
            $region38: #{digae_forward.8} parent=31 // loop_footer_branch
              %92 = sbr.rel target = $region34
            $region39: #{digae_forward.8} parent=31 // loop_exit
              _
            loop: start=0, step=1, limit=1
            $region40: #{digae_forward.8} parent=31 // loop_pre_header
              _
            $region41: #{digae_forward.8} parent=31 // loop_header
              %s102 = sphi 0, %s106
              %p103 = scmp.ge.s32.totalorder %s102, 1
              %s107 = sphi %s1, %s1
              %s108 = sphi [#allocation3], [#allocation3]
            $region42: #{digae_forward.8} parent=31 // loop_header_branch
              %105 = sbr.rel (%p103) target = $region46
            $region43: #{digae_forward.8} parent=31 // loop_body
              %v109 = vld [vmem:[%s107] sm:$0xf]
              %110 = vst [vmem:[%s108] sm:$0xf] %v109
              %v111 = vld [vmem:[%s107 + $0x8] sm:$0xf]
              %112 = vst [vmem:[%s108 + $0x4] sm:$0xf] %v111
              %v113 = vld [vmem:[%s107 + $0x10] sm:$0xf]
              %114 = vst [vmem:[%s108 + $0x8] sm:$0xf] %v113
              %v115 = vld [vmem:[%s107 + $0x18] sm:$0xf]
              %116 = vst [vmem:[%s108 + $0xc] sm:$0xf] %v115
              %v117 = vld [vmem:[%s107 + $0x20] sm:$0xf]
              %118 = vst [vmem:[%s108 + $0x10] sm:$0xf] %v117
              %v119 = vld [vmem:[%s107 + $0x28] sm:$0xf]
              %120 = vst [vmem:[%s108 + $0x14] sm:$0xf] %v119
              %v121 = vld [vmem:[%s107 + $0x30] sm:$0xf]
              %122 = vst [vmem:[%s108 + $0x18] sm:$0xf] %v121
              %v123 = vld [vmem:[%s107 + $0x38] sm:$0xf]
              %124 = vst [vmem:[%s108 + $0x1c] sm:$0xf] %v123
              %v125 = vld [vmem:[%s107 + $0x40] sm:$0xf]
              %126 = vst [vmem:[%s108 + $0x20] sm:$0xf] %v125
              %v127 = vld [vmem:[%s107 + $0x48] sm:$0xf]
              %128 = vst [vmem:[%s108 + $0x24] sm:$0xf] %v127
              %v129 = vld [vmem:[%s107 + $0x50] sm:$0xf]
              %130 = vst [vmem:[%s108 + $0x28] sm:$0xf] %v129
              %v131 = vld [vmem:[%s107 + $0x58] sm:$0xf]
              %132 = vst [vmem:[%s108 + $0x2c] sm:$0xf] %v131
              %v133 = vld [vmem:[%s107 + $0x60] sm:$0xf]
              %134 = vst [vmem:[%s108 + $0x30] sm:$0xf] %v133
              %v135 = vld [vmem:[%s107 + $0x68] sm:$0xf]
              %136 = vst [vmem:[%s108 + $0x34] sm:$0xf] %v135
              %v137 = vld [vmem:[%s107 + $0x70] sm:$0xf]
              %138 = vst [vmem:[%s108 + $0x38] sm:$0xf] %v137
              %v139 = vld [vmem:[%s107 + $0x78] sm:$0xf]
              %140 = vst [vmem:[%s108 + $0x3c] sm:$0xf] %v139
              %v141 = vld [vmem:[%s107 + $0x80] sm:$0xf]
              %142 = vst [vmem:[%s108 + $0x40] sm:$0xf] %v141
              %v143 = vld [vmem:[%s107 + $0x88] sm:$0xf]
              %144 = vst [vmem:[%s108 + $0x44] sm:$0xf] %v143
              %v145 = vld [vmem:[%s107 + $0x90] sm:$0xf]
              %146 = vst [vmem:[%s108 + $0x48] sm:$0xf] %v145
              %v147 = vld [vmem:[%s107 + $0x98] sm:$0xf]
              %148 = vst [vmem:[%s108 + $0x4c] sm:$0xf] %v147
              %v149 = vld [vmem:[%s107 + $0xa0] sm:$0xf]
              %150 = vst [vmem:[%s108 + $0x50] sm:$0xf] %v149
              %v151 = vld [vmem:[%s107 + $0xa8] sm:$0xf]
              %152 = vst [vmem:[%s108 + $0x54] sm:$0xf] %v151
              %v153 = vld [vmem:[%s107 + $0xb0] sm:$0xf]
              %154 = vst [vmem:[%s108 + $0x58] sm:$0xf] %v153
              %v155 = vld [vmem:[%s107 + $0xb8] sm:$0xf]
              %156 = vst [vmem:[%s108 + $0x5c] sm:$0xf] %v155
              %v157 = vld [vmem:[%s107 + $0xc0] sm:$0xf]
              %158 = vst [vmem:[%s108 + $0x60] sm:$0xf] %v157
              %v159 = vld [vmem:[%s107 + $0xc8] sm:$0xf]
              %160 = vst [vmem:[%s108 + $0x64] sm:$0xf] %v159
              %v161 = vld [vmem:[%s107 + $0xd0] sm:$0xf]
              %162 = vst [vmem:[%s108 + $0x68] sm:$0xf] %v161
              %v163 = vld [vmem:[%s107 + $0xd8] sm:$0xf]
              %164 = vst [vmem:[%s108 + $0x6c] sm:$0xf] %v163
              %v165 = vld [vmem:[%s107 + $0xe0] sm:$0xf]
              %166 = vst [vmem:[%s108 + $0x70] sm:$0xf] %v165
              %v167 = vld [vmem:[%s107 + $0xe8] sm:$0xf]
              %168 = vst [vmem:[%s108 + $0x74] sm:$0xf] %v167
              %v169 = vld [vmem:[%s107 + $0xf0] sm:$0xf]
              %170 = vst [vmem:[%s108 + $0x78] sm:$0xf] %v169
              %v171 = vld [vmem:[%s107 + $0xf8] sm:$0xf]
              %172 = vst [vmem:[%s108 + $0x7c] sm:$0xf] %v171
            $region44: #{digae_forward.8} parent=31 // loop_footer
              %s106 = sadd.s32 1, %s102
            $region45: #{digae_forward.8} parent=31 // loop_footer_branch
              %101 = sbr.rel target = $region41
            $region46: #{digae_forward.8} parent=31 // loop_exit
              _
          $region32: #{digae_forward.8} parent=16 // pred_fallthru
            _
        $region17: #{digae_forward.8} parent=12 // pred_fallthru
          _
        // Predicated region
        $region18: #{digae_forward.8} parent=12 // pred_check
          _
        $region19: #{digae_forward.8} parent=12 // pred_check_branch
          %16 = sbr.rel (0) target = $region21
        $region20: #{digae_forward.8} parent=12 // pred_region
          loop: start=0, step=1, limit=1
          $region22: #{digae_forward.8} parent=20 // loop_pre_header
            _
          $region23: #{digae_forward.8} parent=20 // loop_header
            %s19 = sphi 0, %s23
            %p20 = scmp.ge.s32.totalorder %s19, 1
            %s24 = sphi %s1, %s1
            %s25 = sphi [#allocation3], [#allocation3]
          $region24: #{digae_forward.8} parent=20 // loop_header_branch
            %22 = sbr.rel (%p20) target = $region28
          $region25: #{digae_forward.8} parent=20 // loop_body
            %v26 = vld [vmem:[%s24] sm:$0xf]
            %27 = vst [vmem:[%s25] sm:$0xf] %v26
            %v28 = vld [vmem:[%s24 + $0x8] sm:$0xf]
            %29 = vst [vmem:[%s25 + $0x4] sm:$0xf] %v28
            %v30 = vld [vmem:[%s24 + $0x10] sm:$0xf]
            %31 = vst [vmem:[%s25 + $0x8] sm:$0xf] %v30
            %v32 = vld [vmem:[%s24 + $0x18] sm:$0xf]
            %33 = vst [vmem:[%s25 + $0xc] sm:$0xf] %v32
            %v34 = vld [vmem:[%s24 + $0x20] sm:$0xf]
            %35 = vst [vmem:[%s25 + $0x10] sm:$0xf] %v34
            %v36 = vld [vmem:[%s24 + $0x28] sm:$0xf]
            %37 = vst [vmem:[%s25 + $0x14] sm:$0xf] %v36
            %v38 = vld [vmem:[%s24 + $0x30] sm:$0xf]
            %39 = vst [vmem:[%s25 + $0x18] sm:$0xf] %v38
            %v40 = vld [vmem:[%s24 + $0x38] sm:$0xf]
            %41 = vst [vmem:[%s25 + $0x1c] sm:$0xf] %v40
            %v42 = vld [vmem:[%s24 + $0x40] sm:$0xf]
            %43 = vst [vmem:[%s25 + $0x20] sm:$0xf] %v42
            %v44 = vld [vmem:[%s24 + $0x48] sm:$0xf]
            %45 = vst [vmem:[%s25 + $0x24] sm:$0xf] %v44
            %v46 = vld [vmem:[%s24 + $0x50] sm:$0xf]
            %47 = vst [vmem:[%s25 + $0x28] sm:$0xf] %v46
            %v48 = vld [vmem:[%s24 + $0x58] sm:$0xf]
            %49 = vst [vmem:[%s25 + $0x2c] sm:$0xf] %v48
            %v50 = vld [vmem:[%s24 + $0x60] sm:$0xf]
            %51 = vst [vmem:[%s25 + $0x30] sm:$0xf] %v50
            %v52 = vld [vmem:[%s24 + $0x68] sm:$0xf]
            %53 = vst [vmem:[%s25 + $0x34] sm:$0xf] %v52
            %v54 = vld [vmem:[%s24 + $0x70] sm:$0xf]
            %55 = vst [vmem:[%s25 + $0x38] sm:$0xf] %v54
            %v56 = vld [vmem:[%s24 + $0x78] sm:$0xf]
            %57 = vst [vmem:[%s25 + $0x3c] sm:$0xf] %v56
            %v58 = vld [vmem:[%s24 + $0x80] sm:$0xf]
            %59 = vst [vmem:[%s25 + $0x40] sm:$0xf] %v58
            %v60 = vld [vmem:[%s24 + $0x88] sm:$0xf]
            %61 = vst [vmem:[%s25 + $0x44] sm:$0xf] %v60
            %v62 = vld [vmem:[%s24 + $0x90] sm:$0xf]
            %63 = vst [vmem:[%s25 + $0x48] sm:$0xf] %v62
            %v64 = vld [vmem:[%s24 + $0x98] sm:$0xf]
            %65 = vst [vmem:[%s25 + $0x4c] sm:$0xf] %v64
            %v66 = vld [vmem:[%s24 + $0xa0] sm:$0xf]
            %67 = vst [vmem:[%s25 + $0x50] sm:$0xf] %v66
            %v68 = vld [vmem:[%s24 + $0xa8] sm:$0xf]
            %69 = vst [vmem:[%s25 + $0x54] sm:$0xf] %v68
            %v70 = vld [vmem:[%s24 + $0xb0] sm:$0xf]
            %71 = vst [vmem:[%s25 + $0x58] sm:$0xf] %v70
            %v72 = vld [vmem:[%s24 + $0xb8] sm:$0xf]
            %73 = vst [vmem:[%s25 + $0x5c] sm:$0xf] %v72
            %v74 = vld [vmem:[%s24 + $0xc0] sm:$0xf]
            %75 = vst [vmem:[%s25 + $0x60] sm:$0xf] %v74
            %v76 = vld [vmem:[%s24 + $0xc8] sm:$0xf]
            %77 = vst [vmem:[%s25 + $0x64] sm:$0xf] %v76
            %v78 = vld [vmem:[%s24 + $0xd0] sm:$0xf]
            %79 = vst [vmem:[%s25 + $0x68] sm:$0xf] %v78
            %v80 = vld [vmem:[%s24 + $0xd8] sm:$0xf]
            %81 = vst [vmem:[%s25 + $0x6c] sm:$0xf] %v80
            %v82 = vld [vmem:[%s24 + $0xe0] sm:$0xf]
            %83 = vst [vmem:[%s25 + $0x70] sm:$0xf] %v82
            %v84 = vld [vmem:[%s24 + $0xe8] sm:$0xf]
            %85 = vst [vmem:[%s25 + $0x74] sm:$0xf] %v84
            %v86 = vld [vmem:[%s24 + $0xf0] sm:$0xf]
            %87 = vst [vmem:[%s25 + $0x78] sm:$0xf] %v86
            %v88 = vld [vmem:[%s24 + $0xf8] sm:$0xf]
            %89 = vst [vmem:[%s25 + $0x7c] sm:$0xf] %v88
          $region26: #{digae_forward.8} parent=20 // loop_footer
            %s23 = sadd.s32 1, %s19
          $region27: #{digae_forward.8} parent=20 // loop_footer_branch
            %18 = sbr.rel target = $region23
          $region28: #{digae_forward.8} parent=20 // loop_exit
            _
        $region21: #{digae_forward.8} parent=12 // pred_fallthru
          _
      $region13: #{digae_forward.8} parent=8 // pred_fallthru
        _
      %173 = vnop
    $region9: #{digae_forward.8} parent=1 // pred_fallthru
      _
    // Predicated region
    $region47: #{digae_forward.8} parent=1 // pred_check
      _
    $region48: #{digae_forward.8} parent=1 // pred_check_branch
      %175 = sbr.rel (0) target = $region50
    $region49: #{digae_forward.8} parent=1 // pred_region
      _
    $region50: #{digae_forward.8} parent=1 // pred_fallthru
      _
    %p177 = scmp.eq.s32.totalorder 0, 0
    // Predicated region
    $region51: #{digae_forward.8} parent=1 // pred_check
      %p178 = pneg %p177
    $region52: #{digae_forward.8} parent=1 // pred_check_branch
      %180 = sbr.rel (%p178) target = $region54
    $region53: #{digae_forward.8} parent=1 // pred_region
      %181 = vst [vmem:[#allocation2] sm:$0xff] 0.0
      %182 = vst [vmem:[#allocation2 + $0x8] sm:$0xff] 0.0
      %183 = vst [vmem:[#allocation2 + $0x10] sm:$0xff] 0.0
      %184 = vst [vmem:[#allocation2 + $0x18] sm:$0xff] 0.0
      %185 = vst [vmem:[#allocation2 + $0x20] sm:$0xff] 0.0
      %186 = vst [vmem:[#allocation2 + $0x28] sm:$0xff] 0.0
      %187 = vst [vmem:[#allocation2 + $0x30] sm:$0xff] 0.0
      %188 = vst [vmem:[#allocation2 + $0x38] sm:$0xff] 0.0
      %189 = vst [vmem:[#allocation2 + $0x40] sm:$0xff] 0.0
      %190 = vst [vmem:[#allocation2 + $0x48] sm:$0xff] 0.0
      %191 = vst [vmem:[#allocation2 + $0x50] sm:$0xff] 0.0
      %192 = vst [vmem:[#allocation2 + $0x58] sm:$0xff] 0.0
      %193 = vst [vmem:[#allocation2 + $0x60] sm:$0xff] 0.0
      %194 = vst [vmem:[#allocation2 + $0x68] sm:$0xff] 0.0
      %195 = vst [vmem:[#allocation2 + $0x70] sm:$0xff] 0.0
      %196 = vst [vmem:[#allocation2 + $0x78] sm:$0xff] 0.0
      %197 = vst [vmem:[#allocation2 + $0x80] sm:$0xff] 0.0
      %198 = vst [vmem:[#allocation2 + $0x88] sm:$0xff] 0.0
      %199 = vst [vmem:[#allocation2 + $0x90] sm:$0xff] 0.0
      %200 = vst [vmem:[#allocation2 + $0x98] sm:$0xff] 0.0
      %201 = vst [vmem:[#allocation2 + $0xa0] sm:$0xff] 0.0
      %202 = vst [vmem:[#allocation2 + $0xa8] sm:$0xff] 0.0
      %203 = vst [vmem:[#allocation2 + $0xb0] sm:$0xff] 0.0
      %204 = vst [vmem:[#allocation2 + $0xb8] sm:$0xff] 0.0
      %205 = vst [vmem:[#allocation2 + $0xc0] sm:$0xff] 0.0
      %206 = vst [vmem:[#allocation2 + $0xc8] sm:$0xff] 0.0
      %207 = vst [vmem:[#allocation2 + $0xd0] sm:$0xff] 0.0
      %208 = vst [vmem:[#allocation2 + $0xd8] sm:$0xff] 0.0
      %209 = vst [vmem:[#allocation2 + $0xe0] sm:$0xff] 0.0
      %210 = vst [vmem:[#allocation2 + $0xe8] sm:$0xff] 0.0
      %211 = vst [vmem:[#allocation2 + $0xf0] sm:$0xff] 0.0
      %212 = vst [vmem:[#allocation2 + $0xf8] sm:$0xff] 0.0
    $region54: #{digae_forward.8} parent=1 // pred_fallthru
      _
    %s213 = smul.u32 0, 256
    %s214 = sshra.s32 %s213, 3
    %s215 = sand.u32 %s213, 7
    %s216 = smul.addr %s214, 4
    %s217 = scalar_lea.vmem [#allocation3], %s216
    %v218 = vld [vmem:[%s217] sm:$0xf]
    %v219 = vld [vmem:[%s217 + $0x4] sm:$0xf]
    %v220 = vld [vmem:[%s217 + $0x8] sm:$0xf]
    %v221 = vld [vmem:[%s217 + $0xc] sm:$0xf]
    %v222 = vld [vmem:[%s217 + $0x10] sm:$0xf]
    %v223 = vld [vmem:[%s217 + $0x14] sm:$0xf]
    %v224 = vld [vmem:[%s217 + $0x18] sm:$0xf]
    %v225 = vld [vmem:[%s217 + $0x1c] sm:$0xf]
    %v226 = vld [vmem:[%s217 + $0x20] sm:$0xf]
    %v227 = vld [vmem:[%s217 + $0x24] sm:$0xf]
    %v228 = vld [vmem:[%s217 + $0x28] sm:$0xf]
    %v229 = vld [vmem:[%s217 + $0x2c] sm:$0xf]
    %v230 = vld [vmem:[%s217 + $0x30] sm:$0xf]
    %v231 = vld [vmem:[%s217 + $0x34] sm:$0xf]
    %v232 = vld [vmem:[%s217 + $0x38] sm:$0xf]
    %v233 = vld [vmem:[%s217 + $0x3c] sm:$0xf]
    %v234 = vld [vmem:[%s217 + $0x40] sm:$0xf]
    %v235 = vld [vmem:[%s217 + $0x44] sm:$0xf]
    %v236 = vld [vmem:[%s217 + $0x48] sm:$0xf]
    %v237 = vld [vmem:[%s217 + $0x4c] sm:$0xf]
    %v238 = vld [vmem:[%s217 + $0x50] sm:$0xf]
    %v239 = vld [vmem:[%s217 + $0x54] sm:$0xf]
    %v240 = vld [vmem:[%s217 + $0x58] sm:$0xf]
    %v241 = vld [vmem:[%s217 + $0x5c] sm:$0xf]
    %v242 = vld [vmem:[%s217 + $0x60] sm:$0xf]
    %v243 = vld [vmem:[%s217 + $0x64] sm:$0xf]
    %v244 = vld [vmem:[%s217 + $0x68] sm:$0xf]
    %v245 = vld [vmem:[%s217 + $0x6c] sm:$0xf]
    %v246 = vld [vmem:[%s217 + $0x70] sm:$0xf]
    %v247 = vld [vmem:[%s217 + $0x74] sm:$0xf]
    %v248 = vld [vmem:[%s217 + $0x78] sm:$0xf]
    %v249 = vld [vmem:[%s217 + $0x7c] sm:$0xf]
    %v250 = vld [vmem:[#allocation2] sm:$0xff]
    %v251 = vld [vmem:[#allocation2 + $0x8] sm:$0xff]
    %v252 = vld [vmem:[#allocation2 + $0x10] sm:$0xff]
    %v253 = vld [vmem:[#allocation2 + $0x18] sm:$0xff]
    %v254 = vld [vmem:[#allocation2 + $0x20] sm:$0xff]
    %v255 = vld [vmem:[#allocation2 + $0x28] sm:$0xff]
    %v256 = vld [vmem:[#allocation2 + $0x30] sm:$0xff]
    %v257 = vld [vmem:[#allocation2 + $0x38] sm:$0xff]
    %v258 = vld [vmem:[#allocation2 + $0x40] sm:$0xff]
    %v259 = vld [vmem:[#allocation2 + $0x48] sm:$0xff]
    %v260 = vld [vmem:[#allocation2 + $0x50] sm:$0xff]
    %v261 = vld [vmem:[#allocation2 + $0x58] sm:$0xff]
    %v262 = vld [vmem:[#allocation2 + $0x60] sm:$0xff]
    %v263 = vld [vmem:[#allocation2 + $0x68] sm:$0xff]
    %v264 = vld [vmem:[#allocation2 + $0x70] sm:$0xff]
    %v265 = vld [vmem:[#allocation2 + $0x78] sm:$0xff]
    %v266 = vld [vmem:[#allocation2 + $0x80] sm:$0xff]
    %v267 = vld [vmem:[#allocation2 + $0x88] sm:$0xff]
    %v268 = vld [vmem:[#allocation2 + $0x90] sm:$0xff]
    %v269 = vld [vmem:[#allocation2 + $0x98] sm:$0xff]
    %v270 = vld [vmem:[#allocation2 + $0xa0] sm:$0xff]
    %v271 = vld [vmem:[#allocation2 + $0xa8] sm:$0xff]
    %v272 = vld [vmem:[#allocation2 + $0xb0] sm:$0xff]
    %v273 = vld [vmem:[#allocation2 + $0xb8] sm:$0xff]
    %v274 = vld [vmem:[#allocation2 + $0xc0] sm:$0xff]
    %v275 = vld [vmem:[#allocation2 + $0xc8] sm:$0xff]
    %v276 = vld [vmem:[#allocation2 + $0xd0] sm:$0xff]
    %v277 = vld [vmem:[#allocation2 + $0xd8] sm:$0xff]
    %v278 = vld [vmem:[#allocation2 + $0xe0] sm:$0xff]
    %v279 = vld [vmem:[#allocation2 + $0xe8] sm:$0xff]
    %v280 = vld [vmem:[#allocation2 + $0xf0] sm:$0xff]
    %v281 = vld [vmem:[#allocation2 + $0xf8] sm:$0xff]
    %v282 = vld [vmem:[%s0] sm:$0xff]
    %v283 = vld [vmem:[%s0 + $0x8] sm:$0xff]
    %v284 = vld [vmem:[%s0 + $0x10] sm:$0xff]
    %v285 = vld [vmem:[%s0 + $0x18] sm:$0xff]
    %v286 = vld [vmem:[%s0 + $0x20] sm:$0xff]
    %v287 = vld [vmem:[%s0 + $0x28] sm:$0xff]
    %v288 = vld [vmem:[%s0 + $0x30] sm:$0xff]
    %v289 = vld [vmem:[%s0 + $0x38] sm:$0xff]
    %v290 = vld [vmem:[%s0 + $0x40] sm:$0xff]
    %v291 = vld [vmem:[%s0 + $0x48] sm:$0xff]
    %v292 = vld [vmem:[%s0 + $0x50] sm:$0xff]
    %v293 = vld [vmem:[%s0 + $0x58] sm:$0xff]
    %v294 = vld [vmem:[%s0 + $0x60] sm:$0xff]
    %v295 = vld [vmem:[%s0 + $0x68] sm:$0xff]
    %v296 = vld [vmem:[%s0 + $0x70] sm:$0xff]
    %v297 = vld [vmem:[%s0 + $0x78] sm:$0xff]
    %v298 = vld [vmem:[%s0 + $0x80] sm:$0xff]
    %v299 = vld [vmem:[%s0 + $0x88] sm:$0xff]
    %v300 = vld [vmem:[%s0 + $0x90] sm:$0xff]
    %v301 = vld [vmem:[%s0 + $0x98] sm:$0xff]
    %v302 = vld [vmem:[%s0 + $0xa0] sm:$0xff]
    %v303 = vld [vmem:[%s0 + $0xa8] sm:$0xff]
    %v304 = vld [vmem:[%s0 + $0xb0] sm:$0xff]
    %v305 = vld [vmem:[%s0 + $0xb8] sm:$0xff]
    %v306 = vld [vmem:[%s0 + $0xc0] sm:$0xff]
    %v307 = vld [vmem:[%s0 + $0xc8] sm:$0xff]
    %v308 = vld [vmem:[%s0 + $0xd0] sm:$0xff]
    %v309 = vld [vmem:[%s0 + $0xd8] sm:$0xff]
    %v310 = vld [vmem:[%s0 + $0xe0] sm:$0xff]
    %v311 = vld [vmem:[%s0 + $0xe8] sm:$0xff]
    %v312 = vld [vmem:[%s0 + $0xf0] sm:$0xff]
    %v313 = vld [vmem:[%s0 + $0xf8] sm:$0xff]
    %v346 = vunpack.c.l.b16 %v282
    %v347 = vunpack.c.h.b16 %v282
    %v348 = vunpack.c.l.b16 %v283
    %v349 = vunpack.c.h.b16 %v283
    %v350 = vunpack.c.l.b16 %v284
    %v351 = vunpack.c.h.b16 %v284
    %v352 = vunpack.c.l.b16 %v285
    %v353 = vunpack.c.h.b16 %v285
    %v354 = vunpack.c.l.b16 %v286
    %v355 = vunpack.c.h.b16 %v286
    %v356 = vunpack.c.l.b16 %v287
    %v357 = vunpack.c.h.b16 %v287
    %v358 = vunpack.c.l.b16 %v288
    %v359 = vunpack.c.h.b16 %v288
    %v360 = vunpack.c.l.b16 %v289
    %v361 = vunpack.c.h.b16 %v289
    %v362 = vunpack.c.l.b16 %v290
    %v363 = vunpack.c.h.b16 %v290
    %v364 = vunpack.c.l.b16 %v291
    %v365 = vunpack.c.h.b16 %v291
    %v366 = vunpack.c.l.b16 %v292
    %v367 = vunpack.c.h.b16 %v292
    %v368 = vunpack.c.l.b16 %v293
    %v369 = vunpack.c.h.b16 %v293
    %v370 = vunpack.c.l.b16 %v294
    %v371 = vunpack.c.h.b16 %v294
    %v372 = vunpack.c.l.b16 %v295
    %v373 = vunpack.c.h.b16 %v295
    %v374 = vunpack.c.l.b16 %v296
    %v375 = vunpack.c.h.b16 %v296
    %v376 = vunpack.c.l.b16 %v297
    %v377 = vunpack.c.h.b16 %v297
    %v378 = vunpack.c.l.b16 %v298
    %v379 = vunpack.c.h.b16 %v298
    %v380 = vunpack.c.l.b16 %v299
    %v381 = vunpack.c.h.b16 %v299
    %v382 = vunpack.c.l.b16 %v300
    %v383 = vunpack.c.h.b16 %v300
    %v384 = vunpack.c.l.b16 %v301
    %v385 = vunpack.c.h.b16 %v301
    %v386 = vunpack.c.l.b16 %v302
    %v387 = vunpack.c.h.b16 %v302
    %v388 = vunpack.c.l.b16 %v303
    %v389 = vunpack.c.h.b16 %v303
    %v390 = vunpack.c.l.b16 %v304
    %v391 = vunpack.c.h.b16 %v304
    %v392 = vunpack.c.l.b16 %v305
    %v393 = vunpack.c.h.b16 %v305
    %v394 = vunpack.c.l.b16 %v306
    %v395 = vunpack.c.h.b16 %v306
    %v396 = vunpack.c.l.b16 %v307
    %v397 = vunpack.c.h.b16 %v307
    %v398 = vunpack.c.l.b16 %v308
    %v399 = vunpack.c.h.b16 %v308
    %v400 = vunpack.c.l.b16 %v309
    %v401 = vunpack.c.h.b16 %v309
    %v402 = vunpack.c.l.b16 %v310
    %v403 = vunpack.c.h.b16 %v310
    %v404 = vunpack.c.l.b16 %v311
    %v405 = vunpack.c.h.b16 %v311
    %v406 = vunpack.c.l.b16 %v312
    %v407 = vunpack.c.h.b16 %v312
    %v408 = vunpack.c.l.b16 %v313
    %v409 = vunpack.c.h.b16 %v313
    %v410 = vpack.c.b16 %v348, %v346
    %v411 = vpack.c.b16 %v349, %v347
    %v412 = vpack.c.b16 %v352, %v350
    %v413 = vpack.c.b16 %v353, %v351
    %v414 = vpack.c.b16 %v356, %v354
    %v415 = vpack.c.b16 %v357, %v355
    %v416 = vpack.c.b16 %v360, %v358
    %v417 = vpack.c.b16 %v361, %v359
    %v418 = vpack.c.b16 %v364, %v362
    %v419 = vpack.c.b16 %v365, %v363
    %v420 = vpack.c.b16 %v368, %v366
    %v421 = vpack.c.b16 %v369, %v367
    %v422 = vpack.c.b16 %v372, %v370
    %v423 = vpack.c.b16 %v373, %v371
    %v424 = vpack.c.b16 %v376, %v374
    %v425 = vpack.c.b16 %v377, %v375
    %v426 = vpack.c.b16 %v380, %v378
    %v427 = vpack.c.b16 %v381, %v379
    %v428 = vpack.c.b16 %v384, %v382
    %v429 = vpack.c.b16 %v385, %v383
    %v430 = vpack.c.b16 %v388, %v386
    %v431 = vpack.c.b16 %v389, %v387
    %v432 = vpack.c.b16 %v392, %v390
    %v433 = vpack.c.b16 %v393, %v391
    %v434 = vpack.c.b16 %v396, %v394
    %v435 = vpack.c.b16 %v397, %v395
    %v436 = vpack.c.b16 %v400, %v398
    %v437 = vpack.c.b16 %v401, %v399
    %v438 = vpack.c.b16 %v404, %v402
    %v439 = vpack.c.b16 %v405, %v403
    %v440 = vpack.c.b16 %v408, %v406
    %v441 = vpack.c.b16 %v409, %v407
    %v506 = vunpack.c.l.b16 %v218
    %v507 = vunpack.c.l.b16 %v219
    %v508 = vunpack.c.l.b16 %v220
    %v509 = vunpack.c.l.b16 %v221
    %v510 = vunpack.c.l.b16 %v222
    %v511 = vunpack.c.l.b16 %v223
    %v512 = vunpack.c.l.b16 %v224
    %v513 = vunpack.c.l.b16 %v225
    %v514 = vunpack.c.l.b16 %v226
    %v515 = vunpack.c.l.b16 %v227
    %v516 = vunpack.c.l.b16 %v228
    %v517 = vunpack.c.l.b16 %v229
    %v518 = vunpack.c.l.b16 %v230
    %v519 = vunpack.c.l.b16 %v231
    %v520 = vunpack.c.l.b16 %v232
    %v521 = vunpack.c.l.b16 %v233
    %v522 = vunpack.c.l.b16 %v234
    %v523 = vunpack.c.l.b16 %v235
    %v524 = vunpack.c.l.b16 %v236
    %v525 = vunpack.c.l.b16 %v237
    %v526 = vunpack.c.l.b16 %v238
    %v527 = vunpack.c.l.b16 %v239
    %v528 = vunpack.c.l.b16 %v240
    %v529 = vunpack.c.l.b16 %v241
    %v530 = vunpack.c.l.b16 %v242
    %v531 = vunpack.c.l.b16 %v243
    %v532 = vunpack.c.l.b16 %v244
    %v533 = vunpack.c.l.b16 %v245
    %v534 = vunpack.c.l.b16 %v246
    %v535 = vunpack.c.l.b16 %v247
    %v536 = vunpack.c.l.b16 %v248
    %v537 = vunpack.c.l.b16 %v249
    %v538 = vpack.c.b16 %v507, %v506
    %v539 = vpack.c.b16 %v509, %v508
    %v540 = vpack.c.b16 %v511, %v510
    %v541 = vpack.c.b16 %v513, %v512
    %v542 = vpack.c.b16 %v515, %v514
    %v543 = vpack.c.b16 %v517, %v516
    %v544 = vpack.c.b16 %v519, %v518
    %v545 = vpack.c.b16 %v521, %v520
    %v546 = vpack.c.b16 %v523, %v522
    %v547 = vpack.c.b16 %v525, %v524
    %v548 = vpack.c.b16 %v527, %v526
    %v549 = vpack.c.b16 %v529, %v528
    %v550 = vpack.c.b16 %v531, %v530
    %v551 = vpack.c.b16 %v533, %v532
    %v552 = vpack.c.b16 %v535, %v534
    %v553 = vpack.c.b16 %v537, %v536
    %570 = vmatprep.subr.bf16.mxu0 0
    %571 = vmatpush1.bf16.msra.mxu0 %v538
    %572 = vmatprep.subr.bf16.mxu0 0
    %573 = vmatpush1.bf16.msra.mxu0 %v539
    %574 = vmatprep.subr.bf16.mxu0 0
    %575 = vmatpush1.bf16.msra.mxu0 %v540
    %576 = vmatprep.subr.bf16.mxu0 0
    %577 = vmatpush1.bf16.msra.mxu0 %v541
    %578 = vmatprep.subr.bf16.mxu0 0
    %579 = vmatpush1.bf16.msra.mxu0 %v542
    %580 = vmatprep.subr.bf16.mxu0 0
    %581 = vmatpush1.bf16.msra.mxu0 %v543
    %582 = vmatprep.subr.bf16.mxu0 0
    %583 = vmatpush1.bf16.msra.mxu0 %v544
    %584 = vmatprep.subr.bf16.mxu0 0
    %585 = vmatpush1.bf16.msra.mxu0 %v545
    %586 = vmatprep.subr.bf16.mxu0 0
    %587 = vmatpush1.bf16.msra.mxu0 %v546
    %588 = vmatprep.subr.bf16.mxu0 0
    %589 = vmatpush1.bf16.msra.mxu0 %v547
    %590 = vmatprep.subr.bf16.mxu0 0
    %591 = vmatpush1.bf16.msra.mxu0 %v548
    %592 = vmatprep.subr.bf16.mxu0 0
    %593 = vmatpush1.bf16.msra.mxu0 %v549
    %594 = vmatprep.subr.bf16.mxu0 0
    %595 = vmatpush1.bf16.msra.mxu0 %v550
    %596 = vmatprep.subr.bf16.mxu0 0
    %597 = vmatpush1.bf16.msra.mxu0 %v551
    %598 = vmatprep.subr.bf16.mxu0 0
    %599 = vmatpush1.bf16.msra.mxu0 %v552
    %600 = vmatprep.subr.bf16.mxu0 0
    %601 = vmatpush1.bf16.msra.mxu0 %v553
    %602 = vmatprep.mubr.bf16.mxu0 %v411
    %603 = vmatmul.mubr.bf16.gmra.mrb[0].mxu0 %v410
    %v604 = vpop.f32.mrb[0].mxu0
    %v605 = vadd.f32 0.0, %v604
    %v606 = vpop.f32.mrb[0].mxu0
    %v607 = vpop.f32.mrb[0].mxu0
    %v608 = vadd.f32 0.0, %v607
    %v609 = vpop.f32.mrb[0].mxu0
    %610 = vmatprep.mubr.bf16.mxu0 %v413
    %611 = vmatmul.mubr.bf16.gmra.mrb[0].mxu0 %v412
    %v612 = vpop.f32.mrb[0].mxu0
    %v613 = vadd.f32 0.0, %v612
    %v614 = vpop.f32.mrb[0].mxu0
    %v615 = vpop.f32.mrb[0].mxu0
    %v616 = vadd.f32 0.0, %v615
    %v617 = vpop.f32.mrb[0].mxu0
    %618 = vmatprep.mubr.bf16.mxu0 %v415
    %619 = vmatmul.mubr.bf16.gmra.mrb[0].mxu0 %v414
    %v620 = vpop.f32.mrb[0].mxu0
    %v621 = vadd.f32 0.0, %v620
    %v622 = vpop.f32.mrb[0].mxu0
    %v623 = vpop.f32.mrb[0].mxu0
    %v624 = vadd.f32 0.0, %v623
    %v625 = vpop.f32.mrb[0].mxu0
    %626 = vmatprep.mubr.bf16.mxu0 %v417
    %627 = vmatmul.mubr.bf16.gmra.mrb[0].mxu0 %v416
    %v628 = vpop.f32.mrb[0].mxu0
    %v629 = vadd.f32 0.0, %v628
    %v630 = vpop.f32.mrb[0].mxu0
    %v631 = vpop.f32.mrb[0].mxu0
    %v632 = vadd.f32 0.0, %v631
    %v633 = vpop.f32.mrb[0].mxu0
    %634 = vmatprep.mubr.bf16.mxu0 %v419
    %635 = vmatmul.mubr.bf16.gmra.mrb[0].mxu0 %v418
    %v636 = vpop.f32.mrb[0].mxu0
    %v637 = vadd.f32 0.0, %v636
    %v638 = vpop.f32.mrb[0].mxu0
    %v639 = vpop.f32.mrb[0].mxu0
    %v640 = vadd.f32 0.0, %v639
    %v641 = vpop.f32.mrb[0].mxu0
    %642 = vmatprep.mubr.bf16.mxu0 %v421
    %643 = vmatmul.mubr.bf16.gmra.mrb[0].mxu0 %v420
    %v644 = vpop.f32.mrb[0].mxu0
    %v645 = vadd.f32 0.0, %v644
    %v646 = vpop.f32.mrb[0].mxu0
    %v647 = vpop.f32.mrb[0].mxu0
    %v648 = vadd.f32 0.0, %v647
    %v649 = vpop.f32.mrb[0].mxu0
    %650 = vmatprep.mubr.bf16.mxu0 %v423
    %651 = vmatmul.mubr.bf16.gmra.mrb[0].mxu0 %v422
    %v652 = vpop.f32.mrb[0].mxu0
    %v653 = vadd.f32 0.0, %v652
    %v654 = vpop.f32.mrb[0].mxu0
    %v655 = vpop.f32.mrb[0].mxu0
    %v656 = vadd.f32 0.0, %v655
    %v657 = vpop.f32.mrb[0].mxu0
    %658 = vmatprep.mubr.bf16.mxu0 %v425
    %659 = vmatmul.mubr.bf16.gmra.mrb[0].mxu0 %v424
    %v660 = vpop.f32.mrb[0].mxu0
    %v661 = vadd.f32 0.0, %v660
    %v662 = vpop.f32.mrb[0].mxu0
    %v663 = vpop.f32.mrb[0].mxu0
    %v664 = vadd.f32 0.0, %v663
    %v665 = vpop.f32.mrb[0].mxu0
    %666 = vmatprep.mubr.bf16.mxu0 %v427
    %667 = vmatmul.mubr.bf16.gmra.mrb[0].mxu0 %v426
    %v668 = vpop.f32.mrb[0].mxu0
    %v669 = vadd.f32 0.0, %v668
    %v670 = vpop.f32.mrb[0].mxu0
    %v671 = vpop.f32.mrb[0].mxu0
    %v672 = vadd.f32 0.0, %v671
    %v673 = vpop.f32.mrb[0].mxu0
    %674 = vmatprep.mubr.bf16.mxu0 %v429
    %675 = vmatmul.mubr.bf16.gmra.mrb[0].mxu0 %v428
    %v676 = vpop.f32.mrb[0].mxu0
    %v677 = vadd.f32 0.0, %v676
    %v678 = vpop.f32.mrb[0].mxu0
    %v679 = vpop.f32.mrb[0].mxu0
    %v680 = vadd.f32 0.0, %v679
    %v681 = vpop.f32.mrb[0].mxu0
    %682 = vmatprep.mubr.bf16.mxu0 %v431
    %683 = vmatmul.mubr.bf16.gmra.mrb[0].mxu0 %v430
    %v684 = vpop.f32.mrb[0].mxu0
    %v685 = vadd.f32 0.0, %v684
    %v686 = vpop.f32.mrb[0].mxu0
    %v687 = vpop.f32.mrb[0].mxu0
    %v688 = vadd.f32 0.0, %v687
    %v689 = vpop.f32.mrb[0].mxu0
    %690 = vmatprep.mubr.bf16.mxu0 %v433
    %691 = vmatmul.mubr.bf16.gmra.mrb[0].mxu0 %v432
    %v692 = vpop.f32.mrb[0].mxu0
    %v693 = vadd.f32 0.0, %v692
    %v694 = vpop.f32.mrb[0].mxu0
    %v695 = vpop.f32.mrb[0].mxu0
    %v696 = vadd.f32 0.0, %v695
    %v697 = vpop.f32.mrb[0].mxu0
    %698 = vmatprep.mubr.bf16.mxu0 %v435
    %699 = vmatmul.mubr.bf16.gmra.mrb[0].mxu0 %v434
    %v700 = vpop.f32.mrb[0].mxu0
    %v701 = vadd.f32 0.0, %v700
    %v702 = vpop.f32.mrb[0].mxu0
    %v703 = vpop.f32.mrb[0].mxu0
    %v704 = vadd.f32 0.0, %v703
    %v705 = vpop.f32.mrb[0].mxu0
    %706 = vmatprep.mubr.bf16.mxu0 %v437
    %707 = vmatmul.mubr.bf16.gmra.mrb[0].mxu0 %v436
    %v708 = vpop.f32.mrb[0].mxu0
    %v709 = vadd.f32 0.0, %v708
    %v710 = vpop.f32.mrb[0].mxu0
    %v711 = vpop.f32.mrb[0].mxu0
    %v712 = vadd.f32 0.0, %v711
    %v713 = vpop.f32.mrb[0].mxu0
    %714 = vmatprep.mubr.bf16.mxu0 %v439
    %715 = vmatmul.mubr.bf16.gmra.mrb[0].mxu0 %v438
    %v716 = vpop.f32.mrb[0].mxu0
    %v717 = vadd.f32 0.0, %v716
    %v718 = vpop.f32.mrb[0].mxu0
    %v719 = vpop.f32.mrb[0].mxu0
    %v720 = vadd.f32 0.0, %v719
    %v721 = vpop.f32.mrb[0].mxu0
    %722 = vmatprep.mubr.bf16.mxu0 %v441
    %723 = vmatmul.mubr.bf16.gmra.mrb[0].mxu0 %v440
    %v724 = vpop.f32.mrb[0].mxu0
    %v725 = vadd.f32 0.0, %v724
    %v726 = vpop.f32.mrb[0].mxu0
    %v727 = vpop.f32.mrb[0].mxu0
    %v728 = vadd.f32 0.0, %v727
    %v729 = vpop.f32.mrb[0].mxu0
    %730 = vdwg.mxu0
    %v731 = vadd.f32 %v250, %v605
    %v732 = vadd.f32 %v251, %v608
    %v733 = vadd.f32 %v252, %v613
    %v734 = vadd.f32 %v253, %v616
    %v735 = vadd.f32 %v254, %v621
    %v736 = vadd.f32 %v255, %v624
    %v737 = vadd.f32 %v256, %v629
    %v738 = vadd.f32 %v257, %v632
    %v739 = vadd.f32 %v258, %v637
    %v740 = vadd.f32 %v259, %v640
    %v741 = vadd.f32 %v260, %v645
    %v742 = vadd.f32 %v261, %v648
    %v743 = vadd.f32 %v262, %v653
    %v744 = vadd.f32 %v263, %v656
    %v745 = vadd.f32 %v264, %v661
    %v746 = vadd.f32 %v265, %v664
    %v747 = vadd.f32 %v266, %v669
    %v748 = vadd.f32 %v267, %v672
    %v749 = vadd.f32 %v268, %v677
    %v750 = vadd.f32 %v269, %v680
    %v751 = vadd.f32 %v270, %v685
    %v752 = vadd.f32 %v271, %v688
    %v753 = vadd.f32 %v272, %v693
    %v754 = vadd.f32 %v273, %v696
    %v755 = vadd.f32 %v274, %v701
    %v756 = vadd.f32 %v275, %v704
    %v757 = vadd.f32 %v276, %v709
    %v758 = vadd.f32 %v277, %v712
    %v759 = vadd.f32 %v278, %v717
    %v760 = vadd.f32 %v279, %v720
    %v761 = vadd.f32 %v280, %v725
    %v762 = vadd.f32 %v281, %v728
    %763 = vst [vmem:[#allocation2] sm:$0xff] %v731
    %764 = vst [vmem:[#allocation2 + $0x8] sm:$0xff] %v732
    %765 = vst [vmem:[#allocation2 + $0x10] sm:$0xff] %v733
    %766 = vst [vmem:[#allocation2 + $0x18] sm:$0xff] %v734
    %767 = vst [vmem:[#allocation2 + $0x20] sm:$0xff] %v735
    %768 = vst [vmem:[#allocation2 + $0x28] sm:$0xff] %v736
    %769 = vst [vmem:[#allocation2 + $0x30] sm:$0xff] %v737
    %770 = vst [vmem:[#allocation2 + $0x38] sm:$0xff] %v738
    %771 = vst [vmem:[#allocation2 + $0x40] sm:$0xff] %v739
    %772 = vst [vmem:[#allocation2 + $0x48] sm:$0xff] %v740
    %773 = vst [vmem:[#allocation2 + $0x50] sm:$0xff] %v741
    %774 = vst [vmem:[#allocation2 + $0x58] sm:$0xff] %v742
    %775 = vst [vmem:[#allocation2 + $0x60] sm:$0xff] %v743
    %776 = vst [vmem:[#allocation2 + $0x68] sm:$0xff] %v744
    %777 = vst [vmem:[#allocation2 + $0x70] sm:$0xff] %v745
    %778 = vst [vmem:[#allocation2 + $0x78] sm:$0xff] %v746
    %779 = vst [vmem:[#allocation2 + $0x80] sm:$0xff] %v747
    %780 = vst [vmem:[#allocation2 + $0x88] sm:$0xff] %v748
    %781 = vst [vmem:[#allocation2 + $0x90] sm:$0xff] %v749
    %782 = vst [vmem:[#allocation2 + $0x98] sm:$0xff] %v750
    %783 = vst [vmem:[#allocation2 + $0xa0] sm:$0xff] %v751
    %784 = vst [vmem:[#allocation2 + $0xa8] sm:$0xff] %v752
    %785 = vst [vmem:[#allocation2 + $0xb0] sm:$0xff] %v753
    %786 = vst [vmem:[#allocation2 + $0xb8] sm:$0xff] %v754
    %787 = vst [vmem:[#allocation2 + $0xc0] sm:$0xff] %v755
    %788 = vst [vmem:[#allocation2 + $0xc8] sm:$0xff] %v756
    %789 = vst [vmem:[#allocation2 + $0xd0] sm:$0xff] %v757
    %790 = vst [vmem:[#allocation2 + $0xd8] sm:$0xff] %v758
    %791 = vst [vmem:[#allocation2 + $0xe0] sm:$0xff] %v759
    %792 = vst [vmem:[#allocation2 + $0xe8] sm:$0xff] %v760
    %793 = vst [vmem:[#allocation2 + $0xf0] sm:$0xff] %v761
    %794 = vst [vmem:[#allocation2 + $0xf8] sm:$0xff] %v762
    // Predicated region
    $region55: #{digae_forward.8} parent=1 // pred_check
      %p795 = pneg %p177
    $region56: #{digae_forward.8} parent=1 // pred_check_branch
      %797 = sbr.rel (%p795) target = $region58
    $region57: #{digae_forward.8} parent=1 // pred_region
      %v798 = vld [vmem:[#allocation2] sm:$0xff]
      %v799 = vld [vmem:[#allocation2 + $0x8] sm:$0xff]
      %v800 = vld [vmem:[#allocation2 + $0x10] sm:$0xff]
      %v801 = vld [vmem:[#allocation2 + $0x18] sm:$0xff]
      %v802 = vld [vmem:[#allocation2 + $0x20] sm:$0xff]
      %v803 = vld [vmem:[#allocation2 + $0x28] sm:$0xff]
      %v804 = vld [vmem:[#allocation2 + $0x30] sm:$0xff]
      %v805 = vld [vmem:[#allocation2 + $0x38] sm:$0xff]
      %v806 = vld [vmem:[#allocation2 + $0x40] sm:$0xff]
      %v807 = vld [vmem:[#allocation2 + $0x48] sm:$0xff]
      %v808 = vld [vmem:[#allocation2 + $0x50] sm:$0xff]
      %v809 = vld [vmem:[#allocation2 + $0x58] sm:$0xff]
      %v810 = vld [vmem:[#allocation2 + $0x60] sm:$0xff]
      %v811 = vld [vmem:[#allocation2 + $0x68] sm:$0xff]
      %v812 = vld [vmem:[#allocation2 + $0x70] sm:$0xff]
      %v813 = vld [vmem:[#allocation2 + $0x78] sm:$0xff]
      %v814 = vld [vmem:[#allocation2 + $0x80] sm:$0xff]
      %v815 = vld [vmem:[#allocation2 + $0x88] sm:$0xff]
      %v816 = vld [vmem:[#allocation2 + $0x90] sm:$0xff]
      %v817 = vld [vmem:[#allocation2 + $0x98] sm:$0xff]
      %v818 = vld [vmem:[#allocation2 + $0xa0] sm:$0xff]
      %v819 = vld [vmem:[#allocation2 + $0xa8] sm:$0xff]
      %v820 = vld [vmem:[#allocation2 + $0xb0] sm:$0xff]
      %v821 = vld [vmem:[#allocation2 + $0xb8] sm:$0xff]
      %v822 = vld [vmem:[#allocation2 + $0xc0] sm:$0xff]
      %v823 = vld [vmem:[#allocation2 + $0xc8] sm:$0xff]
      %v824 = vld [vmem:[#allocation2 + $0xd0] sm:$0xff]
      %v825 = vld [vmem:[#allocation2 + $0xd8] sm:$0xff]
      %v826 = vld [vmem:[#allocation2 + $0xe0] sm:$0xff]
      %v827 = vld [vmem:[#allocation2 + $0xe8] sm:$0xff]
      %v828 = vld [vmem:[#allocation2 + $0xf0] sm:$0xff]
      %v829 = vld [vmem:[#allocation2 + $0xf8] sm:$0xff]
      %v830 = vmax.f32 %v798, 0.0
      %v831 = vmax.f32 %v799, 0.0
      %v832 = vmax.f32 %v800, 0.0
      %v833 = vmax.f32 %v801, 0.0
      %v834 = vmax.f32 %v802, 0.0
      %v835 = vmax.f32 %v803, 0.0
      %v836 = vmax.f32 %v804, 0.0
      %v837 = vmax.f32 %v805, 0.0
      %v838 = vmax.f32 %v806, 0.0
      %v839 = vmax.f32 %v807, 0.0
      %v840 = vmax.f32 %v808, 0.0
      %v841 = vmax.f32 %v809, 0.0
      %v842 = vmax.f32 %v810, 0.0
      %v843 = vmax.f32 %v811, 0.0
      %v844 = vmax.f32 %v812, 0.0
      %v845 = vmax.f32 %v813, 0.0
      %v846 = vmax.f32 %v814, 0.0
      %v847 = vmax.f32 %v815, 0.0
      %v848 = vmax.f32 %v816, 0.0
      %v849 = vmax.f32 %v817, 0.0
      %v850 = vmax.f32 %v818, 0.0
      %v851 = vmax.f32 %v819, 0.0
      %v852 = vmax.f32 %v820, 0.0
      %v853 = vmax.f32 %v821, 0.0
      %v854 = vmax.f32 %v822, 0.0
      %v855 = vmax.f32 %v823, 0.0
      %v856 = vmax.f32 %v824, 0.0
      %v857 = vmax.f32 %v825, 0.0
      %v858 = vmax.f32 %v826, 0.0
      %v859 = vmax.f32 %v827, 0.0
      %v860 = vmax.f32 %v828, 0.0
      %v861 = vmax.f32 %v829, 0.0
      %v862 = vpack.c.bf16 %v831, %v830
      %v863 = vpack.c.bf16 %v833, %v832
      %v864 = vpack.c.bf16 %v835, %v834
      %v865 = vpack.c.bf16 %v837, %v836
      %v866 = vpack.c.bf16 %v839, %v838
      %v867 = vpack.c.bf16 %v841, %v840
      %v868 = vpack.c.bf16 %v843, %v842
      %v869 = vpack.c.bf16 %v845, %v844
      %v870 = vpack.c.bf16 %v847, %v846
      %v871 = vpack.c.bf16 %v849, %v848
      %v872 = vpack.c.bf16 %v851, %v850
      %v873 = vpack.c.bf16 %v853, %v852
      %v874 = vpack.c.bf16 %v855, %v854
      %v875 = vpack.c.bf16 %v857, %v856
      %v876 = vpack.c.bf16 %v859, %v858
      %v877 = vpack.c.bf16 %v861, %v860
      %v894 = vunpack.c.l.b16 %v862
      %v895 = vunpack.c.h.b16 %v862
      %v896 = vunpack.c.l.b16 %v863
      %v897 = vunpack.c.h.b16 %v863
      %v898 = vunpack.c.l.b16 %v864
      %v899 = vunpack.c.h.b16 %v864
      %v900 = vunpack.c.l.b16 %v865
      %v901 = vunpack.c.h.b16 %v865
      %v902 = vunpack.c.l.b16 %v866
      %v903 = vunpack.c.h.b16 %v866
      %v904 = vunpack.c.l.b16 %v867
      %v905 = vunpack.c.h.b16 %v867
      %v906 = vunpack.c.l.b16 %v868
      %v907 = vunpack.c.h.b16 %v868
      %v908 = vunpack.c.l.b16 %v869
      %v909 = vunpack.c.h.b16 %v869
      %v910 = vunpack.c.l.b16 %v870
      %v911 = vunpack.c.h.b16 %v870
      %v912 = vunpack.c.l.b16 %v871
      %v913 = vunpack.c.h.b16 %v871
      %v914 = vunpack.c.l.b16 %v872
      %v915 = vunpack.c.h.b16 %v872
      %v916 = vunpack.c.l.b16 %v873
      %v917 = vunpack.c.h.b16 %v873
      %v918 = vunpack.c.l.b16 %v874
      %v919 = vunpack.c.h.b16 %v874
      %v920 = vunpack.c.l.b16 %v875
      %v921 = vunpack.c.h.b16 %v875
      %v922 = vunpack.c.l.b16 %v876
      %v923 = vunpack.c.h.b16 %v876
      %v924 = vunpack.c.l.b16 %v877
      %v925 = vunpack.c.h.b16 %v877
      %v926 = vpack.c.b16 %v894, %v894
      %v927 = vpack.c.b16 %v895, %v895
      %v928 = vpack.c.b16 %v896, %v896
      %v929 = vpack.c.b16 %v897, %v897
      %v930 = vpack.c.b16 %v898, %v898
      %v931 = vpack.c.b16 %v899, %v899
      %v932 = vpack.c.b16 %v900, %v900
      %v933 = vpack.c.b16 %v901, %v901
      %v934 = vpack.c.b16 %v902, %v902
      %v935 = vpack.c.b16 %v903, %v903
      %v936 = vpack.c.b16 %v904, %v904
      %v937 = vpack.c.b16 %v905, %v905
      %v938 = vpack.c.b16 %v906, %v906
      %v939 = vpack.c.b16 %v907, %v907
      %v940 = vpack.c.b16 %v908, %v908
      %v941 = vpack.c.b16 %v909, %v909
      %v942 = vpack.c.b16 %v910, %v910
      %v943 = vpack.c.b16 %v911, %v911
      %v944 = vpack.c.b16 %v912, %v912
      %v945 = vpack.c.b16 %v913, %v913
      %v946 = vpack.c.b16 %v914, %v914
      %v947 = vpack.c.b16 %v915, %v915
      %v948 = vpack.c.b16 %v916, %v916
      %v949 = vpack.c.b16 %v917, %v917
      %v950 = vpack.c.b16 %v918, %v918
      %v951 = vpack.c.b16 %v919, %v919
      %v952 = vpack.c.b16 %v920, %v920
      %v953 = vpack.c.b16 %v921, %v921
      %v954 = vpack.c.b16 %v922, %v922
      %v955 = vpack.c.b16 %v923, %v923
      %v956 = vpack.c.b16 %v924, %v924
      %v957 = vpack.c.b16 %v925, %v925
      %990 = vst [vmem:[%s2] sm:$0xf] %v926
      %991 = vst [vmem:[%s2 + $0x4] sm:$0xf] %v927
      %992 = vst [vmem:[%s2 + $0x8] sm:$0xf] %v928
      %993 = vst [vmem:[%s2 + $0xc] sm:$0xf] %v929
      %994 = vst [vmem:[%s2 + $0x10] sm:$0xf] %v930
      %995 = vst [vmem:[%s2 + $0x14] sm:$0xf] %v931
      %996 = vst [vmem:[%s2 + $0x18] sm:$0xf] %v932
      %997 = vst [vmem:[%s2 + $0x1c] sm:$0xf] %v933
      %998 = vst [vmem:[%s2 + $0x20] sm:$0xf] %v934
      %999 = vst [vmem:[%s2 + $0x24] sm:$0xf] %v935
      %1000 = vst [vmem:[%s2 + $0x28] sm:$0xf] %v936
      %1001 = vst [vmem:[%s2 + $0x2c] sm:$0xf] %v937
      %1002 = vst [vmem:[%s2 + $0x30] sm:$0xf] %v938
      %1003 = vst [vmem:[%s2 + $0x34] sm:$0xf] %v939
      %1004 = vst [vmem:[%s2 + $0x38] sm:$0xf] %v940
      %1005 = vst [vmem:[%s2 + $0x3c] sm:$0xf] %v941
      %1006 = vst [vmem:[%s2 + $0x40] sm:$0xf] %v942
      %1007 = vst [vmem:[%s2 + $0x44] sm:$0xf] %v943
      %1008 = vst [vmem:[%s2 + $0x48] sm:$0xf] %v944
      %1009 = vst [vmem:[%s2 + $0x4c] sm:$0xf] %v945
      %1010 = vst [vmem:[%s2 + $0x50] sm:$0xf] %v946
      %1011 = vst [vmem:[%s2 + $0x54] sm:$0xf] %v947
      %1012 = vst [vmem:[%s2 + $0x58] sm:$0xf] %v948
      %1013 = vst [vmem:[%s2 + $0x5c] sm:$0xf] %v949
      %1014 = vst [vmem:[%s2 + $0x60] sm:$0xf] %v950
      %1015 = vst [vmem:[%s2 + $0x64] sm:$0xf] %v951
      %1016 = vst [vmem:[%s2 + $0x68] sm:$0xf] %v952
      %1017 = vst [vmem:[%s2 + $0x6c] sm:$0xf] %v953
      %1018 = vst [vmem:[%s2 + $0x70] sm:$0xf] %v954
      %1019 = vst [vmem:[%s2 + $0x74] sm:$0xf] %v955
      %1020 = vst [vmem:[%s2 + $0x78] sm:$0xf] %v956
      %1021 = vst [vmem:[%s2 + $0x7c] sm:$0xf] %v957
    $region58: #{digae_forward.8} parent=1 // pred_fallthru
      _
    // Predicated region
    $region59: #{digae_forward.8} parent=1 // pred_check
      _
    $region60: #{digae_forward.8} parent=1 // pred_check_branch
      %1023 = sbr.rel (0) target = $region62
    $region61: #{digae_forward.8} parent=1 // pred_region
      _
    $region62: #{digae_forward.8} parent=1 // pred_fallthru
      _
    // Predicated region
    $region63: #{digae_forward.8} parent=1 // pred_check
      _
    $region64: #{digae_forward.8} parent=1 // pred_check_branch
      %1025 = sbr.rel (0) target = $region66
    $region65: #{digae_forward.8} parent=1 // pred_region
      _
    $region66: #{digae_forward.8} parent=1 // pred_fallthru
      _

// kernel: digae_forward.10
$region0: #{digae_forward.10}
  #allocation0 [shape = 'u32[]', space=smem, size = 0x4, offset = 0x4, fixed_abs, tag = 'smem constant byte address 0x4 - core index']
  #allocation1 [shape = 'u32[144,128]{1,0:T(1,128)}', space=vmem, size = 0x12000, scoped, tag = 'internal scratch']
  #allocation2 [shape = 'f32[256,128]{1,0:T(8,128)}', space=vmem, size = 0x20000, scoped, tag = 'scratch operand']
  #allocation3 [shape = 'f32[256,128]{1,0:T(8,128)}', space=vmem, size = 0x20000, scoped, tag = 'scratch operand']
  %s0 = inlined_call_operand.vmem [shape: bf16[256,256], index: 0, kind: input, shape index: {}]
  %s1 = inlined_call_operand.vmem [shape: bf16[256,256], index: 1, kind: input, shape index: {}]
  %s2 = inlined_call_operand.vmem [shape: bf16[256,128], index: 2, kind: input, shape index: {}]
  %s3 = inlined_call_operand.vmem [shape: bf16[256,128], index: 3, kind: output, shape index: {0}]
  %s4 = inlined_call_operand.vmem [shape: bf16[256,128], index: 4, kind: output, shape index: {1}]
  %5 = xla_tuple %s3, %s4
  %s6 = sld [smem:[#allocation0]]
  $region79: #{digae_forward.10} parent=0
    _
  %s8 = ssub.s32 1, %s6
  %s9 = scalar_select 0, %s8, %s6
  $region1: #{digae_forward.10} parent=0
    #allocation4 [shape = 'u8[65536]{0}', space=vmem, size = 0x10000, scoped, tag = 'input window, operand 1, single buffered']
    // Predicated region
    $region2: #{digae_forward.10} parent=1 // pred_check
      _
    $region3: #{digae_forward.10} parent=1 // pred_check_branch
      %11 = sbr.rel (0) target = $region5
    $region4: #{digae_forward.10} parent=1 // pred_region
      _
    $region5: #{digae_forward.10} parent=1 // pred_fallthru
      _
    // Predicated region
    $region6: #{digae_forward.10} parent=1 // pred_check
      _
    $region7: #{digae_forward.10} parent=1 // pred_check_branch
      %13 = sbr.rel (0) target = $region9
    $region8: #{digae_forward.10} parent=1 // pred_region
      %s14 = scalar_lea.vmem %s1, 4
      // Predicated region
      $region10: #{digae_forward.10} parent=8 // pred_check
        _
      $region11: #{digae_forward.10} parent=8 // pred_check_branch
        %16 = sbr.rel (0) target = $region13
      $region12: #{digae_forward.10} parent=8 // pred_region
        // Predicated region
        $region14: #{digae_forward.10} parent=12 // pred_check
          _
        $region15: #{digae_forward.10} parent=12 // pred_check_branch
          %18 = sbr.rel target = $region17
        $region16: #{digae_forward.10} parent=12 // pred_region
          // Predicated region
          $region29: #{digae_forward.10} parent=16 // pred_check
            _
          $region30: #{digae_forward.10} parent=16 // pred_check_branch
            %95 = sbr.rel (0) target = $region32
          $region31: #{digae_forward.10} parent=16 // pred_region
            loop: start=0, step=1, limit=1
            $region33: #{digae_forward.10} parent=31 // loop_pre_header
              _
            $region34: #{digae_forward.10} parent=31 // loop_header
              %s97 = sphi 0, %s101
              %p98 = scmp.ge.s32.totalorder %s97, 1
              %s102 = sphi %s14, %s14
              %s103 = sphi [#allocation4], [#allocation4]
            $region35: #{digae_forward.10} parent=31 // loop_header_branch
              %100 = sbr.rel (%p98) target = $region39
            $region36: #{digae_forward.10} parent=31 // loop_body
              _
            $region37: #{digae_forward.10} parent=31 // loop_footer
              %s101 = sadd.s32 1, %s97
            $region38: #{digae_forward.10} parent=31 // loop_footer_branch
              %96 = sbr.rel target = $region34
            $region39: #{digae_forward.10} parent=31 // loop_exit
              _
            loop: start=0, step=1, limit=1
            $region40: #{digae_forward.10} parent=31 // loop_pre_header
              _
            $region41: #{digae_forward.10} parent=31 // loop_header
              %s106 = sphi 0, %s110
              %p107 = scmp.ge.s32.totalorder %s106, 1
              %s111 = sphi %s14, %s14
              %s112 = sphi [#allocation4], [#allocation4]
            $region42: #{digae_forward.10} parent=31 // loop_header_branch
              %109 = sbr.rel (%p107) target = $region46
            $region43: #{digae_forward.10} parent=31 // loop_body
              %v113 = vld [vmem:[%s111] sm:$0xf]
              %114 = vst [vmem:[%s112] sm:$0xf] %v113
              %v115 = vld [vmem:[%s111 + $0x8] sm:$0xf]
              %116 = vst [vmem:[%s112 + $0x4] sm:$0xf] %v115
              %v117 = vld [vmem:[%s111 + $0x10] sm:$0xf]
              %118 = vst [vmem:[%s112 + $0x8] sm:$0xf] %v117
              %v119 = vld [vmem:[%s111 + $0x18] sm:$0xf]
              %120 = vst [vmem:[%s112 + $0xc] sm:$0xf] %v119
              %v121 = vld [vmem:[%s111 + $0x20] sm:$0xf]
              %122 = vst [vmem:[%s112 + $0x10] sm:$0xf] %v121
              %v123 = vld [vmem:[%s111 + $0x28] sm:$0xf]
              %124 = vst [vmem:[%s112 + $0x14] sm:$0xf] %v123
              %v125 = vld [vmem:[%s111 + $0x30] sm:$0xf]
              %126 = vst [vmem:[%s112 + $0x18] sm:$0xf] %v125
              %v127 = vld [vmem:[%s111 + $0x38] sm:$0xf]
              %128 = vst [vmem:[%s112 + $0x1c] sm:$0xf] %v127
              %v129 = vld [vmem:[%s111 + $0x40] sm:$0xf]
              %130 = vst [vmem:[%s112 + $0x20] sm:$0xf] %v129
              %v131 = vld [vmem:[%s111 + $0x48] sm:$0xf]
              %132 = vst [vmem:[%s112 + $0x24] sm:$0xf] %v131
              %v133 = vld [vmem:[%s111 + $0x50] sm:$0xf]
              %134 = vst [vmem:[%s112 + $0x28] sm:$0xf] %v133
              %v135 = vld [vmem:[%s111 + $0x58] sm:$0xf]
              %136 = vst [vmem:[%s112 + $0x2c] sm:$0xf] %v135
              %v137 = vld [vmem:[%s111 + $0x60] sm:$0xf]
              %138 = vst [vmem:[%s112 + $0x30] sm:$0xf] %v137
              %v139 = vld [vmem:[%s111 + $0x68] sm:$0xf]
              %140 = vst [vmem:[%s112 + $0x34] sm:$0xf] %v139
              %v141 = vld [vmem:[%s111 + $0x70] sm:$0xf]
              %142 = vst [vmem:[%s112 + $0x38] sm:$0xf] %v141
              %v143 = vld [vmem:[%s111 + $0x78] sm:$0xf]
              %144 = vst [vmem:[%s112 + $0x3c] sm:$0xf] %v143
              %v145 = vld [vmem:[%s111 + $0x80] sm:$0xf]
              %146 = vst [vmem:[%s112 + $0x40] sm:$0xf] %v145
              %v147 = vld [vmem:[%s111 + $0x88] sm:$0xf]
              %148 = vst [vmem:[%s112 + $0x44] sm:$0xf] %v147
              %v149 = vld [vmem:[%s111 + $0x90] sm:$0xf]
              %150 = vst [vmem:[%s112 + $0x48] sm:$0xf] %v149
              %v151 = vld [vmem:[%s111 + $0x98] sm:$0xf]
              %152 = vst [vmem:[%s112 + $0x4c] sm:$0xf] %v151
              %v153 = vld [vmem:[%s111 + $0xa0] sm:$0xf]
              %154 = vst [vmem:[%s112 + $0x50] sm:$0xf] %v153
              %v155 = vld [vmem:[%s111 + $0xa8] sm:$0xf]
              %156 = vst [vmem:[%s112 + $0x54] sm:$0xf] %v155
              %v157 = vld [vmem:[%s111 + $0xb0] sm:$0xf]
              %158 = vst [vmem:[%s112 + $0x58] sm:$0xf] %v157
              %v159 = vld [vmem:[%s111 + $0xb8] sm:$0xf]
              %160 = vst [vmem:[%s112 + $0x5c] sm:$0xf] %v159
              %v161 = vld [vmem:[%s111 + $0xc0] sm:$0xf]
              %162 = vst [vmem:[%s112 + $0x60] sm:$0xf] %v161
              %v163 = vld [vmem:[%s111 + $0xc8] sm:$0xf]
              %164 = vst [vmem:[%s112 + $0x64] sm:$0xf] %v163
              %v165 = vld [vmem:[%s111 + $0xd0] sm:$0xf]
              %166 = vst [vmem:[%s112 + $0x68] sm:$0xf] %v165
              %v167 = vld [vmem:[%s111 + $0xd8] sm:$0xf]
              %168 = vst [vmem:[%s112 + $0x6c] sm:$0xf] %v167
              %v169 = vld [vmem:[%s111 + $0xe0] sm:$0xf]
              %170 = vst [vmem:[%s112 + $0x70] sm:$0xf] %v169
              %v171 = vld [vmem:[%s111 + $0xe8] sm:$0xf]
              %172 = vst [vmem:[%s112 + $0x74] sm:$0xf] %v171
              %v173 = vld [vmem:[%s111 + $0xf0] sm:$0xf]
              %174 = vst [vmem:[%s112 + $0x78] sm:$0xf] %v173
              %v175 = vld [vmem:[%s111 + $0xf8] sm:$0xf]
              %176 = vst [vmem:[%s112 + $0x7c] sm:$0xf] %v175
            $region44: #{digae_forward.10} parent=31 // loop_footer
              %s110 = sadd.s32 1, %s106
            $region45: #{digae_forward.10} parent=31 // loop_footer_branch
              %105 = sbr.rel target = $region41
            $region46: #{digae_forward.10} parent=31 // loop_exit
              _
          $region32: #{digae_forward.10} parent=16 // pred_fallthru
            _
        $region17: #{digae_forward.10} parent=12 // pred_fallthru
          _
        // Predicated region
        $region18: #{digae_forward.10} parent=12 // pred_check
          _
        $region19: #{digae_forward.10} parent=12 // pred_check_branch
          %20 = sbr.rel (0) target = $region21
        $region20: #{digae_forward.10} parent=12 // pred_region
          loop: start=0, step=1, limit=1
          $region22: #{digae_forward.10} parent=20 // loop_pre_header
            _
          $region23: #{digae_forward.10} parent=20 // loop_header
            %s23 = sphi 0, %s27
            %p24 = scmp.ge.s32.totalorder %s23, 1
            %s28 = sphi %s14, %s14
            %s29 = sphi [#allocation4], [#allocation4]
          $region24: #{digae_forward.10} parent=20 // loop_header_branch
            %26 = sbr.rel (%p24) target = $region28
          $region25: #{digae_forward.10} parent=20 // loop_body
            %v30 = vld [vmem:[%s28] sm:$0xf]
            %31 = vst [vmem:[%s29] sm:$0xf] %v30
            %v32 = vld [vmem:[%s28 + $0x8] sm:$0xf]
            %33 = vst [vmem:[%s29 + $0x4] sm:$0xf] %v32
            %v34 = vld [vmem:[%s28 + $0x10] sm:$0xf]
            %35 = vst [vmem:[%s29 + $0x8] sm:$0xf] %v34
            %v36 = vld [vmem:[%s28 + $0x18] sm:$0xf]
            %37 = vst [vmem:[%s29 + $0xc] sm:$0xf] %v36
            %v38 = vld [vmem:[%s28 + $0x20] sm:$0xf]
            %39 = vst [vmem:[%s29 + $0x10] sm:$0xf] %v38
            %v40 = vld [vmem:[%s28 + $0x28] sm:$0xf]
            %41 = vst [vmem:[%s29 + $0x14] sm:$0xf] %v40
            %v42 = vld [vmem:[%s28 + $0x30] sm:$0xf]
            %43 = vst [vmem:[%s29 + $0x18] sm:$0xf] %v42
            %v44 = vld [vmem:[%s28 + $0x38] sm:$0xf]
            %45 = vst [vmem:[%s29 + $0x1c] sm:$0xf] %v44
            %v46 = vld [vmem:[%s28 + $0x40] sm:$0xf]
            %47 = vst [vmem:[%s29 + $0x20] sm:$0xf] %v46
            %v48 = vld [vmem:[%s28 + $0x48] sm:$0xf]
            %49 = vst [vmem:[%s29 + $0x24] sm:$0xf] %v48
            %v50 = vld [vmem:[%s28 + $0x50] sm:$0xf]
            %51 = vst [vmem:[%s29 + $0x28] sm:$0xf] %v50
            %v52 = vld [vmem:[%s28 + $0x58] sm:$0xf]
            %53 = vst [vmem:[%s29 + $0x2c] sm:$0xf] %v52
            %v54 = vld [vmem:[%s28 + $0x60] sm:$0xf]
            %55 = vst [vmem:[%s29 + $0x30] sm:$0xf] %v54
            %v56 = vld [vmem:[%s28 + $0x68] sm:$0xf]
            %57 = vst [vmem:[%s29 + $0x34] sm:$0xf] %v56
            %v58 = vld [vmem:[%s28 + $0x70] sm:$0xf]
            %59 = vst [vmem:[%s29 + $0x38] sm:$0xf] %v58
            %v60 = vld [vmem:[%s28 + $0x78] sm:$0xf]
            %61 = vst [vmem:[%s29 + $0x3c] sm:$0xf] %v60
            %v62 = vld [vmem:[%s28 + $0x80] sm:$0xf]
            %63 = vst [vmem:[%s29 + $0x40] sm:$0xf] %v62
            %v64 = vld [vmem:[%s28 + $0x88] sm:$0xf]
            %65 = vst [vmem:[%s29 + $0x44] sm:$0xf] %v64
            %v66 = vld [vmem:[%s28 + $0x90] sm:$0xf]
            %67 = vst [vmem:[%s29 + $0x48] sm:$0xf] %v66
            %v68 = vld [vmem:[%s28 + $0x98] sm:$0xf]
            %69 = vst [vmem:[%s29 + $0x4c] sm:$0xf] %v68
            %v70 = vld [vmem:[%s28 + $0xa0] sm:$0xf]
            %71 = vst [vmem:[%s29 + $0x50] sm:$0xf] %v70
            %v72 = vld [vmem:[%s28 + $0xa8] sm:$0xf]
            %73 = vst [vmem:[%s29 + $0x54] sm:$0xf] %v72
            %v74 = vld [vmem:[%s28 + $0xb0] sm:$0xf]
            %75 = vst [vmem:[%s29 + $0x58] sm:$0xf] %v74
            %v76 = vld [vmem:[%s28 + $0xb8] sm:$0xf]
            %77 = vst [vmem:[%s29 + $0x5c] sm:$0xf] %v76
            %v78 = vld [vmem:[%s28 + $0xc0] sm:$0xf]
            %79 = vst [vmem:[%s29 + $0x60] sm:$0xf] %v78
            %v80 = vld [vmem:[%s28 + $0xc8] sm:$0xf]
            %81 = vst [vmem:[%s29 + $0x64] sm:$0xf] %v80
            %v82 = vld [vmem:[%s28 + $0xd0] sm:$0xf]
            %83 = vst [vmem:[%s29 + $0x68] sm:$0xf] %v82
            %v84 = vld [vmem:[%s28 + $0xd8] sm:$0xf]
            %85 = vst [vmem:[%s29 + $0x6c] sm:$0xf] %v84
            %v86 = vld [vmem:[%s28 + $0xe0] sm:$0xf]
            %87 = vst [vmem:[%s29 + $0x70] sm:$0xf] %v86
            %v88 = vld [vmem:[%s28 + $0xe8] sm:$0xf]
            %89 = vst [vmem:[%s29 + $0x74] sm:$0xf] %v88
            %v90 = vld [vmem:[%s28 + $0xf0] sm:$0xf]
            %91 = vst [vmem:[%s29 + $0x78] sm:$0xf] %v90
            %v92 = vld [vmem:[%s28 + $0xf8] sm:$0xf]
            %93 = vst [vmem:[%s29 + $0x7c] sm:$0xf] %v92
          $region26: #{digae_forward.10} parent=20 // loop_footer
            %s27 = sadd.s32 1, %s23
          $region27: #{digae_forward.10} parent=20 // loop_footer_branch
            %22 = sbr.rel target = $region23
          $region28: #{digae_forward.10} parent=20 // loop_exit
            _
        $region21: #{digae_forward.10} parent=12 // pred_fallthru
          _
      $region13: #{digae_forward.10} parent=8 // pred_fallthru
        _
      %177 = vnop
    $region9: #{digae_forward.10} parent=1 // pred_fallthru
      _
    // Predicated region
    $region47: #{digae_forward.10} parent=1 // pred_check
      _
    $region48: #{digae_forward.10} parent=1 // pred_check_branch
      %179 = sbr.rel (0) target = $region50
    $region49: #{digae_forward.10} parent=1 // pred_region
      _
    $region50: #{digae_forward.10} parent=1 // pred_fallthru
      _
    // Predicated region
    $region51: #{digae_forward.10} parent=1 // pred_check
      _
    $region52: #{digae_forward.10} parent=1 // pred_check_branch
      %181 = sbr.rel (0) target = $region54
    $region53: #{digae_forward.10} parent=1 // pred_region
      _
    $region54: #{digae_forward.10} parent=1 // pred_fallthru
      _
    %p183 = scmp.eq.s32.totalorder 0, 0
    // Predicated region
    $region55: #{digae_forward.10} parent=1 // pred_check
      %p184 = pneg %p183
    $region56: #{digae_forward.10} parent=1 // pred_check_branch
      %186 = sbr.rel (%p184) target = $region58
    $region57: #{digae_forward.10} parent=1 // pred_region
      %187 = vst [vmem:[#allocation2] sm:$0xff] 0.0
      %188 = vst [vmem:[#allocation2 + $0x8] sm:$0xff] 0.0
      %189 = vst [vmem:[#allocation2 + $0x10] sm:$0xff] 0.0
      %190 = vst [vmem:[#allocation2 + $0x18] sm:$0xff] 0.0
      %191 = vst [vmem:[#allocation2 + $0x20] sm:$0xff] 0.0
      %192 = vst [vmem:[#allocation2 + $0x28] sm:$0xff] 0.0
      %193 = vst [vmem:[#allocation2 + $0x30] sm:$0xff] 0.0
      %194 = vst [vmem:[#allocation2 + $0x38] sm:$0xff] 0.0
      %195 = vst [vmem:[#allocation2 + $0x40] sm:$0xff] 0.0
      %196 = vst [vmem:[#allocation2 + $0x48] sm:$0xff] 0.0
      %197 = vst [vmem:[#allocation2 + $0x50] sm:$0xff] 0.0
      %198 = vst [vmem:[#allocation2 + $0x58] sm:$0xff] 0.0
      %199 = vst [vmem:[#allocation2 + $0x60] sm:$0xff] 0.0
      %200 = vst [vmem:[#allocation2 + $0x68] sm:$0xff] 0.0
      %201 = vst [vmem:[#allocation2 + $0x70] sm:$0xff] 0.0
      %202 = vst [vmem:[#allocation2 + $0x78] sm:$0xff] 0.0
      %203 = vst [vmem:[#allocation2 + $0x80] sm:$0xff] 0.0
      %204 = vst [vmem:[#allocation2 + $0x88] sm:$0xff] 0.0
      %205 = vst [vmem:[#allocation2 + $0x90] sm:$0xff] 0.0
      %206 = vst [vmem:[#allocation2 + $0x98] sm:$0xff] 0.0
      %207 = vst [vmem:[#allocation2 + $0xa0] sm:$0xff] 0.0
      %208 = vst [vmem:[#allocation2 + $0xa8] sm:$0xff] 0.0
      %209 = vst [vmem:[#allocation2 + $0xb0] sm:$0xff] 0.0
      %210 = vst [vmem:[#allocation2 + $0xb8] sm:$0xff] 0.0
      %211 = vst [vmem:[#allocation2 + $0xc0] sm:$0xff] 0.0
      %212 = vst [vmem:[#allocation2 + $0xc8] sm:$0xff] 0.0
      %213 = vst [vmem:[#allocation2 + $0xd0] sm:$0xff] 0.0
      %214 = vst [vmem:[#allocation2 + $0xd8] sm:$0xff] 0.0
      %215 = vst [vmem:[#allocation2 + $0xe0] sm:$0xff] 0.0
      %216 = vst [vmem:[#allocation2 + $0xe8] sm:$0xff] 0.0
      %217 = vst [vmem:[#allocation2 + $0xf0] sm:$0xff] 0.0
      %218 = vst [vmem:[#allocation2 + $0xf8] sm:$0xff] 0.0
      %219 = vst [vmem:[#allocation3] sm:$0xff] 0.0
      %220 = vst [vmem:[#allocation3 + $0x8] sm:$0xff] 0.0
      %221 = vst [vmem:[#allocation3 + $0x10] sm:$0xff] 0.0
      %222 = vst [vmem:[#allocation3 + $0x18] sm:$0xff] 0.0
      %223 = vst [vmem:[#allocation3 + $0x20] sm:$0xff] 0.0
      %224 = vst [vmem:[#allocation3 + $0x28] sm:$0xff] 0.0
      %225 = vst [vmem:[#allocation3 + $0x30] sm:$0xff] 0.0
      %226 = vst [vmem:[#allocation3 + $0x38] sm:$0xff] 0.0
      %227 = vst [vmem:[#allocation3 + $0x40] sm:$0xff] 0.0
      %228 = vst [vmem:[#allocation3 + $0x48] sm:$0xff] 0.0
      %229 = vst [vmem:[#allocation3 + $0x50] sm:$0xff] 0.0
      %230 = vst [vmem:[#allocation3 + $0x58] sm:$0xff] 0.0
      %231 = vst [vmem:[#allocation3 + $0x60] sm:$0xff] 0.0
      %232 = vst [vmem:[#allocation3 + $0x68] sm:$0xff] 0.0
      %233 = vst [vmem:[#allocation3 + $0x70] sm:$0xff] 0.0
      %234 = vst [vmem:[#allocation3 + $0x78] sm:$0xff] 0.0
      %235 = vst [vmem:[#allocation3 + $0x80] sm:$0xff] 0.0
      %236 = vst [vmem:[#allocation3 + $0x88] sm:$0xff] 0.0
      %237 = vst [vmem:[#allocation3 + $0x90] sm:$0xff] 0.0
      %238 = vst [vmem:[#allocation3 + $0x98] sm:$0xff] 0.0
      %239 = vst [vmem:[#allocation3 + $0xa0] sm:$0xff] 0.0
      %240 = vst [vmem:[#allocation3 + $0xa8] sm:$0xff] 0.0
      %241 = vst [vmem:[#allocation3 + $0xb0] sm:$0xff] 0.0
      %242 = vst [vmem:[#allocation3 + $0xb8] sm:$0xff] 0.0
      %243 = vst [vmem:[#allocation3 + $0xc0] sm:$0xff] 0.0
      %244 = vst [vmem:[#allocation3 + $0xc8] sm:$0xff] 0.0
      %245 = vst [vmem:[#allocation3 + $0xd0] sm:$0xff] 0.0
      %246 = vst [vmem:[#allocation3 + $0xd8] sm:$0xff] 0.0
      %247 = vst [vmem:[#allocation3 + $0xe0] sm:$0xff] 0.0
      %248 = vst [vmem:[#allocation3 + $0xe8] sm:$0xff] 0.0
      %249 = vst [vmem:[#allocation3 + $0xf0] sm:$0xff] 0.0
      %250 = vst [vmem:[#allocation3 + $0xf8] sm:$0xff] 0.0
    $region58: #{digae_forward.10} parent=1 // pred_fallthru
      _
    %v251 = vld [vmem:[%s0] sm:$0xff]
    %v252 = vld [vmem:[%s0 + $0x8] sm:$0xff]
    %v253 = vld [vmem:[%s0 + $0x10] sm:$0xff]
    %v254 = vld [vmem:[%s0 + $0x18] sm:$0xff]
    %v255 = vld [vmem:[%s0 + $0x20] sm:$0xff]
    %v256 = vld [vmem:[%s0 + $0x28] sm:$0xff]
    %v257 = vld [vmem:[%s0 + $0x30] sm:$0xff]
    %v258 = vld [vmem:[%s0 + $0x38] sm:$0xff]
    %v259 = vld [vmem:[%s0 + $0x40] sm:$0xff]
    %v260 = vld [vmem:[%s0 + $0x48] sm:$0xff]
    %v261 = vld [vmem:[%s0 + $0x50] sm:$0xff]
    %v262 = vld [vmem:[%s0 + $0x58] sm:$0xff]
    %v263 = vld [vmem:[%s0 + $0x60] sm:$0xff]
    %v264 = vld [vmem:[%s0 + $0x68] sm:$0xff]
    %v265 = vld [vmem:[%s0 + $0x70] sm:$0xff]
    %v266 = vld [vmem:[%s0 + $0x78] sm:$0xff]
    %v267 = vld [vmem:[%s0 + $0x80] sm:$0xff]
    %v268 = vld [vmem:[%s0 + $0x88] sm:$0xff]
    %v269 = vld [vmem:[%s0 + $0x90] sm:$0xff]
    %v270 = vld [vmem:[%s0 + $0x98] sm:$0xff]
    %v271 = vld [vmem:[%s0 + $0xa0] sm:$0xff]
    %v272 = vld [vmem:[%s0 + $0xa8] sm:$0xff]
    %v273 = vld [vmem:[%s0 + $0xb0] sm:$0xff]
    %v274 = vld [vmem:[%s0 + $0xb8] sm:$0xff]
    %v275 = vld [vmem:[%s0 + $0xc0] sm:$0xff]
    %v276 = vld [vmem:[%s0 + $0xc8] sm:$0xff]
    %v277 = vld [vmem:[%s0 + $0xd0] sm:$0xff]
    %v278 = vld [vmem:[%s0 + $0xd8] sm:$0xff]
    %v279 = vld [vmem:[%s0 + $0xe0] sm:$0xff]
    %v280 = vld [vmem:[%s0 + $0xe8] sm:$0xff]
    %v281 = vld [vmem:[%s0 + $0xf0] sm:$0xff]
    %v282 = vld [vmem:[%s0 + $0xf8] sm:$0xff]
    %s283 = smul.u32 0, 256
    %s284 = sshra.s32 %s283, 3
    %s285 = sand.u32 %s283, 7
    %s286 = smul.addr %s284, 4
    %s287 = scalar_lea.vmem [#allocation4], %s286
    %v288 = vld [vmem:[%s287] sm:$0xf]
    %v289 = vld [vmem:[%s287 + $0x4] sm:$0xf]
    %v290 = vld [vmem:[%s287 + $0x8] sm:$0xf]
    %v291 = vld [vmem:[%s287 + $0xc] sm:$0xf]
    %v292 = vld [vmem:[%s287 + $0x10] sm:$0xf]
    %v293 = vld [vmem:[%s287 + $0x14] sm:$0xf]
    %v294 = vld [vmem:[%s287 + $0x18] sm:$0xf]
    %v295 = vld [vmem:[%s287 + $0x1c] sm:$0xf]
    %v296 = vld [vmem:[%s287 + $0x20] sm:$0xf]
    %v297 = vld [vmem:[%s287 + $0x24] sm:$0xf]
    %v298 = vld [vmem:[%s287 + $0x28] sm:$0xf]
    %v299 = vld [vmem:[%s287 + $0x2c] sm:$0xf]
    %v300 = vld [vmem:[%s287 + $0x30] sm:$0xf]
    %v301 = vld [vmem:[%s287 + $0x34] sm:$0xf]
    %v302 = vld [vmem:[%s287 + $0x38] sm:$0xf]
    %v303 = vld [vmem:[%s287 + $0x3c] sm:$0xf]
    %v304 = vld [vmem:[%s287 + $0x40] sm:$0xf]
    %v305 = vld [vmem:[%s287 + $0x44] sm:$0xf]
    %v306 = vld [vmem:[%s287 + $0x48] sm:$0xf]
    %v307 = vld [vmem:[%s287 + $0x4c] sm:$0xf]
    %v308 = vld [vmem:[%s287 + $0x50] sm:$0xf]
    %v309 = vld [vmem:[%s287 + $0x54] sm:$0xf]
    %v310 = vld [vmem:[%s287 + $0x58] sm:$0xf]
    %v311 = vld [vmem:[%s287 + $0x5c] sm:$0xf]
    %v312 = vld [vmem:[%s287 + $0x60] sm:$0xf]
    %v313 = vld [vmem:[%s287 + $0x64] sm:$0xf]
    %v314 = vld [vmem:[%s287 + $0x68] sm:$0xf]
    %v315 = vld [vmem:[%s287 + $0x6c] sm:$0xf]
    %v316 = vld [vmem:[%s287 + $0x70] sm:$0xf]
    %v317 = vld [vmem:[%s287 + $0x74] sm:$0xf]
    %v318 = vld [vmem:[%s287 + $0x78] sm:$0xf]
    %v319 = vld [vmem:[%s287 + $0x7c] sm:$0xf]
    %s320 = smul.addr %s284, 4
    %s321 = scalar_lea.vmem %s2, %s320
    %v322 = vld [vmem:[%s321] sm:$0xf]
    %v323 = vld [vmem:[%s321 + $0x4] sm:$0xf]
    %v324 = vld [vmem:[%s321 + $0x8] sm:$0xf]
    %v325 = vld [vmem:[%s321 + $0xc] sm:$0xf]
    %v326 = vld [vmem:[%s321 + $0x10] sm:$0xf]
    %v327 = vld [vmem:[%s321 + $0x14] sm:$0xf]
    %v328 = vld [vmem:[%s321 + $0x18] sm:$0xf]
    %v329 = vld [vmem:[%s321 + $0x1c] sm:$0xf]
    %v330 = vld [vmem:[%s321 + $0x20] sm:$0xf]
    %v331 = vld [vmem:[%s321 + $0x24] sm:$0xf]
    %v332 = vld [vmem:[%s321 + $0x28] sm:$0xf]
    %v333 = vld [vmem:[%s321 + $0x2c] sm:$0xf]
    %v334 = vld [vmem:[%s321 + $0x30] sm:$0xf]
    %v335 = vld [vmem:[%s321 + $0x34] sm:$0xf]
    %v336 = vld [vmem:[%s321 + $0x38] sm:$0xf]
    %v337 = vld [vmem:[%s321 + $0x3c] sm:$0xf]
    %v338 = vld [vmem:[%s321 + $0x40] sm:$0xf]
    %v339 = vld [vmem:[%s321 + $0x44] sm:$0xf]
    %v340 = vld [vmem:[%s321 + $0x48] sm:$0xf]
    %v341 = vld [vmem:[%s321 + $0x4c] sm:$0xf]
    %v342 = vld [vmem:[%s321 + $0x50] sm:$0xf]
    %v343 = vld [vmem:[%s321 + $0x54] sm:$0xf]
    %v344 = vld [vmem:[%s321 + $0x58] sm:$0xf]
    %v345 = vld [vmem:[%s321 + $0x5c] sm:$0xf]
    %v346 = vld [vmem:[%s321 + $0x60] sm:$0xf]
    %v347 = vld [vmem:[%s321 + $0x64] sm:$0xf]
    %v348 = vld [vmem:[%s321 + $0x68] sm:$0xf]
    %v349 = vld [vmem:[%s321 + $0x6c] sm:$0xf]
    %v350 = vld [vmem:[%s321 + $0x70] sm:$0xf]
    %v351 = vld [vmem:[%s321 + $0x74] sm:$0xf]
    %v352 = vld [vmem:[%s321 + $0x78] sm:$0xf]
    %v353 = vld [vmem:[%s321 + $0x7c] sm:$0xf]
    %v354 = vld [vmem:[#allocation2] sm:$0xff]
    %v355 = vld [vmem:[#allocation2 + $0x8] sm:$0xff]
    %v356 = vld [vmem:[#allocation2 + $0x10] sm:$0xff]
    %v357 = vld [vmem:[#allocation2 + $0x18] sm:$0xff]
    %v358 = vld [vmem:[#allocation2 + $0x20] sm:$0xff]
    %v359 = vld [vmem:[#allocation2 + $0x28] sm:$0xff]
    %v360 = vld [vmem:[#allocation2 + $0x30] sm:$0xff]
    %v361 = vld [vmem:[#allocation2 + $0x38] sm:$0xff]
    %v362 = vld [vmem:[#allocation2 + $0x40] sm:$0xff]
    %v363 = vld [vmem:[#allocation2 + $0x48] sm:$0xff]
    %v364 = vld [vmem:[#allocation2 + $0x50] sm:$0xff]
    %v365 = vld [vmem:[#allocation2 + $0x58] sm:$0xff]
    %v366 = vld [vmem:[#allocation2 + $0x60] sm:$0xff]
    %v367 = vld [vmem:[#allocation2 + $0x68] sm:$0xff]
    %v368 = vld [vmem:[#allocation2 + $0x70] sm:$0xff]
    %v369 = vld [vmem:[#allocation2 + $0x78] sm:$0xff]
    %v370 = vld [vmem:[#allocation2 + $0x80] sm:$0xff]
    %v371 = vld [vmem:[#allocation2 + $0x88] sm:$0xff]
    %v372 = vld [vmem:[#allocation2 + $0x90] sm:$0xff]
    %v373 = vld [vmem:[#allocation2 + $0x98] sm:$0xff]
    %v374 = vld [vmem:[#allocation2 + $0xa0] sm:$0xff]
    %v375 = vld [vmem:[#allocation2 + $0xa8] sm:$0xff]
    %v376 = vld [vmem:[#allocation2 + $0xb0] sm:$0xff]
    %v377 = vld [vmem:[#allocation2 + $0xb8] sm:$0xff]
    %v378 = vld [vmem:[#allocation2 + $0xc0] sm:$0xff]
    %v379 = vld [vmem:[#allocation2 + $0xc8] sm:$0xff]
    %v380 = vld [vmem:[#allocation2 + $0xd0] sm:$0xff]
    %v381 = vld [vmem:[#allocation2 + $0xd8] sm:$0xff]
    %v382 = vld [vmem:[#allocation2 + $0xe0] sm:$0xff]
    %v383 = vld [vmem:[#allocation2 + $0xe8] sm:$0xff]
    %v384 = vld [vmem:[#allocation2 + $0xf0] sm:$0xff]
    %v385 = vld [vmem:[#allocation2 + $0xf8] sm:$0xff]
    %v418 = vunpack.c.l.b16 %v251
    %v419 = vunpack.c.h.b16 %v251
    %v420 = vunpack.c.l.b16 %v252
    %v421 = vunpack.c.h.b16 %v252
    %v422 = vunpack.c.l.b16 %v253
    %v423 = vunpack.c.h.b16 %v253
    %v424 = vunpack.c.l.b16 %v254
    %v425 = vunpack.c.h.b16 %v254
    %v426 = vunpack.c.l.b16 %v255
    %v427 = vunpack.c.h.b16 %v255
    %v428 = vunpack.c.l.b16 %v256
    %v429 = vunpack.c.h.b16 %v256
    %v430 = vunpack.c.l.b16 %v257
    %v431 = vunpack.c.h.b16 %v257
    %v432 = vunpack.c.l.b16 %v258
    %v433 = vunpack.c.h.b16 %v258
    %v434 = vunpack.c.l.b16 %v259
    %v435 = vunpack.c.h.b16 %v259
    %v436 = vunpack.c.l.b16 %v260
    %v437 = vunpack.c.h.b16 %v260
    %v438 = vunpack.c.l.b16 %v261
    %v439 = vunpack.c.h.b16 %v261
    %v440 = vunpack.c.l.b16 %v262
    %v441 = vunpack.c.h.b16 %v262
    %v442 = vunpack.c.l.b16 %v263
    %v443 = vunpack.c.h.b16 %v263
    %v444 = vunpack.c.l.b16 %v264
    %v445 = vunpack.c.h.b16 %v264
    %v446 = vunpack.c.l.b16 %v265
    %v447 = vunpack.c.h.b16 %v265
    %v448 = vunpack.c.l.b16 %v266
    %v449 = vunpack.c.h.b16 %v266
    %v450 = vunpack.c.l.b16 %v267
    %v451 = vunpack.c.h.b16 %v267
    %v452 = vunpack.c.l.b16 %v268
    %v453 = vunpack.c.h.b16 %v268
    %v454 = vunpack.c.l.b16 %v269
    %v455 = vunpack.c.h.b16 %v269
    %v456 = vunpack.c.l.b16 %v270
    %v457 = vunpack.c.h.b16 %v270
    %v458 = vunpack.c.l.b16 %v271
    %v459 = vunpack.c.h.b16 %v271
    %v460 = vunpack.c.l.b16 %v272
    %v461 = vunpack.c.h.b16 %v272
    %v462 = vunpack.c.l.b16 %v273
    %v463 = vunpack.c.h.b16 %v273
    %v464 = vunpack.c.l.b16 %v274
    %v465 = vunpack.c.h.b16 %v274
    %v466 = vunpack.c.l.b16 %v275
    %v467 = vunpack.c.h.b16 %v275
    %v468 = vunpack.c.l.b16 %v276
    %v469 = vunpack.c.h.b16 %v276
    %v470 = vunpack.c.l.b16 %v277
    %v471 = vunpack.c.h.b16 %v277
    %v472 = vunpack.c.l.b16 %v278
    %v473 = vunpack.c.h.b16 %v278
    %v474 = vunpack.c.l.b16 %v279
    %v475 = vunpack.c.h.b16 %v279
    %v476 = vunpack.c.l.b16 %v280
    %v477 = vunpack.c.h.b16 %v280
    %v478 = vunpack.c.l.b16 %v281
    %v479 = vunpack.c.h.b16 %v281
    %v480 = vunpack.c.l.b16 %v282
    %v481 = vunpack.c.h.b16 %v282
    %v482 = vpack.c.b16 %v420, %v418
    %v483 = vpack.c.b16 %v421, %v419
    %v484 = vpack.c.b16 %v424, %v422
    %v485 = vpack.c.b16 %v425, %v423
    %v486 = vpack.c.b16 %v428, %v426
    %v487 = vpack.c.b16 %v429, %v427
    %v488 = vpack.c.b16 %v432, %v430
    %v489 = vpack.c.b16 %v433, %v431
    %v490 = vpack.c.b16 %v436, %v434
    %v491 = vpack.c.b16 %v437, %v435
    %v492 = vpack.c.b16 %v440, %v438
    %v493 = vpack.c.b16 %v441, %v439
    %v494 = vpack.c.b16 %v444, %v442
    %v495 = vpack.c.b16 %v445, %v443
    %v496 = vpack.c.b16 %v448, %v446
    %v497 = vpack.c.b16 %v449, %v447
    %v498 = vpack.c.b16 %v452, %v450
    %v499 = vpack.c.b16 %v453, %v451
    %v500 = vpack.c.b16 %v456, %v454
    %v501 = vpack.c.b16 %v457, %v455
    %v502 = vpack.c.b16 %v460, %v458
    %v503 = vpack.c.b16 %v461, %v459
    %v504 = vpack.c.b16 %v464, %v462
    %v505 = vpack.c.b16 %v465, %v463
    %v506 = vpack.c.b16 %v468, %v466
    %v507 = vpack.c.b16 %v469, %v467
    %v508 = vpack.c.b16 %v472, %v470
    %v509 = vpack.c.b16 %v473, %v471
    %v510 = vpack.c.b16 %v476, %v474
    %v511 = vpack.c.b16 %v477, %v475
    %v512 = vpack.c.b16 %v480, %v478
    %v513 = vpack.c.b16 %v481, %v479
    %v578 = vunpack.c.l.b16 %v288
    %v579 = vunpack.c.l.b16 %v289
    %v580 = vunpack.c.l.b16 %v290
    %v581 = vunpack.c.l.b16 %v291
    %v582 = vunpack.c.l.b16 %v292
    %v583 = vunpack.c.l.b16 %v293
    %v584 = vunpack.c.l.b16 %v294
    %v585 = vunpack.c.l.b16 %v295
    %v586 = vunpack.c.l.b16 %v296
    %v587 = vunpack.c.l.b16 %v297
    %v588 = vunpack.c.l.b16 %v298
    %v589 = vunpack.c.l.b16 %v299
    %v590 = vunpack.c.l.b16 %v300
    %v591 = vunpack.c.l.b16 %v301
    %v592 = vunpack.c.l.b16 %v302
    %v593 = vunpack.c.l.b16 %v303
    %v594 = vunpack.c.l.b16 %v304
    %v595 = vunpack.c.l.b16 %v305
    %v596 = vunpack.c.l.b16 %v306
    %v597 = vunpack.c.l.b16 %v307
    %v598 = vunpack.c.l.b16 %v308
    %v599 = vunpack.c.l.b16 %v309
    %v600 = vunpack.c.l.b16 %v310
    %v601 = vunpack.c.l.b16 %v311
    %v602 = vunpack.c.l.b16 %v312
    %v603 = vunpack.c.l.b16 %v313
    %v604 = vunpack.c.l.b16 %v314
    %v605 = vunpack.c.l.b16 %v315
    %v606 = vunpack.c.l.b16 %v316
    %v607 = vunpack.c.l.b16 %v317
    %v608 = vunpack.c.l.b16 %v318
    %v609 = vunpack.c.l.b16 %v319
    %v610 = vpack.c.b16 %v579, %v578
    %v611 = vpack.c.b16 %v581, %v580
    %v612 = vpack.c.b16 %v583, %v582
    %v613 = vpack.c.b16 %v585, %v584
    %v614 = vpack.c.b16 %v587, %v586
    %v615 = vpack.c.b16 %v589, %v588
    %v616 = vpack.c.b16 %v591, %v590
    %v617 = vpack.c.b16 %v593, %v592
    %v618 = vpack.c.b16 %v595, %v594
    %v619 = vpack.c.b16 %v597, %v596
    %v620 = vpack.c.b16 %v599, %v598
    %v621 = vpack.c.b16 %v601, %v600
    %v622 = vpack.c.b16 %v603, %v602
    %v623 = vpack.c.b16 %v605, %v604
    %v624 = vpack.c.b16 %v607, %v606
    %v625 = vpack.c.b16 %v609, %v608
    %642 = vmatprep.subr.bf16.mxu0 0
    %643 = vmatpush1.bf16.msra.mxu0 %v610
    %644 = vmatprep.subr.bf16.mxu0 0
    %645 = vmatpush1.bf16.msra.mxu0 %v611
    %646 = vmatprep.subr.bf16.mxu0 0
    %647 = vmatpush1.bf16.msra.mxu0 %v612
    %648 = vmatprep.subr.bf16.mxu0 0
    %649 = vmatpush1.bf16.msra.mxu0 %v613
    %650 = vmatprep.subr.bf16.mxu0 0
    %651 = vmatpush1.bf16.msra.mxu0 %v614
    %652 = vmatprep.subr.bf16.mxu0 0
    %653 = vmatpush1.bf16.msra.mxu0 %v615
    %654 = vmatprep.subr.bf16.mxu0 0
    %655 = vmatpush1.bf16.msra.mxu0 %v616
    %656 = vmatprep.subr.bf16.mxu0 0
    %657 = vmatpush1.bf16.msra.mxu0 %v617
    %658 = vmatprep.subr.bf16.mxu0 0
    %659 = vmatpush1.bf16.msra.mxu0 %v618
    %660 = vmatprep.subr.bf16.mxu0 0
    %661 = vmatpush1.bf16.msra.mxu0 %v619
    %662 = vmatprep.subr.bf16.mxu0 0
    %663 = vmatpush1.bf16.msra.mxu0 %v620
    %664 = vmatprep.subr.bf16.mxu0 0
    %665 = vmatpush1.bf16.msra.mxu0 %v621
    %666 = vmatprep.subr.bf16.mxu0 0
    %667 = vmatpush1.bf16.msra.mxu0 %v622
    %668 = vmatprep.subr.bf16.mxu0 0
    %669 = vmatpush1.bf16.msra.mxu0 %v623
    %670 = vmatprep.subr.bf16.mxu0 0
    %671 = vmatpush1.bf16.msra.mxu0 %v624
    %672 = vmatprep.subr.bf16.mxu0 0
    %673 = vmatpush1.bf16.msra.mxu0 %v625
    %674 = vmatprep.mubr.bf16.mxu0 %v483
    %675 = vmatmul.mubr.bf16.gmra.mrb[0].mxu0 %v482
    %v676 = vpop.f32.mrb[0].mxu0
    %v677 = vadd.f32 0.0, %v676
    %v678 = vpop.f32.mrb[0].mxu0
    %v679 = vpop.f32.mrb[0].mxu0
    %v680 = vadd.f32 0.0, %v679
    %v681 = vpop.f32.mrb[0].mxu0
    %682 = vmatprep.mubr.bf16.mxu0 %v485
    %683 = vmatmul.mubr.bf16.gmra.mrb[0].mxu0 %v484
    %v684 = vpop.f32.mrb[0].mxu0
    %v685 = vadd.f32 0.0, %v684
    %v686 = vpop.f32.mrb[0].mxu0
    %v687 = vpop.f32.mrb[0].mxu0
    %v688 = vadd.f32 0.0, %v687
    %v689 = vpop.f32.mrb[0].mxu0
    %690 = vmatprep.mubr.bf16.mxu0 %v487
    %691 = vmatmul.mubr.bf16.gmra.mrb[0].mxu0 %v486
    %v692 = vpop.f32.mrb[0].mxu0
    %v693 = vadd.f32 0.0, %v692
    %v694 = vpop.f32.mrb[0].mxu0
    %v695 = vpop.f32.mrb[0].mxu0
    %v696 = vadd.f32 0.0, %v695
    %v697 = vpop.f32.mrb[0].mxu0
    %698 = vmatprep.mubr.bf16.mxu0 %v489
    %699 = vmatmul.mubr.bf16.gmra.mrb[0].mxu0 %v488
    %v700 = vpop.f32.mrb[0].mxu0
    %v701 = vadd.f32 0.0, %v700
    %v702 = vpop.f32.mrb[0].mxu0
    %v703 = vpop.f32.mrb[0].mxu0
    %v704 = vadd.f32 0.0, %v703
    %v705 = vpop.f32.mrb[0].mxu0
    %706 = vmatprep.mubr.bf16.mxu0 %v491
    %707 = vmatmul.mubr.bf16.gmra.mrb[0].mxu0 %v490
    %v708 = vpop.f32.mrb[0].mxu0
    %v709 = vadd.f32 0.0, %v708
    %v710 = vpop.f32.mrb[0].mxu0
    %v711 = vpop.f32.mrb[0].mxu0
    %v712 = vadd.f32 0.0, %v711
    %v713 = vpop.f32.mrb[0].mxu0
    %714 = vmatprep.mubr.bf16.mxu0 %v493
    %715 = vmatmul.mubr.bf16.gmra.mrb[0].mxu0 %v492
    %v716 = vpop.f32.mrb[0].mxu0
    %v717 = vadd.f32 0.0, %v716
    %v718 = vpop.f32.mrb[0].mxu0
    %v719 = vpop.f32.mrb[0].mxu0
    %v720 = vadd.f32 0.0, %v719
    %v721 = vpop.f32.mrb[0].mxu0
    %722 = vmatprep.mubr.bf16.mxu0 %v495
    %723 = vmatmul.mubr.bf16.gmra.mrb[0].mxu0 %v494
    %v724 = vpop.f32.mrb[0].mxu0
    %v725 = vadd.f32 0.0, %v724
    %v726 = vpop.f32.mrb[0].mxu0
    %v727 = vpop.f32.mrb[0].mxu0
    %v728 = vadd.f32 0.0, %v727
    %v729 = vpop.f32.mrb[0].mxu0
    %730 = vmatprep.mubr.bf16.mxu0 %v497
    %731 = vmatmul.mubr.bf16.gmra.mrb[0].mxu0 %v496
    %v732 = vpop.f32.mrb[0].mxu0
    %v733 = vadd.f32 0.0, %v732
    %v734 = vpop.f32.mrb[0].mxu0
    %v735 = vpop.f32.mrb[0].mxu0
    %v736 = vadd.f32 0.0, %v735
    %v737 = vpop.f32.mrb[0].mxu0
    %738 = vmatprep.mubr.bf16.mxu0 %v499
    %739 = vmatmul.mubr.bf16.gmra.mrb[0].mxu0 %v498
    %v740 = vpop.f32.mrb[0].mxu0
    %v741 = vadd.f32 0.0, %v740
    %v742 = vpop.f32.mrb[0].mxu0
    %v743 = vpop.f32.mrb[0].mxu0
    %v744 = vadd.f32 0.0, %v743
    %v745 = vpop.f32.mrb[0].mxu0
    %746 = vmatprep.mubr.bf16.mxu0 %v501
    %747 = vmatmul.mubr.bf16.gmra.mrb[0].mxu0 %v500
    %v748 = vpop.f32.mrb[0].mxu0
    %v749 = vadd.f32 0.0, %v748
    %v750 = vpop.f32.mrb[0].mxu0
    %v751 = vpop.f32.mrb[0].mxu0
    %v752 = vadd.f32 0.0, %v751
    %v753 = vpop.f32.mrb[0].mxu0
    %754 = vmatprep.mubr.bf16.mxu0 %v503
    %755 = vmatmul.mubr.bf16.gmra.mrb[0].mxu0 %v502
    %v756 = vpop.f32.mrb[0].mxu0
    %v757 = vadd.f32 0.0, %v756
    %v758 = vpop.f32.mrb[0].mxu0
    %v759 = vpop.f32.mrb[0].mxu0
    %v760 = vadd.f32 0.0, %v759
    %v761 = vpop.f32.mrb[0].mxu0
    %762 = vmatprep.mubr.bf16.mxu0 %v505
    %763 = vmatmul.mubr.bf16.gmra.mrb[0].mxu0 %v504
    %v764 = vpop.f32.mrb[0].mxu0
    %v765 = vadd.f32 0.0, %v764
    %v766 = vpop.f32.mrb[0].mxu0
    %v767 = vpop.f32.mrb[0].mxu0
    %v768 = vadd.f32 0.0, %v767
    %v769 = vpop.f32.mrb[0].mxu0
    %770 = vmatprep.mubr.bf16.mxu0 %v507
    %771 = vmatmul.mubr.bf16.gmra.mrb[0].mxu0 %v506
    %v772 = vpop.f32.mrb[0].mxu0
    %v773 = vadd.f32 0.0, %v772
    %v774 = vpop.f32.mrb[0].mxu0
    %v775 = vpop.f32.mrb[0].mxu0
    %v776 = vadd.f32 0.0, %v775
    %v777 = vpop.f32.mrb[0].mxu0
    %778 = vmatprep.mubr.bf16.mxu0 %v509
    %779 = vmatmul.mubr.bf16.gmra.mrb[0].mxu0 %v508
    %v780 = vpop.f32.mrb[0].mxu0
    %v781 = vadd.f32 0.0, %v780
    %v782 = vpop.f32.mrb[0].mxu0
    %v783 = vpop.f32.mrb[0].mxu0
    %v784 = vadd.f32 0.0, %v783
    %v785 = vpop.f32.mrb[0].mxu0
    %786 = vmatprep.mubr.bf16.mxu0 %v511
    %787 = vmatmul.mubr.bf16.gmra.mrb[0].mxu0 %v510
    %v788 = vpop.f32.mrb[0].mxu0
    %v789 = vadd.f32 0.0, %v788
    %v790 = vpop.f32.mrb[0].mxu0
    %v791 = vpop.f32.mrb[0].mxu0
    %v792 = vadd.f32 0.0, %v791
    %v793 = vpop.f32.mrb[0].mxu0
    %794 = vmatprep.mubr.bf16.mxu0 %v513
    %795 = vmatmul.mubr.bf16.gmra.mrb[0].mxu0 %v512
    %v796 = vpop.f32.mrb[0].mxu0
    %v797 = vadd.f32 0.0, %v796
    %v798 = vpop.f32.mrb[0].mxu0
    %v799 = vpop.f32.mrb[0].mxu0
    %v800 = vadd.f32 0.0, %v799
    %v801 = vpop.f32.mrb[0].mxu0
    %802 = vdwg.mxu0
    %v803 = vadd.f32 %v354, %v677
    %v804 = vadd.f32 %v355, %v680
    %v805 = vadd.f32 %v356, %v685
    %v806 = vadd.f32 %v357, %v688
    %v807 = vadd.f32 %v358, %v693
    %v808 = vadd.f32 %v359, %v696
    %v809 = vadd.f32 %v360, %v701
    %v810 = vadd.f32 %v361, %v704
    %v811 = vadd.f32 %v362, %v709
    %v812 = vadd.f32 %v363, %v712
    %v813 = vadd.f32 %v364, %v717
    %v814 = vadd.f32 %v365, %v720
    %v815 = vadd.f32 %v366, %v725
    %v816 = vadd.f32 %v367, %v728
    %v817 = vadd.f32 %v368, %v733
    %v818 = vadd.f32 %v369, %v736
    %v819 = vadd.f32 %v370, %v741
    %v820 = vadd.f32 %v371, %v744
    %v821 = vadd.f32 %v372, %v749
    %v822 = vadd.f32 %v373, %v752
    %v823 = vadd.f32 %v374, %v757
    %v824 = vadd.f32 %v375, %v760
    %v825 = vadd.f32 %v376, %v765
    %v826 = vadd.f32 %v377, %v768
    %v827 = vadd.f32 %v378, %v773
    %v828 = vadd.f32 %v379, %v776
    %v829 = vadd.f32 %v380, %v781
    %v830 = vadd.f32 %v381, %v784
    %v831 = vadd.f32 %v382, %v789
    %v832 = vadd.f32 %v383, %v792
    %v833 = vadd.f32 %v384, %v797
    %v834 = vadd.f32 %v385, %v800
    %835 = vst [vmem:[#allocation2] sm:$0xff] %v803
    %836 = vst [vmem:[#allocation2 + $0x8] sm:$0xff] %v804
    %837 = vst [vmem:[#allocation2 + $0x10] sm:$0xff] %v805
    %838 = vst [vmem:[#allocation2 + $0x18] sm:$0xff] %v806
    %839 = vst [vmem:[#allocation2 + $0x20] sm:$0xff] %v807
    %840 = vst [vmem:[#allocation2 + $0x28] sm:$0xff] %v808
    %841 = vst [vmem:[#allocation2 + $0x30] sm:$0xff] %v809
    %842 = vst [vmem:[#allocation2 + $0x38] sm:$0xff] %v810
    %843 = vst [vmem:[#allocation2 + $0x40] sm:$0xff] %v811
    %844 = vst [vmem:[#allocation2 + $0x48] sm:$0xff] %v812
    %845 = vst [vmem:[#allocation2 + $0x50] sm:$0xff] %v813
    %846 = vst [vmem:[#allocation2 + $0x58] sm:$0xff] %v814
    %847 = vst [vmem:[#allocation2 + $0x60] sm:$0xff] %v815
    %848 = vst [vmem:[#allocation2 + $0x68] sm:$0xff] %v816
    %849 = vst [vmem:[#allocation2 + $0x70] sm:$0xff] %v817
    %850 = vst [vmem:[#allocation2 + $0x78] sm:$0xff] %v818
    %851 = vst [vmem:[#allocation2 + $0x80] sm:$0xff] %v819
    %852 = vst [vmem:[#allocation2 + $0x88] sm:$0xff] %v820
    %853 = vst [vmem:[#allocation2 + $0x90] sm:$0xff] %v821
    %854 = vst [vmem:[#allocation2 + $0x98] sm:$0xff] %v822
    %855 = vst [vmem:[#allocation2 + $0xa0] sm:$0xff] %v823
    %856 = vst [vmem:[#allocation2 + $0xa8] sm:$0xff] %v824
    %857 = vst [vmem:[#allocation2 + $0xb0] sm:$0xff] %v825
    %858 = vst [vmem:[#allocation2 + $0xb8] sm:$0xff] %v826
    %859 = vst [vmem:[#allocation2 + $0xc0] sm:$0xff] %v827
    %860 = vst [vmem:[#allocation2 + $0xc8] sm:$0xff] %v828
    %861 = vst [vmem:[#allocation2 + $0xd0] sm:$0xff] %v829
    %862 = vst [vmem:[#allocation2 + $0xd8] sm:$0xff] %v830
    %863 = vst [vmem:[#allocation2 + $0xe0] sm:$0xff] %v831
    %864 = vst [vmem:[#allocation2 + $0xe8] sm:$0xff] %v832
    %865 = vst [vmem:[#allocation2 + $0xf0] sm:$0xff] %v833
    %866 = vst [vmem:[#allocation2 + $0xf8] sm:$0xff] %v834
    %v867 = vld [vmem:[#allocation3] sm:$0xff]
    %v868 = vld [vmem:[#allocation3 + $0x8] sm:$0xff]
    %v869 = vld [vmem:[#allocation3 + $0x10] sm:$0xff]
    %v870 = vld [vmem:[#allocation3 + $0x18] sm:$0xff]
    %v871 = vld [vmem:[#allocation3 + $0x20] sm:$0xff]
    %v872 = vld [vmem:[#allocation3 + $0x28] sm:$0xff]
    %v873 = vld [vmem:[#allocation3 + $0x30] sm:$0xff]
    %v874 = vld [vmem:[#allocation3 + $0x38] sm:$0xff]
    %v875 = vld [vmem:[#allocation3 + $0x40] sm:$0xff]
    %v876 = vld [vmem:[#allocation3 + $0x48] sm:$0xff]
    %v877 = vld [vmem:[#allocation3 + $0x50] sm:$0xff]
    %v878 = vld [vmem:[#allocation3 + $0x58] sm:$0xff]
    %v879 = vld [vmem:[#allocation3 + $0x60] sm:$0xff]
    %v880 = vld [vmem:[#allocation3 + $0x68] sm:$0xff]
    %v881 = vld [vmem:[#allocation3 + $0x70] sm:$0xff]
    %v882 = vld [vmem:[#allocation3 + $0x78] sm:$0xff]
    %v883 = vld [vmem:[#allocation3 + $0x80] sm:$0xff]
    %v884 = vld [vmem:[#allocation3 + $0x88] sm:$0xff]
    %v885 = vld [vmem:[#allocation3 + $0x90] sm:$0xff]
    %v886 = vld [vmem:[#allocation3 + $0x98] sm:$0xff]
    %v887 = vld [vmem:[#allocation3 + $0xa0] sm:$0xff]
    %v888 = vld [vmem:[#allocation3 + $0xa8] sm:$0xff]
    %v889 = vld [vmem:[#allocation3 + $0xb0] sm:$0xff]
    %v890 = vld [vmem:[#allocation3 + $0xb8] sm:$0xff]
    %v891 = vld [vmem:[#allocation3 + $0xc0] sm:$0xff]
    %v892 = vld [vmem:[#allocation3 + $0xc8] sm:$0xff]
    %v893 = vld [vmem:[#allocation3 + $0xd0] sm:$0xff]
    %v894 = vld [vmem:[#allocation3 + $0xd8] sm:$0xff]
    %v895 = vld [vmem:[#allocation3 + $0xe0] sm:$0xff]
    %v896 = vld [vmem:[#allocation3 + $0xe8] sm:$0xff]
    %v897 = vld [vmem:[#allocation3 + $0xf0] sm:$0xff]
    %v898 = vld [vmem:[#allocation3 + $0xf8] sm:$0xff]
    %v931 = vunpack.c.l.b16 %v322
    %v932 = vunpack.c.l.b16 %v323
    %v933 = vunpack.c.l.b16 %v324
    %v934 = vunpack.c.l.b16 %v325
    %v935 = vunpack.c.l.b16 %v326
    %v936 = vunpack.c.l.b16 %v327
    %v937 = vunpack.c.l.b16 %v328
    %v938 = vunpack.c.l.b16 %v329
    %v939 = vunpack.c.l.b16 %v330
    %v940 = vunpack.c.l.b16 %v331
    %v941 = vunpack.c.l.b16 %v332
    %v942 = vunpack.c.l.b16 %v333
    %v943 = vunpack.c.l.b16 %v334
    %v944 = vunpack.c.l.b16 %v335
    %v945 = vunpack.c.l.b16 %v336
    %v946 = vunpack.c.l.b16 %v337
    %v947 = vunpack.c.l.b16 %v338
    %v948 = vunpack.c.l.b16 %v339
    %v949 = vunpack.c.l.b16 %v340
    %v950 = vunpack.c.l.b16 %v341
    %v951 = vunpack.c.l.b16 %v342
    %v952 = vunpack.c.l.b16 %v343
    %v953 = vunpack.c.l.b16 %v344
    %v954 = vunpack.c.l.b16 %v345
    %v955 = vunpack.c.l.b16 %v346
    %v956 = vunpack.c.l.b16 %v347
    %v957 = vunpack.c.l.b16 %v348
    %v958 = vunpack.c.l.b16 %v349
    %v959 = vunpack.c.l.b16 %v350
    %v960 = vunpack.c.l.b16 %v351
    %v961 = vunpack.c.l.b16 %v352
    %v962 = vunpack.c.l.b16 %v353
    %v963 = vpack.c.b16 %v932, %v931
    %v964 = vpack.c.b16 %v934, %v933
    %v965 = vpack.c.b16 %v936, %v935
    %v966 = vpack.c.b16 %v938, %v937
    %v967 = vpack.c.b16 %v940, %v939
    %v968 = vpack.c.b16 %v942, %v941
    %v969 = vpack.c.b16 %v944, %v943
    %v970 = vpack.c.b16 %v946, %v945
    %v971 = vpack.c.b16 %v948, %v947
    %v972 = vpack.c.b16 %v950, %v949
    %v973 = vpack.c.b16 %v952, %v951
    %v974 = vpack.c.b16 %v954, %v953
    %v975 = vpack.c.b16 %v956, %v955
    %v976 = vpack.c.b16 %v958, %v957
    %v977 = vpack.c.b16 %v960, %v959
    %v978 = vpack.c.b16 %v962, %v961
    %995 = vmatprep.subr.bf16.mxu0 0
    %996 = vmatpush1.bf16.msra.mxu0 %v963
    %997 = vmatprep.subr.bf16.mxu0 0
    %998 = vmatpush1.bf16.msra.mxu0 %v964
    %999 = vmatprep.subr.bf16.mxu0 0
    %1000 = vmatpush1.bf16.msra.mxu0 %v965
    %1001 = vmatprep.subr.bf16.mxu0 0
    %1002 = vmatpush1.bf16.msra.mxu0 %v966
    %1003 = vmatprep.subr.bf16.mxu0 0
    %1004 = vmatpush1.bf16.msra.mxu0 %v967
    %1005 = vmatprep.subr.bf16.mxu0 0
    %1006 = vmatpush1.bf16.msra.mxu0 %v968
    %1007 = vmatprep.subr.bf16.mxu0 0
    %1008 = vmatpush1.bf16.msra.mxu0 %v969
    %1009 = vmatprep.subr.bf16.mxu0 0
    %1010 = vmatpush1.bf16.msra.mxu0 %v970
    %1011 = vmatprep.subr.bf16.mxu0 0
    %1012 = vmatpush1.bf16.msra.mxu0 %v971
    %1013 = vmatprep.subr.bf16.mxu0 0
    %1014 = vmatpush1.bf16.msra.mxu0 %v972
    %1015 = vmatprep.subr.bf16.mxu0 0
    %1016 = vmatpush1.bf16.msra.mxu0 %v973
    %1017 = vmatprep.subr.bf16.mxu0 0
    %1018 = vmatpush1.bf16.msra.mxu0 %v974
    %1019 = vmatprep.subr.bf16.mxu0 0
    %1020 = vmatpush1.bf16.msra.mxu0 %v975
    %1021 = vmatprep.subr.bf16.mxu0 0
    %1022 = vmatpush1.bf16.msra.mxu0 %v976
    %1023 = vmatprep.subr.bf16.mxu0 0
    %1024 = vmatpush1.bf16.msra.mxu0 %v977
    %1025 = vmatprep.subr.bf16.mxu0 0
    %1026 = vmatpush1.bf16.msra.mxu0 %v978
    %1027 = vmatprep.mubr.bf16.mxu0 %v483
    %1028 = vmatmul.mubr.bf16.gmra.mrb[0].mxu0 %v482
    %v1029 = vpop.f32.mrb[0].mxu0
    %v1030 = vadd.f32 0.0, %v1029
    %v1031 = vpop.f32.mrb[0].mxu0
    %v1032 = vpop.f32.mrb[0].mxu0
    %v1033 = vadd.f32 0.0, %v1032
    %v1034 = vpop.f32.mrb[0].mxu0
    %1035 = vmatprep.mubr.bf16.mxu0 %v485
    %1036 = vmatmul.mubr.bf16.gmra.mrb[0].mxu0 %v484
    %v1037 = vpop.f32.mrb[0].mxu0
    %v1038 = vadd.f32 0.0, %v1037
    %v1039 = vpop.f32.mrb[0].mxu0
    %v1040 = vpop.f32.mrb[0].mxu0
    %v1041 = vadd.f32 0.0, %v1040
    %v1042 = vpop.f32.mrb[0].mxu0
    %1043 = vmatprep.mubr.bf16.mxu0 %v487
    %1044 = vmatmul.mubr.bf16.gmra.mrb[0].mxu0 %v486
    %v1045 = vpop.f32.mrb[0].mxu0
    %v1046 = vadd.f32 0.0, %v1045
    %v1047 = vpop.f32.mrb[0].mxu0
    %v1048 = vpop.f32.mrb[0].mxu0
    %v1049 = vadd.f32 0.0, %v1048
    %v1050 = vpop.f32.mrb[0].mxu0
    %1051 = vmatprep.mubr.bf16.mxu0 %v489
    %1052 = vmatmul.mubr.bf16.gmra.mrb[0].mxu0 %v488
    %v1053 = vpop.f32.mrb[0].mxu0
    %v1054 = vadd.f32 0.0, %v1053
    %v1055 = vpop.f32.mrb[0].mxu0
    %v1056 = vpop.f32.mrb[0].mxu0
    %v1057 = vadd.f32 0.0, %v1056
    %v1058 = vpop.f32.mrb[0].mxu0
    %1059 = vmatprep.mubr.bf16.mxu0 %v491
    %1060 = vmatmul.mubr.bf16.gmra.mrb[0].mxu0 %v490
    %v1061 = vpop.f32.mrb[0].mxu0
    %v1062 = vadd.f32 0.0, %v1061
    %v1063 = vpop.f32.mrb[0].mxu0
    %v1064 = vpop.f32.mrb[0].mxu0
    %v1065 = vadd.f32 0.0, %v1064
    %v1066 = vpop.f32.mrb[0].mxu0
    %1067 = vmatprep.mubr.bf16.mxu0 %v493
    %1068 = vmatmul.mubr.bf16.gmra.mrb[0].mxu0 %v492
    %v1069 = vpop.f32.mrb[0].mxu0
    %v1070 = vadd.f32 0.0, %v1069
    %v1071 = vpop.f32.mrb[0].mxu0
    %v1072 = vpop.f32.mrb[0].mxu0
    %v1073 = vadd.f32 0.0, %v1072
    %v1074 = vpop.f32.mrb[0].mxu0
    %1075 = vmatprep.mubr.bf16.mxu0 %v495
    %1076 = vmatmul.mubr.bf16.gmra.mrb[0].mxu0 %v494
    %v1077 = vpop.f32.mrb[0].mxu0
    %v1078 = vadd.f32 0.0, %v1077
    %v1079 = vpop.f32.mrb[0].mxu0
    %v1080 = vpop.f32.mrb[0].mxu0
    %v1081 = vadd.f32 0.0, %v1080
    %v1082 = vpop.f32.mrb[0].mxu0
    %1083 = vmatprep.mubr.bf16.mxu0 %v497
    %1084 = vmatmul.mubr.bf16.gmra.mrb[0].mxu0 %v496
    %v1085 = vpop.f32.mrb[0].mxu0
    %v1086 = vadd.f32 0.0, %v1085
    %v1087 = vpop.f32.mrb[0].mxu0
    %v1088 = vpop.f32.mrb[0].mxu0
    %v1089 = vadd.f32 0.0, %v1088
    %v1090 = vpop.f32.mrb[0].mxu0
    %1091 = vmatprep.mubr.bf16.mxu0 %v499
    %1092 = vmatmul.mubr.bf16.gmra.mrb[0].mxu0 %v498
    %v1093 = vpop.f32.mrb[0].mxu0
    %v1094 = vadd.f32 0.0, %v1093
    %v1095 = vpop.f32.mrb[0].mxu0
    %v1096 = vpop.f32.mrb[0].mxu0
    %v1097 = vadd.f32 0.0, %v1096
    %v1098 = vpop.f32.mrb[0].mxu0
    %1099 = vmatprep.mubr.bf16.mxu0 %v501
    %1100 = vmatmul.mubr.bf16.gmra.mrb[0].mxu0 %v500
    %v1101 = vpop.f32.mrb[0].mxu0
    %v1102 = vadd.f32 0.0, %v1101
    %v1103 = vpop.f32.mrb[0].mxu0
    %v1104 = vpop.f32.mrb[0].mxu0
    %v1105 = vadd.f32 0.0, %v1104
    %v1106 = vpop.f32.mrb[0].mxu0
    %1107 = vmatprep.mubr.bf16.mxu0 %v503
    %1108 = vmatmul.mubr.bf16.gmra.mrb[0].mxu0 %v502
    %v1109 = vpop.f32.mrb[0].mxu0
    %v1110 = vadd.f32 0.0, %v1109
    %v1111 = vpop.f32.mrb[0].mxu0
    %v1112 = vpop.f32.mrb[0].mxu0
    %v1113 = vadd.f32 0.0, %v1112
    %v1114 = vpop.f32.mrb[0].mxu0
    %1115 = vmatprep.mubr.bf16.mxu0 %v505
    %1116 = vmatmul.mubr.bf16.gmra.mrb[0].mxu0 %v504
    %v1117 = vpop.f32.mrb[0].mxu0
    %v1118 = vadd.f32 0.0, %v1117
    %v1119 = vpop.f32.mrb[0].mxu0
    %v1120 = vpop.f32.mrb[0].mxu0
    %v1121 = vadd.f32 0.0, %v1120
    %v1122 = vpop.f32.mrb[0].mxu0
    %1123 = vmatprep.mubr.bf16.mxu0 %v507
    %1124 = vmatmul.mubr.bf16.gmra.mrb[0].mxu0 %v506
    %v1125 = vpop.f32.mrb[0].mxu0
    %v1126 = vadd.f32 0.0, %v1125
    %v1127 = vpop.f32.mrb[0].mxu0
    %v1128 = vpop.f32.mrb[0].mxu0
    %v1129 = vadd.f32 0.0, %v1128
    %v1130 = vpop.f32.mrb[0].mxu0
    %1131 = vmatprep.mubr.bf16.mxu0 %v509
    %1132 = vmatmul.mubr.bf16.gmra.mrb[0].mxu0 %v508
    %v1133 = vpop.f32.mrb[0].mxu0
    %v1134 = vadd.f32 0.0, %v1133
    %v1135 = vpop.f32.mrb[0].mxu0
    %v1136 = vpop.f32.mrb[0].mxu0
    %v1137 = vadd.f32 0.0, %v1136
    %v1138 = vpop.f32.mrb[0].mxu0
    %1139 = vmatprep.mubr.bf16.mxu0 %v511
    %1140 = vmatmul.mubr.bf16.gmra.mrb[0].mxu0 %v510
    %v1141 = vpop.f32.mrb[0].mxu0
    %v1142 = vadd.f32 0.0, %v1141
    %v1143 = vpop.f32.mrb[0].mxu0
    %v1144 = vpop.f32.mrb[0].mxu0
    %v1145 = vadd.f32 0.0, %v1144
    %v1146 = vpop.f32.mrb[0].mxu0
    %1147 = vmatprep.mubr.bf16.mxu0 %v513
    %1148 = vmatmul.mubr.bf16.gmra.mrb[0].mxu0 %v512
    %v1149 = vpop.f32.mrb[0].mxu0
    %v1150 = vadd.f32 0.0, %v1149
    %v1151 = vpop.f32.mrb[0].mxu0
    %v1152 = vpop.f32.mrb[0].mxu0
    %v1153 = vadd.f32 0.0, %v1152
    %v1154 = vpop.f32.mrb[0].mxu0
    %1155 = vdwg.mxu0
    %v1156 = vadd.f32 %v867, %v1030
    %v1157 = vadd.f32 %v868, %v1033
    %v1158 = vadd.f32 %v869, %v1038
    %v1159 = vadd.f32 %v870, %v1041
    %v1160 = vadd.f32 %v871, %v1046
    %v1161 = vadd.f32 %v872, %v1049
    %v1162 = vadd.f32 %v873, %v1054
    %v1163 = vadd.f32 %v874, %v1057
    %v1164 = vadd.f32 %v875, %v1062
    %v1165 = vadd.f32 %v876, %v1065
    %v1166 = vadd.f32 %v877, %v1070
    %v1167 = vadd.f32 %v878, %v1073
    %v1168 = vadd.f32 %v879, %v1078
    %v1169 = vadd.f32 %v880, %v1081
    %v1170 = vadd.f32 %v881, %v1086
    %v1171 = vadd.f32 %v882, %v1089
    %v1172 = vadd.f32 %v883, %v1094
    %v1173 = vadd.f32 %v884, %v1097
    %v1174 = vadd.f32 %v885, %v1102
    %v1175 = vadd.f32 %v886, %v1105
    %v1176 = vadd.f32 %v887, %v1110
    %v1177 = vadd.f32 %v888, %v1113
    %v1178 = vadd.f32 %v889, %v1118
    %v1179 = vadd.f32 %v890, %v1121
    %v1180 = vadd.f32 %v891, %v1126
    %v1181 = vadd.f32 %v892, %v1129
    %v1182 = vadd.f32 %v893, %v1134
    %v1183 = vadd.f32 %v894, %v1137
    %v1184 = vadd.f32 %v895, %v1142
    %v1185 = vadd.f32 %v896, %v1145
    %v1186 = vadd.f32 %v897, %v1150
    %v1187 = vadd.f32 %v898, %v1153
    %1188 = vst [vmem:[#allocation3] sm:$0xff] %v1156
    %1189 = vst [vmem:[#allocation3 + $0x8] sm:$0xff] %v1157
    %1190 = vst [vmem:[#allocation3 + $0x10] sm:$0xff] %v1158
    %1191 = vst [vmem:[#allocation3 + $0x18] sm:$0xff] %v1159
    %1192 = vst [vmem:[#allocation3 + $0x20] sm:$0xff] %v1160
    %1193 = vst [vmem:[#allocation3 + $0x28] sm:$0xff] %v1161
    %1194 = vst [vmem:[#allocation3 + $0x30] sm:$0xff] %v1162
    %1195 = vst [vmem:[#allocation3 + $0x38] sm:$0xff] %v1163
    %1196 = vst [vmem:[#allocation3 + $0x40] sm:$0xff] %v1164
    %1197 = vst [vmem:[#allocation3 + $0x48] sm:$0xff] %v1165
    %1198 = vst [vmem:[#allocation3 + $0x50] sm:$0xff] %v1166
    %1199 = vst [vmem:[#allocation3 + $0x58] sm:$0xff] %v1167
    %1200 = vst [vmem:[#allocation3 + $0x60] sm:$0xff] %v1168
    %1201 = vst [vmem:[#allocation3 + $0x68] sm:$0xff] %v1169
    %1202 = vst [vmem:[#allocation3 + $0x70] sm:$0xff] %v1170
    %1203 = vst [vmem:[#allocation3 + $0x78] sm:$0xff] %v1171
    %1204 = vst [vmem:[#allocation3 + $0x80] sm:$0xff] %v1172
    %1205 = vst [vmem:[#allocation3 + $0x88] sm:$0xff] %v1173
    %1206 = vst [vmem:[#allocation3 + $0x90] sm:$0xff] %v1174
    %1207 = vst [vmem:[#allocation3 + $0x98] sm:$0xff] %v1175
    %1208 = vst [vmem:[#allocation3 + $0xa0] sm:$0xff] %v1176
    %1209 = vst [vmem:[#allocation3 + $0xa8] sm:$0xff] %v1177
    %1210 = vst [vmem:[#allocation3 + $0xb0] sm:$0xff] %v1178
    %1211 = vst [vmem:[#allocation3 + $0xb8] sm:$0xff] %v1179
    %1212 = vst [vmem:[#allocation3 + $0xc0] sm:$0xff] %v1180
    %1213 = vst [vmem:[#allocation3 + $0xc8] sm:$0xff] %v1181
    %1214 = vst [vmem:[#allocation3 + $0xd0] sm:$0xff] %v1182
    %1215 = vst [vmem:[#allocation3 + $0xd8] sm:$0xff] %v1183
    %1216 = vst [vmem:[#allocation3 + $0xe0] sm:$0xff] %v1184
    %1217 = vst [vmem:[#allocation3 + $0xe8] sm:$0xff] %v1185
    %1218 = vst [vmem:[#allocation3 + $0xf0] sm:$0xff] %v1186
    %1219 = vst [vmem:[#allocation3 + $0xf8] sm:$0xff] %v1187
    // Predicated region
    $region59: #{digae_forward.10} parent=1 // pred_check
      %p1220 = pneg %p183
    $region60: #{digae_forward.10} parent=1 // pred_check_branch
      %1222 = sbr.rel (%p1220) target = $region62
    $region61: #{digae_forward.10} parent=1 // pred_region
      %v1223 = vld [vmem:[#allocation2] sm:$0xff]
      %v1224 = vld [vmem:[#allocation2 + $0x8] sm:$0xff]
      %v1225 = vld [vmem:[#allocation2 + $0x10] sm:$0xff]
      %v1226 = vld [vmem:[#allocation2 + $0x18] sm:$0xff]
      %v1227 = vld [vmem:[#allocation2 + $0x20] sm:$0xff]
      %v1228 = vld [vmem:[#allocation2 + $0x28] sm:$0xff]
      %v1229 = vld [vmem:[#allocation2 + $0x30] sm:$0xff]
      %v1230 = vld [vmem:[#allocation2 + $0x38] sm:$0xff]
      %v1231 = vld [vmem:[#allocation2 + $0x40] sm:$0xff]
      %v1232 = vld [vmem:[#allocation2 + $0x48] sm:$0xff]
      %v1233 = vld [vmem:[#allocation2 + $0x50] sm:$0xff]
      %v1234 = vld [vmem:[#allocation2 + $0x58] sm:$0xff]
      %v1235 = vld [vmem:[#allocation2 + $0x60] sm:$0xff]
      %v1236 = vld [vmem:[#allocation2 + $0x68] sm:$0xff]
      %v1237 = vld [vmem:[#allocation2 + $0x70] sm:$0xff]
      %v1238 = vld [vmem:[#allocation2 + $0x78] sm:$0xff]
      %v1239 = vld [vmem:[#allocation2 + $0x80] sm:$0xff]
      %v1240 = vld [vmem:[#allocation2 + $0x88] sm:$0xff]
      %v1241 = vld [vmem:[#allocation2 + $0x90] sm:$0xff]
      %v1242 = vld [vmem:[#allocation2 + $0x98] sm:$0xff]
      %v1243 = vld [vmem:[#allocation2 + $0xa0] sm:$0xff]
      %v1244 = vld [vmem:[#allocation2 + $0xa8] sm:$0xff]
      %v1245 = vld [vmem:[#allocation2 + $0xb0] sm:$0xff]
      %v1246 = vld [vmem:[#allocation2 + $0xb8] sm:$0xff]
      %v1247 = vld [vmem:[#allocation2 + $0xc0] sm:$0xff]
      %v1248 = vld [vmem:[#allocation2 + $0xc8] sm:$0xff]
      %v1249 = vld [vmem:[#allocation2 + $0xd0] sm:$0xff]
      %v1250 = vld [vmem:[#allocation2 + $0xd8] sm:$0xff]
      %v1251 = vld [vmem:[#allocation2 + $0xe0] sm:$0xff]
      %v1252 = vld [vmem:[#allocation2 + $0xe8] sm:$0xff]
      %v1253 = vld [vmem:[#allocation2 + $0xf0] sm:$0xff]
      %v1254 = vld [vmem:[#allocation2 + $0xf8] sm:$0xff]
      %v1255 = vld [vmem:[#allocation3] sm:$0xff]
      %v1256 = vld [vmem:[#allocation3 + $0x8] sm:$0xff]
      %v1257 = vld [vmem:[#allocation3 + $0x10] sm:$0xff]
      %v1258 = vld [vmem:[#allocation3 + $0x18] sm:$0xff]
      %v1259 = vld [vmem:[#allocation3 + $0x20] sm:$0xff]
      %v1260 = vld [vmem:[#allocation3 + $0x28] sm:$0xff]
      %v1261 = vld [vmem:[#allocation3 + $0x30] sm:$0xff]
      %v1262 = vld [vmem:[#allocation3 + $0x38] sm:$0xff]
      %v1263 = vld [vmem:[#allocation3 + $0x40] sm:$0xff]
      %v1264 = vld [vmem:[#allocation3 + $0x48] sm:$0xff]
      %v1265 = vld [vmem:[#allocation3 + $0x50] sm:$0xff]
      %v1266 = vld [vmem:[#allocation3 + $0x58] sm:$0xff]
      %v1267 = vld [vmem:[#allocation3 + $0x60] sm:$0xff]
      %v1268 = vld [vmem:[#allocation3 + $0x68] sm:$0xff]
      %v1269 = vld [vmem:[#allocation3 + $0x70] sm:$0xff]
      %v1270 = vld [vmem:[#allocation3 + $0x78] sm:$0xff]
      %v1271 = vld [vmem:[#allocation3 + $0x80] sm:$0xff]
      %v1272 = vld [vmem:[#allocation3 + $0x88] sm:$0xff]
      %v1273 = vld [vmem:[#allocation3 + $0x90] sm:$0xff]
      %v1274 = vld [vmem:[#allocation3 + $0x98] sm:$0xff]
      %v1275 = vld [vmem:[#allocation3 + $0xa0] sm:$0xff]
      %v1276 = vld [vmem:[#allocation3 + $0xa8] sm:$0xff]
      %v1277 = vld [vmem:[#allocation3 + $0xb0] sm:$0xff]
      %v1278 = vld [vmem:[#allocation3 + $0xb8] sm:$0xff]
      %v1279 = vld [vmem:[#allocation3 + $0xc0] sm:$0xff]
      %v1280 = vld [vmem:[#allocation3 + $0xc8] sm:$0xff]
      %v1281 = vld [vmem:[#allocation3 + $0xd0] sm:$0xff]
      %v1282 = vld [vmem:[#allocation3 + $0xd8] sm:$0xff]
      %v1283 = vld [vmem:[#allocation3 + $0xe0] sm:$0xff]
      %v1284 = vld [vmem:[#allocation3 + $0xe8] sm:$0xff]
      %v1285 = vld [vmem:[#allocation3 + $0xf0] sm:$0xff]
      %v1286 = vld [vmem:[#allocation3 + $0xf8] sm:$0xff]
      %v1287 = vmax.f32 %v1223, 0.0
      %v1288 = vmax.f32 %v1224, 0.0
      %v1289 = vmax.f32 %v1225, 0.0
      %v1290 = vmax.f32 %v1226, 0.0
      %v1291 = vmax.f32 %v1227, 0.0
      %v1292 = vmax.f32 %v1228, 0.0
      %v1293 = vmax.f32 %v1229, 0.0
      %v1294 = vmax.f32 %v1230, 0.0
      %v1295 = vmax.f32 %v1231, 0.0
      %v1296 = vmax.f32 %v1232, 0.0
      %v1297 = vmax.f32 %v1233, 0.0
      %v1298 = vmax.f32 %v1234, 0.0
      %v1299 = vmax.f32 %v1235, 0.0
      %v1300 = vmax.f32 %v1236, 0.0
      %v1301 = vmax.f32 %v1237, 0.0
      %v1302 = vmax.f32 %v1238, 0.0
      %v1303 = vmax.f32 %v1239, 0.0
      %v1304 = vmax.f32 %v1240, 0.0
      %v1305 = vmax.f32 %v1241, 0.0
      %v1306 = vmax.f32 %v1242, 0.0
      %v1307 = vmax.f32 %v1243, 0.0
      %v1308 = vmax.f32 %v1244, 0.0
      %v1309 = vmax.f32 %v1245, 0.0
      %v1310 = vmax.f32 %v1246, 0.0
      %v1311 = vmax.f32 %v1247, 0.0
      %v1312 = vmax.f32 %v1248, 0.0
      %v1313 = vmax.f32 %v1249, 0.0
      %v1314 = vmax.f32 %v1250, 0.0
      %v1315 = vmax.f32 %v1251, 0.0
      %v1316 = vmax.f32 %v1252, 0.0
      %v1317 = vmax.f32 %v1253, 0.0
      %v1318 = vmax.f32 %v1254, 0.0
      %v1319 = vpack.c.bf16 %v1288, %v1287
      %v1320 = vpack.c.bf16 %v1290, %v1289
      %v1321 = vpack.c.bf16 %v1292, %v1291
      %v1322 = vpack.c.bf16 %v1294, %v1293
      %v1323 = vpack.c.bf16 %v1296, %v1295
      %v1324 = vpack.c.bf16 %v1298, %v1297
      %v1325 = vpack.c.bf16 %v1300, %v1299
      %v1326 = vpack.c.bf16 %v1302, %v1301
      %v1327 = vpack.c.bf16 %v1304, %v1303
      %v1328 = vpack.c.bf16 %v1306, %v1305
      %v1329 = vpack.c.bf16 %v1308, %v1307
      %v1330 = vpack.c.bf16 %v1310, %v1309
      %v1331 = vpack.c.bf16 %v1312, %v1311
      %v1332 = vpack.c.bf16 %v1314, %v1313
      %v1333 = vpack.c.bf16 %v1316, %v1315
      %v1334 = vpack.c.bf16 %v1318, %v1317
      %v1351 = vunpack.c.l.b16 %v1319
      %v1352 = vunpack.c.h.b16 %v1319
      %v1353 = vunpack.c.l.b16 %v1320
      %v1354 = vunpack.c.h.b16 %v1320
      %v1355 = vunpack.c.l.b16 %v1321
      %v1356 = vunpack.c.h.b16 %v1321
      %v1357 = vunpack.c.l.b16 %v1322
      %v1358 = vunpack.c.h.b16 %v1322
      %v1359 = vunpack.c.l.b16 %v1323
      %v1360 = vunpack.c.h.b16 %v1323
      %v1361 = vunpack.c.l.b16 %v1324
      %v1362 = vunpack.c.h.b16 %v1324
      %v1363 = vunpack.c.l.b16 %v1325
      %v1364 = vunpack.c.h.b16 %v1325
      %v1365 = vunpack.c.l.b16 %v1326
      %v1366 = vunpack.c.h.b16 %v1326
      %v1367 = vunpack.c.l.b16 %v1327
      %v1368 = vunpack.c.h.b16 %v1327
      %v1369 = vunpack.c.l.b16 %v1328
      %v1370 = vunpack.c.h.b16 %v1328
      %v1371 = vunpack.c.l.b16 %v1329
      %v1372 = vunpack.c.h.b16 %v1329
      %v1373 = vunpack.c.l.b16 %v1330
      %v1374 = vunpack.c.h.b16 %v1330
      %v1375 = vunpack.c.l.b16 %v1331
      %v1376 = vunpack.c.h.b16 %v1331
      %v1377 = vunpack.c.l.b16 %v1332
      %v1378 = vunpack.c.h.b16 %v1332
      %v1379 = vunpack.c.l.b16 %v1333
      %v1380 = vunpack.c.h.b16 %v1333
      %v1381 = vunpack.c.l.b16 %v1334
      %v1382 = vunpack.c.h.b16 %v1334
      %v1383 = vpack.c.b16 %v1351, %v1351
      %v1384 = vpack.c.b16 %v1352, %v1352
      %v1385 = vpack.c.b16 %v1353, %v1353
      %v1386 = vpack.c.b16 %v1354, %v1354
      %v1387 = vpack.c.b16 %v1355, %v1355
      %v1388 = vpack.c.b16 %v1356, %v1356
      %v1389 = vpack.c.b16 %v1357, %v1357
      %v1390 = vpack.c.b16 %v1358, %v1358
      %v1391 = vpack.c.b16 %v1359, %v1359
      %v1392 = vpack.c.b16 %v1360, %v1360
      %v1393 = vpack.c.b16 %v1361, %v1361
      %v1394 = vpack.c.b16 %v1362, %v1362
      %v1395 = vpack.c.b16 %v1363, %v1363
      %v1396 = vpack.c.b16 %v1364, %v1364
      %v1397 = vpack.c.b16 %v1365, %v1365
      %v1398 = vpack.c.b16 %v1366, %v1366
      %v1399 = vpack.c.b16 %v1367, %v1367
      %v1400 = vpack.c.b16 %v1368, %v1368
      %v1401 = vpack.c.b16 %v1369, %v1369
      %v1402 = vpack.c.b16 %v1370, %v1370
      %v1403 = vpack.c.b16 %v1371, %v1371
      %v1404 = vpack.c.b16 %v1372, %v1372
      %v1405 = vpack.c.b16 %v1373, %v1373
      %v1406 = vpack.c.b16 %v1374, %v1374
      %v1407 = vpack.c.b16 %v1375, %v1375
      %v1408 = vpack.c.b16 %v1376, %v1376
      %v1409 = vpack.c.b16 %v1377, %v1377
      %v1410 = vpack.c.b16 %v1378, %v1378
      %v1411 = vpack.c.b16 %v1379, %v1379
      %v1412 = vpack.c.b16 %v1380, %v1380
      %v1413 = vpack.c.b16 %v1381, %v1381
      %v1414 = vpack.c.b16 %v1382, %v1382
      %1447 = vst [vmem:[%s3] sm:$0xf] %v1383
      %1448 = vst [vmem:[%s3 + $0x4] sm:$0xf] %v1384
      %1449 = vst [vmem:[%s3 + $0x8] sm:$0xf] %v1385
      %1450 = vst [vmem:[%s3 + $0xc] sm:$0xf] %v1386
      %1451 = vst [vmem:[%s3 + $0x10] sm:$0xf] %v1387
      %1452 = vst [vmem:[%s3 + $0x14] sm:$0xf] %v1388
      %1453 = vst [vmem:[%s3 + $0x18] sm:$0xf] %v1389
      %1454 = vst [vmem:[%s3 + $0x1c] sm:$0xf] %v1390
      %1455 = vst [vmem:[%s3 + $0x20] sm:$0xf] %v1391
      %1456 = vst [vmem:[%s3 + $0x24] sm:$0xf] %v1392
      %1457 = vst [vmem:[%s3 + $0x28] sm:$0xf] %v1393
      %1458 = vst [vmem:[%s3 + $0x2c] sm:$0xf] %v1394
      %1459 = vst [vmem:[%s3 + $0x30] sm:$0xf] %v1395
      %1460 = vst [vmem:[%s3 + $0x34] sm:$0xf] %v1396
      %1461 = vst [vmem:[%s3 + $0x38] sm:$0xf] %v1397
      %1462 = vst [vmem:[%s3 + $0x3c] sm:$0xf] %v1398
      %1463 = vst [vmem:[%s3 + $0x40] sm:$0xf] %v1399
      %1464 = vst [vmem:[%s3 + $0x44] sm:$0xf] %v1400
      %1465 = vst [vmem:[%s3 + $0x48] sm:$0xf] %v1401
      %1466 = vst [vmem:[%s3 + $0x4c] sm:$0xf] %v1402
      %1467 = vst [vmem:[%s3 + $0x50] sm:$0xf] %v1403
      %1468 = vst [vmem:[%s3 + $0x54] sm:$0xf] %v1404
      %1469 = vst [vmem:[%s3 + $0x58] sm:$0xf] %v1405
      %1470 = vst [vmem:[%s3 + $0x5c] sm:$0xf] %v1406
      %1471 = vst [vmem:[%s3 + $0x60] sm:$0xf] %v1407
      %1472 = vst [vmem:[%s3 + $0x64] sm:$0xf] %v1408
      %1473 = vst [vmem:[%s3 + $0x68] sm:$0xf] %v1409
      %1474 = vst [vmem:[%s3 + $0x6c] sm:$0xf] %v1410
      %1475 = vst [vmem:[%s3 + $0x70] sm:$0xf] %v1411
      %1476 = vst [vmem:[%s3 + $0x74] sm:$0xf] %v1412
      %1477 = vst [vmem:[%s3 + $0x78] sm:$0xf] %v1413
      %1478 = vst [vmem:[%s3 + $0x7c] sm:$0xf] %v1414
      %v1479 = vpack.c.bf16 %v1256, %v1255
      %v1480 = vpack.c.bf16 %v1258, %v1257
      %v1481 = vpack.c.bf16 %v1260, %v1259
      %v1482 = vpack.c.bf16 %v1262, %v1261
      %v1483 = vpack.c.bf16 %v1264, %v1263
      %v1484 = vpack.c.bf16 %v1266, %v1265
      %v1485 = vpack.c.bf16 %v1268, %v1267
      %v1486 = vpack.c.bf16 %v1270, %v1269
      %v1487 = vpack.c.bf16 %v1272, %v1271
      %v1488 = vpack.c.bf16 %v1274, %v1273
      %v1489 = vpack.c.bf16 %v1276, %v1275
      %v1490 = vpack.c.bf16 %v1278, %v1277
      %v1491 = vpack.c.bf16 %v1280, %v1279
      %v1492 = vpack.c.bf16 %v1282, %v1281
      %v1493 = vpack.c.bf16 %v1284, %v1283
      %v1494 = vpack.c.bf16 %v1286, %v1285
      %v1511 = vunpack.c.l.b16 %v1479
      %v1512 = vunpack.c.h.b16 %v1479
      %v1513 = vunpack.c.l.b16 %v1480
      %v1514 = vunpack.c.h.b16 %v1480
      %v1515 = vunpack.c.l.b16 %v1481
      %v1516 = vunpack.c.h.b16 %v1481
      %v1517 = vunpack.c.l.b16 %v1482
      %v1518 = vunpack.c.h.b16 %v1482
      %v1519 = vunpack.c.l.b16 %v1483
      %v1520 = vunpack.c.h.b16 %v1483
      %v1521 = vunpack.c.l.b16 %v1484
      %v1522 = vunpack.c.h.b16 %v1484
      %v1523 = vunpack.c.l.b16 %v1485
      %v1524 = vunpack.c.h.b16 %v1485
      %v1525 = vunpack.c.l.b16 %v1486
      %v1526 = vunpack.c.h.b16 %v1486
      %v1527 = vunpack.c.l.b16 %v1487
      %v1528 = vunpack.c.h.b16 %v1487
      %v1529 = vunpack.c.l.b16 %v1488
      %v1530 = vunpack.c.h.b16 %v1488
      %v1531 = vunpack.c.l.b16 %v1489
      %v1532 = vunpack.c.h.b16 %v1489
      %v1533 = vunpack.c.l.b16 %v1490
      %v1534 = vunpack.c.h.b16 %v1490
      %v1535 = vunpack.c.l.b16 %v1491
      %v1536 = vunpack.c.h.b16 %v1491
      %v1537 = vunpack.c.l.b16 %v1492
      %v1538 = vunpack.c.h.b16 %v1492
      %v1539 = vunpack.c.l.b16 %v1493
      %v1540 = vunpack.c.h.b16 %v1493
      %v1541 = vunpack.c.l.b16 %v1494
      %v1542 = vunpack.c.h.b16 %v1494
      %v1543 = vpack.c.b16 %v1511, %v1511
      %v1544 = vpack.c.b16 %v1512, %v1512
      %v1545 = vpack.c.b16 %v1513, %v1513
      %v1546 = vpack.c.b16 %v1514, %v1514
      %v1547 = vpack.c.b16 %v1515, %v1515
      %v1548 = vpack.c.b16 %v1516, %v1516
      %v1549 = vpack.c.b16 %v1517, %v1517
      %v1550 = vpack.c.b16 %v1518, %v1518
      %v1551 = vpack.c.b16 %v1519, %v1519
      %v1552 = vpack.c.b16 %v1520, %v1520
      %v1553 = vpack.c.b16 %v1521, %v1521
      %v1554 = vpack.c.b16 %v1522, %v1522
      %v1555 = vpack.c.b16 %v1523, %v1523
      %v1556 = vpack.c.b16 %v1524, %v1524
      %v1557 = vpack.c.b16 %v1525, %v1525
      %v1558 = vpack.c.b16 %v1526, %v1526
      %v1559 = vpack.c.b16 %v1527, %v1527
      %v1560 = vpack.c.b16 %v1528, %v1528
      %v1561 = vpack.c.b16 %v1529, %v1529
      %v1562 = vpack.c.b16 %v1530, %v1530
      %v1563 = vpack.c.b16 %v1531, %v1531
      %v1564 = vpack.c.b16 %v1532, %v1532
      %v1565 = vpack.c.b16 %v1533, %v1533
      %v1566 = vpack.c.b16 %v1534, %v1534
      %v1567 = vpack.c.b16 %v1535, %v1535
      %v1568 = vpack.c.b16 %v1536, %v1536
      %v1569 = vpack.c.b16 %v1537, %v1537
      %v1570 = vpack.c.b16 %v1538, %v1538
      %v1571 = vpack.c.b16 %v1539, %v1539
      %v1572 = vpack.c.b16 %v1540, %v1540
      %v1573 = vpack.c.b16 %v1541, %v1541
      %v1574 = vpack.c.b16 %v1542, %v1542
      %1607 = vst [vmem:[%s4] sm:$0xf] %v1543
      %1608 = vst [vmem:[%s4 + $0x4] sm:$0xf] %v1544
      %1609 = vst [vmem:[%s4 + $0x8] sm:$0xf] %v1545
      %1610 = vst [vmem:[%s4 + $0xc] sm:$0xf] %v1546
      %1611 = vst [vmem:[%s4 + $0x10] sm:$0xf] %v1547
      %1612 = vst [vmem:[%s4 + $0x14] sm:$0xf] %v1548
      %1613 = vst [vmem:[%s4 + $0x18] sm:$0xf] %v1549
      %1614 = vst [vmem:[%s4 + $0x1c] sm:$0xf] %v1550
      %1615 = vst [vmem:[%s4 + $0x20] sm:$0xf] %v1551
      %1616 = vst [vmem:[%s4 + $0x24] sm:$0xf] %v1552
      %1617 = vst [vmem:[%s4 + $0x28] sm:$0xf] %v1553
      %1618 = vst [vmem:[%s4 + $0x2c] sm:$0xf] %v1554
      %1619 = vst [vmem:[%s4 + $0x30] sm:$0xf] %v1555
      %1620 = vst [vmem:[%s4 + $0x34] sm:$0xf] %v1556
      %1621 = vst [vmem:[%s4 + $0x38] sm:$0xf] %v1557
      %1622 = vst [vmem:[%s4 + $0x3c] sm:$0xf] %v1558
      %1623 = vst [vmem:[%s4 + $0x40] sm:$0xf] %v1559
      %1624 = vst [vmem:[%s4 + $0x44] sm:$0xf] %v1560
      %1625 = vst [vmem:[%s4 + $0x48] sm:$0xf] %v1561
      %1626 = vst [vmem:[%s4 + $0x4c] sm:$0xf] %v1562
      %1627 = vst [vmem:[%s4 + $0x50] sm:$0xf] %v1563
      %1628 = vst [vmem:[%s4 + $0x54] sm:$0xf] %v1564
      %1629 = vst [vmem:[%s4 + $0x58] sm:$0xf] %v1565
      %1630 = vst [vmem:[%s4 + $0x5c] sm:$0xf] %v1566
      %1631 = vst [vmem:[%s4 + $0x60] sm:$0xf] %v1567
      %1632 = vst [vmem:[%s4 + $0x64] sm:$0xf] %v1568
      %1633 = vst [vmem:[%s4 + $0x68] sm:$0xf] %v1569
      %1634 = vst [vmem:[%s4 + $0x6c] sm:$0xf] %v1570
      %1635 = vst [vmem:[%s4 + $0x70] sm:$0xf] %v1571
      %1636 = vst [vmem:[%s4 + $0x74] sm:$0xf] %v1572
      %1637 = vst [vmem:[%s4 + $0x78] sm:$0xf] %v1573
      %1638 = vst [vmem:[%s4 + $0x7c] sm:$0xf] %v1574
    $region62: #{digae_forward.10} parent=1 // pred_fallthru
      _
    // Predicated region
    $region63: #{digae_forward.10} parent=1 // pred_check
      _
    $region64: #{digae_forward.10} parent=1 // pred_check_branch
      %1640 = sbr.rel (0) target = $region66
    $region65: #{digae_forward.10} parent=1 // pred_region
      _
    $region66: #{digae_forward.10} parent=1 // pred_fallthru
      _
    // Predicated region
    $region67: #{digae_forward.10} parent=1 // pred_check
      _
    $region68: #{digae_forward.10} parent=1 // pred_check_branch
      %1642 = sbr.rel (0) target = $region70
    $region69: #{digae_forward.10} parent=1 // pred_region
      _
    $region70: #{digae_forward.10} parent=1 // pred_fallthru
      _
    // Predicated region
    $region71: #{digae_forward.10} parent=1 // pred_check
      _
    $region72: #{digae_forward.10} parent=1 // pred_check_branch
      %1644 = sbr.rel (0) target = $region74
    $region73: #{digae_forward.10} parent=1 // pred_region
      _
    $region74: #{digae_forward.10} parent=1 // pred_fallthru
      _
    // Predicated region
    $region75: #{digae_forward.10} parent=1 // pred_check
      _
    $region76: #{digae_forward.10} parent=1 // pred_check_branch
      %1646 = sbr.rel (0) target = $region78
    $region77: #{digae_forward.10} parent=1 // pred_region
      _
    $region78: #{digae_forward.10} parent=1 // pred_fallthru
      _

// kernel: digae_forward.13
$region0: #{digae_forward.13}
  #allocation0 [shape = 'u32[]', space=smem, size = 0x4, offset = 0x4, fixed_abs, tag = 'smem constant byte address 0x4 - core index']
  #allocation1 [shape = 'u32[144,128]{1,0:T(1,128)}', space=vmem, size = 0x12000, scoped, tag = 'internal scratch']
  %s0 = inlined_call_operand.vmem [shape: bf16[256,128], index: 0, kind: input, shape index: {}]
  %s1 = inlined_call_operand.vmem [shape: bf16[128,256], index: 1, kind: input, shape index: {}]
  %s2 = inlined_call_operand.vmem [shape: bf16[256,256], index: 2, kind: output, shape index: {}]
  %s3 = sld [smem:[#allocation0]]
  $region18: #{digae_forward.13} parent=0
    _
  %s5 = ssub.s32 1, %s3
  %s6 = scalar_select 0, %s5, %s3
  // Predicated region
  $region2: #{digae_forward.13} parent=0 // pred_check
    _
  $region3: #{digae_forward.13} parent=0 // pred_check_branch
    %8 = sbr.rel (0) target = $region5
  $region4: #{digae_forward.13} parent=0 // pred_region
    _
  $region5: #{digae_forward.13} parent=0 // pred_fallthru
    _
  // Predicated region
  $region6: #{digae_forward.13} parent=0 // pred_check
    _
  $region7: #{digae_forward.13} parent=0 // pred_check_branch
    %10 = sbr.rel (0) target = $region9
  $region8: #{digae_forward.13} parent=0 // pred_region
    _
  $region9: #{digae_forward.13} parent=0 // pred_fallthru
    _
  %v12 = vld [vmem:[%s0] sm:$0xf]
  %v13 = vld [vmem:[%s0 + $0x4] sm:$0xf]
  %v14 = vld [vmem:[%s0 + $0x8] sm:$0xf]
  %v15 = vld [vmem:[%s0 + $0xc] sm:$0xf]
  %v16 = vld [vmem:[%s0 + $0x10] sm:$0xf]
  %v17 = vld [vmem:[%s0 + $0x14] sm:$0xf]
  %v18 = vld [vmem:[%s0 + $0x18] sm:$0xf]
  %v19 = vld [vmem:[%s0 + $0x1c] sm:$0xf]
  %v20 = vld [vmem:[%s0 + $0x20] sm:$0xf]
  %v21 = vld [vmem:[%s0 + $0x24] sm:$0xf]
  %v22 = vld [vmem:[%s0 + $0x28] sm:$0xf]
  %v23 = vld [vmem:[%s0 + $0x2c] sm:$0xf]
  %v24 = vld [vmem:[%s0 + $0x30] sm:$0xf]
  %v25 = vld [vmem:[%s0 + $0x34] sm:$0xf]
  %v26 = vld [vmem:[%s0 + $0x38] sm:$0xf]
  %v27 = vld [vmem:[%s0 + $0x3c] sm:$0xf]
  %v28 = vld [vmem:[%s0 + $0x40] sm:$0xf]
  %v29 = vld [vmem:[%s0 + $0x44] sm:$0xf]
  %v30 = vld [vmem:[%s0 + $0x48] sm:$0xf]
  %v31 = vld [vmem:[%s0 + $0x4c] sm:$0xf]
  %v32 = vld [vmem:[%s0 + $0x50] sm:$0xf]
  %v33 = vld [vmem:[%s0 + $0x54] sm:$0xf]
  %v34 = vld [vmem:[%s0 + $0x58] sm:$0xf]
  %v35 = vld [vmem:[%s0 + $0x5c] sm:$0xf]
  %v36 = vld [vmem:[%s0 + $0x60] sm:$0xf]
  %v37 = vld [vmem:[%s0 + $0x64] sm:$0xf]
  %v38 = vld [vmem:[%s0 + $0x68] sm:$0xf]
  %v39 = vld [vmem:[%s0 + $0x6c] sm:$0xf]
  %v40 = vld [vmem:[%s0 + $0x70] sm:$0xf]
  %v41 = vld [vmem:[%s0 + $0x74] sm:$0xf]
  %v42 = vld [vmem:[%s0 + $0x78] sm:$0xf]
  %v43 = vld [vmem:[%s0 + $0x7c] sm:$0xf]
  %v44 = vld [vmem:[%s1] sm:$0xff]
  %v45 = vld [vmem:[%s1 + $0x8] sm:$0xff]
  %v46 = vld [vmem:[%s1 + $0x10] sm:$0xff]
  %v47 = vld [vmem:[%s1 + $0x18] sm:$0xff]
  %v48 = vld [vmem:[%s1 + $0x20] sm:$0xff]
  %v49 = vld [vmem:[%s1 + $0x28] sm:$0xff]
  %v50 = vld [vmem:[%s1 + $0x30] sm:$0xff]
  %v51 = vld [vmem:[%s1 + $0x38] sm:$0xff]
  %v52 = vld [vmem:[%s1 + $0x40] sm:$0xff]
  %v53 = vld [vmem:[%s1 + $0x48] sm:$0xff]
  %v54 = vld [vmem:[%s1 + $0x50] sm:$0xff]
  %v55 = vld [vmem:[%s1 + $0x58] sm:$0xff]
  %v56 = vld [vmem:[%s1 + $0x60] sm:$0xff]
  %v57 = vld [vmem:[%s1 + $0x68] sm:$0xff]
  %v58 = vld [vmem:[%s1 + $0x70] sm:$0xff]
  %v59 = vld [vmem:[%s1 + $0x78] sm:$0xff]
  %v92 = vunpack.c.l.b16 %v12
  %v93 = vunpack.c.l.b16 %v13
  %v94 = vunpack.c.l.b16 %v14
  %v95 = vunpack.c.l.b16 %v15
  %v96 = vunpack.c.l.b16 %v16
  %v97 = vunpack.c.l.b16 %v17
  %v98 = vunpack.c.l.b16 %v18
  %v99 = vunpack.c.l.b16 %v19
  %v100 = vunpack.c.l.b16 %v20
  %v101 = vunpack.c.l.b16 %v21
  %v102 = vunpack.c.l.b16 %v22
  %v103 = vunpack.c.l.b16 %v23
  %v104 = vunpack.c.l.b16 %v24
  %v105 = vunpack.c.l.b16 %v25
  %v106 = vunpack.c.l.b16 %v26
  %v107 = vunpack.c.l.b16 %v27
  %v108 = vunpack.c.l.b16 %v28
  %v109 = vunpack.c.l.b16 %v29
  %v110 = vunpack.c.l.b16 %v30
  %v111 = vunpack.c.l.b16 %v31
  %v112 = vunpack.c.l.b16 %v32
  %v113 = vunpack.c.l.b16 %v33
  %v114 = vunpack.c.l.b16 %v34
  %v115 = vunpack.c.l.b16 %v35
  %v116 = vunpack.c.l.b16 %v36
  %v117 = vunpack.c.l.b16 %v37
  %v118 = vunpack.c.l.b16 %v38
  %v119 = vunpack.c.l.b16 %v39
  %v120 = vunpack.c.l.b16 %v40
  %v121 = vunpack.c.l.b16 %v41
  %v122 = vunpack.c.l.b16 %v42
  %v123 = vunpack.c.l.b16 %v43
  %v124 = vpack.c.b16 %v93, %v92
  %v125 = vpack.c.b16 %v95, %v94
  %v126 = vpack.c.b16 %v97, %v96
  %v127 = vpack.c.b16 %v99, %v98
  %v128 = vpack.c.b16 %v101, %v100
  %v129 = vpack.c.b16 %v103, %v102
  %v130 = vpack.c.b16 %v105, %v104
  %v131 = vpack.c.b16 %v107, %v106
  %v132 = vpack.c.b16 %v109, %v108
  %v133 = vpack.c.b16 %v111, %v110
  %v134 = vpack.c.b16 %v113, %v112
  %v135 = vpack.c.b16 %v115, %v114
  %v136 = vpack.c.b16 %v117, %v116
  %v137 = vpack.c.b16 %v119, %v118
  %v138 = vpack.c.b16 %v121, %v120
  %v139 = vpack.c.b16 %v123, %v122
  %v172 = vunpack.c.l.b16 %v44
  %v173 = vunpack.c.h.b16 %v44
  %v174 = vunpack.c.l.b16 %v45
  %v175 = vunpack.c.h.b16 %v45
  %v176 = vunpack.c.l.b16 %v46
  %v177 = vunpack.c.h.b16 %v46
  %v178 = vunpack.c.l.b16 %v47
  %v179 = vunpack.c.h.b16 %v47
  %v180 = vunpack.c.l.b16 %v48
  %v181 = vunpack.c.h.b16 %v48
  %v182 = vunpack.c.l.b16 %v49
  %v183 = vunpack.c.h.b16 %v49
  %v184 = vunpack.c.l.b16 %v50
  %v185 = vunpack.c.h.b16 %v50
  %v186 = vunpack.c.l.b16 %v51
  %v187 = vunpack.c.h.b16 %v51
  %v188 = vunpack.c.l.b16 %v52
  %v189 = vunpack.c.h.b16 %v52
  %v190 = vunpack.c.l.b16 %v53
  %v191 = vunpack.c.h.b16 %v53
  %v192 = vunpack.c.l.b16 %v54
  %v193 = vunpack.c.h.b16 %v54
  %v194 = vunpack.c.l.b16 %v55
  %v195 = vunpack.c.h.b16 %v55
  %v196 = vunpack.c.l.b16 %v56
  %v197 = vunpack.c.h.b16 %v56
  %v198 = vunpack.c.l.b16 %v57
  %v199 = vunpack.c.h.b16 %v57
  %v200 = vunpack.c.l.b16 %v58
  %v201 = vunpack.c.h.b16 %v58
  %v202 = vunpack.c.l.b16 %v59
  %v203 = vunpack.c.h.b16 %v59
  %v204 = vpack.c.b16 %v174, %v172
  %v205 = vpack.c.b16 %v175, %v173
  %v206 = vpack.c.b16 %v178, %v176
  %v207 = vpack.c.b16 %v179, %v177
  %v208 = vpack.c.b16 %v182, %v180
  %v209 = vpack.c.b16 %v183, %v181
  %v210 = vpack.c.b16 %v186, %v184
  %v211 = vpack.c.b16 %v187, %v185
  %v212 = vpack.c.b16 %v190, %v188
  %v213 = vpack.c.b16 %v191, %v189
  %v214 = vpack.c.b16 %v194, %v192
  %v215 = vpack.c.b16 %v195, %v193
  %v216 = vpack.c.b16 %v198, %v196
  %v217 = vpack.c.b16 %v199, %v197
  %v218 = vpack.c.b16 %v202, %v200
  %v219 = vpack.c.b16 %v203, %v201
  %236 = vmatprep.subr.bf16.mxu0 %v205
  %237 = vmatpush1.bf16.msra.mxu0 %v204
  %238 = vmatprep.subr.bf16.mxu0 %v207
  %239 = vmatpush1.bf16.msra.mxu0 %v206
  %240 = vmatprep.subr.bf16.mxu0 %v209
  %241 = vmatpush1.bf16.msra.mxu0 %v208
  %242 = vmatprep.subr.bf16.mxu0 %v211
  %243 = vmatpush1.bf16.msra.mxu0 %v210
  %244 = vmatprep.subr.bf16.mxu0 %v213
  %245 = vmatpush1.bf16.msra.mxu0 %v212
  %246 = vmatprep.subr.bf16.mxu0 %v215
  %247 = vmatpush1.bf16.msra.mxu0 %v214
  %248 = vmatprep.subr.bf16.mxu0 %v217
  %249 = vmatpush1.bf16.msra.mxu0 %v216
  %250 = vmatprep.subr.bf16.mxu0 %v219
  %251 = vmatpush1.bf16.msra.mxu0 %v218
  %252 = vmatprep.subr.bf16.mxu0 0
  %253 = vmatpush1.bf16.msra.mxu0 0
  %254 = vmatprep.subr.bf16.mxu0 0
  %255 = vmatpush1.bf16.msra.mxu0 0
  %256 = vmatprep.subr.bf16.mxu0 0
  %257 = vmatpush1.bf16.msra.mxu0 0
  %258 = vmatprep.subr.bf16.mxu0 0
  %259 = vmatpush1.bf16.msra.mxu0 0
  %260 = vmatprep.subr.bf16.mxu0 0
  %261 = vmatpush1.bf16.msra.mxu0 0
  %262 = vmatprep.subr.bf16.mxu0 0
  %263 = vmatpush1.bf16.msra.mxu0 0
  %264 = vmatprep.subr.bf16.mxu0 0
  %265 = vmatpush1.bf16.msra.mxu0 0
  %266 = vmatprep.subr.bf16.mxu0 0
  %267 = vmatpush1.bf16.msra.mxu0 0
  %268 = vmatprep.mubr.bf16.mxu0 0
  %269 = vmatmul.mubr.bf16.gmra.mrb[0].mxu0 %v124
  %v270 = vpop.f32.mrb[0].mxu0
  %v271 = vadd.f32 0.0, %v270
  %v272 = vpop.f32.mrb[0].mxu0
  %v273 = vadd.f32 0.0, %v272
  %v274 = vpop.f32.mrb[0].mxu0
  %v275 = vadd.f32 0.0, %v274
  %v276 = vpop.f32.mrb[0].mxu0
  %v277 = vadd.f32 0.0, %v276
  %278 = vmatprep.mubr.bf16.mxu0 0
  %279 = vmatmul.mubr.bf16.gmra.mrb[0].mxu0 %v125
  %v280 = vpop.f32.mrb[0].mxu0
  %v281 = vadd.f32 0.0, %v280
  %v282 = vpop.f32.mrb[0].mxu0
  %v283 = vadd.f32 0.0, %v282
  %v284 = vpop.f32.mrb[0].mxu0
  %v285 = vadd.f32 0.0, %v284
  %v286 = vpop.f32.mrb[0].mxu0
  %v287 = vadd.f32 0.0, %v286
  %288 = vmatprep.mubr.bf16.mxu0 0
  %289 = vmatmul.mubr.bf16.gmra.mrb[0].mxu0 %v126
  %v290 = vpop.f32.mrb[0].mxu0
  %v291 = vadd.f32 0.0, %v290
  %v292 = vpop.f32.mrb[0].mxu0
  %v293 = vadd.f32 0.0, %v292
  %v294 = vpop.f32.mrb[0].mxu0
  %v295 = vadd.f32 0.0, %v294
  %v296 = vpop.f32.mrb[0].mxu0
  %v297 = vadd.f32 0.0, %v296
  %298 = vmatprep.mubr.bf16.mxu0 0
  %299 = vmatmul.mubr.bf16.gmra.mrb[0].mxu0 %v127
  %v300 = vpop.f32.mrb[0].mxu0
  %v301 = vadd.f32 0.0, %v300
  %v302 = vpop.f32.mrb[0].mxu0
  %v303 = vadd.f32 0.0, %v302
  %v304 = vpop.f32.mrb[0].mxu0
  %v305 = vadd.f32 0.0, %v304
  %v306 = vpop.f32.mrb[0].mxu0
  %v307 = vadd.f32 0.0, %v306
  %308 = vmatprep.mubr.bf16.mxu0 0
  %309 = vmatmul.mubr.bf16.gmra.mrb[0].mxu0 %v128
  %v310 = vpop.f32.mrb[0].mxu0
  %v311 = vadd.f32 0.0, %v310
  %v312 = vpop.f32.mrb[0].mxu0
  %v313 = vadd.f32 0.0, %v312
  %v314 = vpop.f32.mrb[0].mxu0
  %v315 = vadd.f32 0.0, %v314
  %v316 = vpop.f32.mrb[0].mxu0
  %v317 = vadd.f32 0.0, %v316
  %318 = vmatprep.mubr.bf16.mxu0 0
  %319 = vmatmul.mubr.bf16.gmra.mrb[0].mxu0 %v129
  %v320 = vpop.f32.mrb[0].mxu0
  %v321 = vadd.f32 0.0, %v320
  %v322 = vpop.f32.mrb[0].mxu0
  %v323 = vadd.f32 0.0, %v322
  %v324 = vpop.f32.mrb[0].mxu0
  %v325 = vadd.f32 0.0, %v324
  %v326 = vpop.f32.mrb[0].mxu0
  %v327 = vadd.f32 0.0, %v326
  %328 = vmatprep.mubr.bf16.mxu0 0
  %329 = vmatmul.mubr.bf16.gmra.mrb[0].mxu0 %v130
  %v330 = vpop.f32.mrb[0].mxu0
  %v331 = vadd.f32 0.0, %v330
  %v332 = vpop.f32.mrb[0].mxu0
  %v333 = vadd.f32 0.0, %v332
  %v334 = vpop.f32.mrb[0].mxu0
  %v335 = vadd.f32 0.0, %v334
  %v336 = vpop.f32.mrb[0].mxu0
  %v337 = vadd.f32 0.0, %v336
  %338 = vmatprep.mubr.bf16.mxu0 0
  %339 = vmatmul.mubr.bf16.gmra.mrb[0].mxu0 %v131
  %v340 = vpop.f32.mrb[0].mxu0
  %v341 = vadd.f32 0.0, %v340
  %v342 = vpop.f32.mrb[0].mxu0
  %v343 = vadd.f32 0.0, %v342
  %v344 = vpop.f32.mrb[0].mxu0
  %v345 = vadd.f32 0.0, %v344
  %v346 = vpop.f32.mrb[0].mxu0
  %v347 = vadd.f32 0.0, %v346
  %348 = vmatprep.mubr.bf16.mxu0 0
  %349 = vmatmul.mubr.bf16.gmra.mrb[0].mxu0 %v132
  %v350 = vpop.f32.mrb[0].mxu0
  %v351 = vadd.f32 0.0, %v350
  %v352 = vpop.f32.mrb[0].mxu0
  %v353 = vadd.f32 0.0, %v352
  %v354 = vpop.f32.mrb[0].mxu0
  %v355 = vadd.f32 0.0, %v354
  %v356 = vpop.f32.mrb[0].mxu0
  %v357 = vadd.f32 0.0, %v356
  %358 = vmatprep.mubr.bf16.mxu0 0
  %359 = vmatmul.mubr.bf16.gmra.mrb[0].mxu0 %v133
  %v360 = vpop.f32.mrb[0].mxu0
  %v361 = vadd.f32 0.0, %v360
  %v362 = vpop.f32.mrb[0].mxu0
  %v363 = vadd.f32 0.0, %v362
  %v364 = vpop.f32.mrb[0].mxu0
  %v365 = vadd.f32 0.0, %v364
  %v366 = vpop.f32.mrb[0].mxu0
  %v367 = vadd.f32 0.0, %v366
  %368 = vmatprep.mubr.bf16.mxu0 0
  %369 = vmatmul.mubr.bf16.gmra.mrb[0].mxu0 %v134
  %v370 = vpop.f32.mrb[0].mxu0
  %v371 = vadd.f32 0.0, %v370
  %v372 = vpop.f32.mrb[0].mxu0
  %v373 = vadd.f32 0.0, %v372
  %v374 = vpop.f32.mrb[0].mxu0
  %v375 = vadd.f32 0.0, %v374
  %v376 = vpop.f32.mrb[0].mxu0
  %v377 = vadd.f32 0.0, %v376
  %378 = vmatprep.mubr.bf16.mxu0 0
  %379 = vmatmul.mubr.bf16.gmra.mrb[0].mxu0 %v135
  %v380 = vpop.f32.mrb[0].mxu0
  %v381 = vadd.f32 0.0, %v380
  %v382 = vpop.f32.mrb[0].mxu0
  %v383 = vadd.f32 0.0, %v382
  %v384 = vpop.f32.mrb[0].mxu0
  %v385 = vadd.f32 0.0, %v384
  %v386 = vpop.f32.mrb[0].mxu0
  %v387 = vadd.f32 0.0, %v386
  %388 = vmatprep.mubr.bf16.mxu0 0
  %389 = vmatmul.mubr.bf16.gmra.mrb[0].mxu0 %v136
  %v390 = vpop.f32.mrb[0].mxu0
  %v391 = vadd.f32 0.0, %v390
  %v392 = vpop.f32.mrb[0].mxu0
  %v393 = vadd.f32 0.0, %v392
  %v394 = vpop.f32.mrb[0].mxu0
  %v395 = vadd.f32 0.0, %v394
  %v396 = vpop.f32.mrb[0].mxu0
  %v397 = vadd.f32 0.0, %v396
  %398 = vmatprep.mubr.bf16.mxu0 0
  %399 = vmatmul.mubr.bf16.gmra.mrb[0].mxu0 %v137
  %v400 = vpop.f32.mrb[0].mxu0
  %v401 = vadd.f32 0.0, %v400
  %v402 = vpop.f32.mrb[0].mxu0
  %v403 = vadd.f32 0.0, %v402
  %v404 = vpop.f32.mrb[0].mxu0
  %v405 = vadd.f32 0.0, %v404
  %v406 = vpop.f32.mrb[0].mxu0
  %v407 = vadd.f32 0.0, %v406
  %408 = vmatprep.mubr.bf16.mxu0 0
  %409 = vmatmul.mubr.bf16.gmra.mrb[0].mxu0 %v138
  %v410 = vpop.f32.mrb[0].mxu0
  %v411 = vadd.f32 0.0, %v410
  %v412 = vpop.f32.mrb[0].mxu0
  %v413 = vadd.f32 0.0, %v412
  %v414 = vpop.f32.mrb[0].mxu0
  %v415 = vadd.f32 0.0, %v414
  %v416 = vpop.f32.mrb[0].mxu0
  %v417 = vadd.f32 0.0, %v416
  %418 = vmatprep.mubr.bf16.mxu0 0
  %419 = vmatmul.mubr.bf16.gmra.mrb[0].mxu0 %v139
  %v420 = vpop.f32.mrb[0].mxu0
  %v421 = vadd.f32 0.0, %v420
  %v422 = vpop.f32.mrb[0].mxu0
  %v423 = vadd.f32 0.0, %v422
  %v424 = vpop.f32.mrb[0].mxu0
  %v425 = vadd.f32 0.0, %v424
  %v426 = vpop.f32.mrb[0].mxu0
  %v427 = vadd.f32 0.0, %v426
  %428 = vdwg.mxu0
  %v429 = vxor.u32 %v271, 2147483648
  %v430 = vxor.u32 %v273, 2147483648
  %v431 = vxor.u32 %v275, 2147483648
  %v432 = vxor.u32 %v277, 2147483648
  %v433 = vxor.u32 %v281, 2147483648
  %v434 = vxor.u32 %v283, 2147483648
  %v435 = vxor.u32 %v285, 2147483648
  %v436 = vxor.u32 %v287, 2147483648
  %v437 = vxor.u32 %v291, 2147483648
  %v438 = vxor.u32 %v293, 2147483648
  %v439 = vxor.u32 %v295, 2147483648
  %v440 = vxor.u32 %v297, 2147483648
  %v441 = vxor.u32 %v301, 2147483648
  %v442 = vxor.u32 %v303, 2147483648
  %v443 = vxor.u32 %v305, 2147483648
  %v444 = vxor.u32 %v307, 2147483648
  %v445 = vxor.u32 %v311, 2147483648
  %v446 = vxor.u32 %v313, 2147483648
  %v447 = vxor.u32 %v315, 2147483648
  %v448 = vxor.u32 %v317, 2147483648
  %v449 = vxor.u32 %v321, 2147483648
  %v450 = vxor.u32 %v323, 2147483648
  %v451 = vxor.u32 %v325, 2147483648
  %v452 = vxor.u32 %v327, 2147483648
  %v453 = vxor.u32 %v331, 2147483648
  %v454 = vxor.u32 %v333, 2147483648
  %v455 = vxor.u32 %v335, 2147483648
  %v456 = vxor.u32 %v337, 2147483648
  %v457 = vxor.u32 %v341, 2147483648
  %v458 = vxor.u32 %v343, 2147483648
  %v459 = vxor.u32 %v345, 2147483648
  %v460 = vxor.u32 %v347, 2147483648
  %v461 = vxor.u32 %v351, 2147483648
  %v462 = vxor.u32 %v353, 2147483648
  %v463 = vxor.u32 %v355, 2147483648
  %v464 = vxor.u32 %v357, 2147483648
  %v465 = vxor.u32 %v361, 2147483648
  %v466 = vxor.u32 %v363, 2147483648
  %v467 = vxor.u32 %v365, 2147483648
  %v468 = vxor.u32 %v367, 2147483648
  %v469 = vxor.u32 %v371, 2147483648
  %v470 = vxor.u32 %v373, 2147483648
  %v471 = vxor.u32 %v375, 2147483648
  %v472 = vxor.u32 %v377, 2147483648
  %v473 = vxor.u32 %v381, 2147483648
  %v474 = vxor.u32 %v383, 2147483648
  %v475 = vxor.u32 %v385, 2147483648
  %v476 = vxor.u32 %v387, 2147483648
  %v477 = vxor.u32 %v391, 2147483648
  %v478 = vxor.u32 %v393, 2147483648
  %v479 = vxor.u32 %v395, 2147483648
  %v480 = vxor.u32 %v397, 2147483648
  %v481 = vxor.u32 %v401, 2147483648
  %v482 = vxor.u32 %v403, 2147483648
  %v483 = vxor.u32 %v405, 2147483648
  %v484 = vxor.u32 %v407, 2147483648
  %v485 = vxor.u32 %v411, 2147483648
  %v486 = vxor.u32 %v413, 2147483648
  %v487 = vxor.u32 %v415, 2147483648
  %v488 = vxor.u32 %v417, 2147483648
  %v489 = vxor.u32 %v421, 2147483648
  %v490 = vxor.u32 %v423, 2147483648
  %v491 = vxor.u32 %v425, 2147483648
  %v492 = vxor.u32 %v427, 2147483648
  %v493 = vmul.f32 %v429, 1.442695
  %v494 = vpow.pop %v493
  %v495 = vmul.f32 %v430, 1.442695
  %v496 = vpow.pop %v495
  %v497 = vmul.f32 %v431, 1.442695
  %v498 = vpow.pop %v497
  %v499 = vmul.f32 %v432, 1.442695
  %v500 = vpow.pop %v499
  %v501 = vmul.f32 %v433, 1.442695
  %v502 = vpow.pop %v501
  %v503 = vmul.f32 %v434, 1.442695
  %v504 = vpow.pop %v503
  %v505 = vmul.f32 %v435, 1.442695
  %v506 = vpow.pop %v505
  %v507 = vmul.f32 %v436, 1.442695
  %v508 = vpow.pop %v507
  %v509 = vmul.f32 %v437, 1.442695
  %v510 = vpow.pop %v509
  %v511 = vmul.f32 %v438, 1.442695
  %v512 = vpow.pop %v511
  %v513 = vmul.f32 %v439, 1.442695
  %v514 = vpow.pop %v513
  %v515 = vmul.f32 %v440, 1.442695
  %v516 = vpow.pop %v515
  %v517 = vmul.f32 %v441, 1.442695
  %v518 = vpow.pop %v517
  %v519 = vmul.f32 %v442, 1.442695
  %v520 = vpow.pop %v519
  %v521 = vmul.f32 %v443, 1.442695
  %v522 = vpow.pop %v521
  %v523 = vmul.f32 %v444, 1.442695
  %v524 = vpow.pop %v523
  %v525 = vmul.f32 %v445, 1.442695
  %v526 = vpow.pop %v525
  %v527 = vmul.f32 %v446, 1.442695
  %v528 = vpow.pop %v527
  %v529 = vmul.f32 %v447, 1.442695
  %v530 = vpow.pop %v529
  %v531 = vmul.f32 %v448, 1.442695
  %v532 = vpow.pop %v531
  %v533 = vmul.f32 %v449, 1.442695
  %v534 = vpow.pop %v533
  %v535 = vmul.f32 %v450, 1.442695
  %v536 = vpow.pop %v535
  %v537 = vmul.f32 %v451, 1.442695
  %v538 = vpow.pop %v537
  %v539 = vmul.f32 %v452, 1.442695
  %v540 = vpow.pop %v539
  %v541 = vmul.f32 %v453, 1.442695
  %v542 = vpow.pop %v541
  %v543 = vmul.f32 %v454, 1.442695
  %v544 = vpow.pop %v543
  %v545 = vmul.f32 %v455, 1.442695
  %v546 = vpow.pop %v545
  %v547 = vmul.f32 %v456, 1.442695
  %v548 = vpow.pop %v547
  %v549 = vmul.f32 %v457, 1.442695
  %v550 = vpow.pop %v549
  %v551 = vmul.f32 %v458, 1.442695
  %v552 = vpow.pop %v551
  %v553 = vmul.f32 %v459, 1.442695
  %v554 = vpow.pop %v553
  %v555 = vmul.f32 %v460, 1.442695
  %v556 = vpow.pop %v555
  %v557 = vmul.f32 %v461, 1.442695
  %v558 = vpow.pop %v557
  %v559 = vmul.f32 %v462, 1.442695
  %v560 = vpow.pop %v559
  %v561 = vmul.f32 %v463, 1.442695
  %v562 = vpow.pop %v561
  %v563 = vmul.f32 %v464, 1.442695
  %v564 = vpow.pop %v563
  %v565 = vmul.f32 %v465, 1.442695
  %v566 = vpow.pop %v565
  %v567 = vmul.f32 %v466, 1.442695
  %v568 = vpow.pop %v567
  %v569 = vmul.f32 %v467, 1.442695
  %v570 = vpow.pop %v569
  %v571 = vmul.f32 %v468, 1.442695
  %v572 = vpow.pop %v571
  %v573 = vmul.f32 %v469, 1.442695
  %v574 = vpow.pop %v573
  %v575 = vmul.f32 %v470, 1.442695
  %v576 = vpow.pop %v575
  %v577 = vmul.f32 %v471, 1.442695
  %v578 = vpow.pop %v577
  %v579 = vmul.f32 %v472, 1.442695
  %v580 = vpow.pop %v579
  %v581 = vmul.f32 %v473, 1.442695
  %v582 = vpow.pop %v581
  %v583 = vmul.f32 %v474, 1.442695
  %v584 = vpow.pop %v583
  %v585 = vmul.f32 %v475, 1.442695
  %v586 = vpow.pop %v585
  %v587 = vmul.f32 %v476, 1.442695
  %v588 = vpow.pop %v587
  %v589 = vmul.f32 %v477, 1.442695
  %v590 = vpow.pop %v589
  %v591 = vmul.f32 %v478, 1.442695
  %v592 = vpow.pop %v591
  %v593 = vmul.f32 %v479, 1.442695
  %v594 = vpow.pop %v593
  %v595 = vmul.f32 %v480, 1.442695
  %v596 = vpow.pop %v595
  %v597 = vmul.f32 %v481, 1.442695
  %v598 = vpow.pop %v597
  %v599 = vmul.f32 %v482, 1.442695
  %v600 = vpow.pop %v599
  %v601 = vmul.f32 %v483, 1.442695
  %v602 = vpow.pop %v601
  %v603 = vmul.f32 %v484, 1.442695
  %v604 = vpow.pop %v603
  %v605 = vmul.f32 %v485, 1.442695
  %v606 = vpow.pop %v605
  %v607 = vmul.f32 %v486, 1.442695
  %v608 = vpow.pop %v607
  %v609 = vmul.f32 %v487, 1.442695
  %v610 = vpow.pop %v609
  %v611 = vmul.f32 %v488, 1.442695
  %v612 = vpow.pop %v611
  %v613 = vmul.f32 %v489, 1.442695
  %v614 = vpow.pop %v613
  %v615 = vmul.f32 %v490, 1.442695
  %v616 = vpow.pop %v615
  %v617 = vmul.f32 %v491, 1.442695
  %v618 = vpow.pop %v617
  %v619 = vmul.f32 %v492, 1.442695
  %v620 = vpow.pop %v619
  %v621 = vadd.f32 %v494, 1.0
  %v622 = vadd.f32 %v496, 1.0
  %v623 = vadd.f32 %v498, 1.0
  %v624 = vadd.f32 %v500, 1.0
  %v625 = vadd.f32 %v502, 1.0
  %v626 = vadd.f32 %v504, 1.0
  %v627 = vadd.f32 %v506, 1.0
  %v628 = vadd.f32 %v508, 1.0
  %v629 = vadd.f32 %v510, 1.0
  %v630 = vadd.f32 %v512, 1.0
  %v631 = vadd.f32 %v514, 1.0
  %v632 = vadd.f32 %v516, 1.0
  %v633 = vadd.f32 %v518, 1.0
  %v634 = vadd.f32 %v520, 1.0
  %v635 = vadd.f32 %v522, 1.0
  %v636 = vadd.f32 %v524, 1.0
  %v637 = vadd.f32 %v526, 1.0
  %v638 = vadd.f32 %v528, 1.0
  %v639 = vadd.f32 %v530, 1.0
  %v640 = vadd.f32 %v532, 1.0
  %v641 = vadd.f32 %v534, 1.0
  %v642 = vadd.f32 %v536, 1.0
  %v643 = vadd.f32 %v538, 1.0
  %v644 = vadd.f32 %v540, 1.0
  %v645 = vadd.f32 %v542, 1.0
  %v646 = vadd.f32 %v544, 1.0
  %v647 = vadd.f32 %v546, 1.0
  %v648 = vadd.f32 %v548, 1.0
  %v649 = vadd.f32 %v550, 1.0
  %v650 = vadd.f32 %v552, 1.0
  %v651 = vadd.f32 %v554, 1.0
  %v652 = vadd.f32 %v556, 1.0
  %v653 = vadd.f32 %v558, 1.0
  %v654 = vadd.f32 %v560, 1.0
  %v655 = vadd.f32 %v562, 1.0
  %v656 = vadd.f32 %v564, 1.0
  %v657 = vadd.f32 %v566, 1.0
  %v658 = vadd.f32 %v568, 1.0
  %v659 = vadd.f32 %v570, 1.0
  %v660 = vadd.f32 %v572, 1.0
  %v661 = vadd.f32 %v574, 1.0
  %v662 = vadd.f32 %v576, 1.0
  %v663 = vadd.f32 %v578, 1.0
  %v664 = vadd.f32 %v580, 1.0
  %v665 = vadd.f32 %v582, 1.0
  %v666 = vadd.f32 %v584, 1.0
  %v667 = vadd.f32 %v586, 1.0
  %v668 = vadd.f32 %v588, 1.0
  %v669 = vadd.f32 %v590, 1.0
  %v670 = vadd.f32 %v592, 1.0
  %v671 = vadd.f32 %v594, 1.0
  %v672 = vadd.f32 %v596, 1.0
  %v673 = vadd.f32 %v598, 1.0
  %v674 = vadd.f32 %v600, 1.0
  %v675 = vadd.f32 %v602, 1.0
  %v676 = vadd.f32 %v604, 1.0
  %v677 = vadd.f32 %v606, 1.0
  %v678 = vadd.f32 %v608, 1.0
  %v679 = vadd.f32 %v610, 1.0
  %v680 = vadd.f32 %v612, 1.0
  %v681 = vadd.f32 %v614, 1.0
  %v682 = vadd.f32 %v616, 1.0
  %v683 = vadd.f32 %v618, 1.0
  %v684 = vadd.f32 %v620, 1.0
  %v685 = vrcp.pop %v621
  %v686 = vmul.f32 1.0, %v685
  %v687 = vrcp.pop %v622
  %v688 = vmul.f32 1.0, %v687
  %v689 = vrcp.pop %v623
  %v690 = vmul.f32 1.0, %v689
  %v691 = vrcp.pop %v624
  %v692 = vmul.f32 1.0, %v691
  %v693 = vrcp.pop %v625
  %v694 = vmul.f32 1.0, %v693
  %v695 = vrcp.pop %v626
  %v696 = vmul.f32 1.0, %v695
  %v697 = vrcp.pop %v627
  %v698 = vmul.f32 1.0, %v697
  %v699 = vrcp.pop %v628
  %v700 = vmul.f32 1.0, %v699
  %v701 = vrcp.pop %v629
  %v702 = vmul.f32 1.0, %v701
  %v703 = vrcp.pop %v630
  %v704 = vmul.f32 1.0, %v703
  %v705 = vrcp.pop %v631
  %v706 = vmul.f32 1.0, %v705
  %v707 = vrcp.pop %v632
  %v708 = vmul.f32 1.0, %v707
  %v709 = vrcp.pop %v633
  %v710 = vmul.f32 1.0, %v709
  %v711 = vrcp.pop %v634
  %v712 = vmul.f32 1.0, %v711
  %v713 = vrcp.pop %v635
  %v714 = vmul.f32 1.0, %v713
  %v715 = vrcp.pop %v636
  %v716 = vmul.f32 1.0, %v715
  %v717 = vrcp.pop %v637
  %v718 = vmul.f32 1.0, %v717
  %v719 = vrcp.pop %v638
  %v720 = vmul.f32 1.0, %v719
  %v721 = vrcp.pop %v639
  %v722 = vmul.f32 1.0, %v721
  %v723 = vrcp.pop %v640
  %v724 = vmul.f32 1.0, %v723
  %v725 = vrcp.pop %v641
  %v726 = vmul.f32 1.0, %v725
  %v727 = vrcp.pop %v642
  %v728 = vmul.f32 1.0, %v727
  %v729 = vrcp.pop %v643
  %v730 = vmul.f32 1.0, %v729
  %v731 = vrcp.pop %v644
  %v732 = vmul.f32 1.0, %v731
  %v733 = vrcp.pop %v645
  %v734 = vmul.f32 1.0, %v733
  %v735 = vrcp.pop %v646
  %v736 = vmul.f32 1.0, %v735
  %v737 = vrcp.pop %v647
  %v738 = vmul.f32 1.0, %v737
  %v739 = vrcp.pop %v648
  %v740 = vmul.f32 1.0, %v739
  %v741 = vrcp.pop %v649
  %v742 = vmul.f32 1.0, %v741
  %v743 = vrcp.pop %v650
  %v744 = vmul.f32 1.0, %v743
  %v745 = vrcp.pop %v651
  %v746 = vmul.f32 1.0, %v745
  %v747 = vrcp.pop %v652
  %v748 = vmul.f32 1.0, %v747
  %v749 = vrcp.pop %v653
  %v750 = vmul.f32 1.0, %v749
  %v751 = vrcp.pop %v654
  %v752 = vmul.f32 1.0, %v751
  %v753 = vrcp.pop %v655
  %v754 = vmul.f32 1.0, %v753
  %v755 = vrcp.pop %v656
  %v756 = vmul.f32 1.0, %v755
  %v757 = vrcp.pop %v657
  %v758 = vmul.f32 1.0, %v757
  %v759 = vrcp.pop %v658
  %v760 = vmul.f32 1.0, %v759
  %v761 = vrcp.pop %v659
  %v762 = vmul.f32 1.0, %v761
  %v763 = vrcp.pop %v660
  %v764 = vmul.f32 1.0, %v763
  %v765 = vrcp.pop %v661
  %v766 = vmul.f32 1.0, %v765
  %v767 = vrcp.pop %v662
  %v768 = vmul.f32 1.0, %v767
  %v769 = vrcp.pop %v663
  %v770 = vmul.f32 1.0, %v769
  %v771 = vrcp.pop %v664
  %v772 = vmul.f32 1.0, %v771
  %v773 = vrcp.pop %v665
  %v774 = vmul.f32 1.0, %v773
  %v775 = vrcp.pop %v666
  %v776 = vmul.f32 1.0, %v775
  %v777 = vrcp.pop %v667
  %v778 = vmul.f32 1.0, %v777
  %v779 = vrcp.pop %v668
  %v780 = vmul.f32 1.0, %v779
  %v781 = vrcp.pop %v669
  %v782 = vmul.f32 1.0, %v781
  %v783 = vrcp.pop %v670
  %v784 = vmul.f32 1.0, %v783
  %v785 = vrcp.pop %v671
  %v786 = vmul.f32 1.0, %v785
  %v787 = vrcp.pop %v672
  %v788 = vmul.f32 1.0, %v787
  %v789 = vrcp.pop %v673
  %v790 = vmul.f32 1.0, %v789
  %v791 = vrcp.pop %v674
  %v792 = vmul.f32 1.0, %v791
  %v793 = vrcp.pop %v675
  %v794 = vmul.f32 1.0, %v793
  %v795 = vrcp.pop %v676
  %v796 = vmul.f32 1.0, %v795
  %v797 = vrcp.pop %v677
  %v798 = vmul.f32 1.0, %v797
  %v799 = vrcp.pop %v678
  %v800 = vmul.f32 1.0, %v799
  %v801 = vrcp.pop %v679
  %v802 = vmul.f32 1.0, %v801
  %v803 = vrcp.pop %v680
  %v804 = vmul.f32 1.0, %v803
  %v805 = vrcp.pop %v681
  %v806 = vmul.f32 1.0, %v805
  %v807 = vrcp.pop %v682
  %v808 = vmul.f32 1.0, %v807
  %v809 = vrcp.pop %v683
  %v810 = vmul.f32 1.0, %v809
  %v811 = vrcp.pop %v684
  %v812 = vmul.f32 1.0, %v811
  %v813 = vpack.c.bf16 %v690, %v686
  %v814 = vpack.c.bf16 %v692, %v688
  %v815 = vpack.c.bf16 %v698, %v694
  %v816 = vpack.c.bf16 %v700, %v696
  %v817 = vpack.c.bf16 %v706, %v702
  %v818 = vpack.c.bf16 %v708, %v704
  %v819 = vpack.c.bf16 %v714, %v710
  %v820 = vpack.c.bf16 %v716, %v712
  %v821 = vpack.c.bf16 %v722, %v718
  %v822 = vpack.c.bf16 %v724, %v720
  %v823 = vpack.c.bf16 %v730, %v726
  %v824 = vpack.c.bf16 %v732, %v728
  %v825 = vpack.c.bf16 %v738, %v734
  %v826 = vpack.c.bf16 %v740, %v736
  %v827 = vpack.c.bf16 %v746, %v742
  %v828 = vpack.c.bf16 %v748, %v744
  %v829 = vpack.c.bf16 %v754, %v750
  %v830 = vpack.c.bf16 %v756, %v752
  %v831 = vpack.c.bf16 %v762, %v758
  %v832 = vpack.c.bf16 %v764, %v760
  %v833 = vpack.c.bf16 %v770, %v766
  %v834 = vpack.c.bf16 %v772, %v768
  %v835 = vpack.c.bf16 %v778, %v774
  %v836 = vpack.c.bf16 %v780, %v776
  %v837 = vpack.c.bf16 %v786, %v782
  %v838 = vpack.c.bf16 %v788, %v784
  %v839 = vpack.c.bf16 %v794, %v790
  %v840 = vpack.c.bf16 %v796, %v792
  %v841 = vpack.c.bf16 %v802, %v798
  %v842 = vpack.c.bf16 %v804, %v800
  %v843 = vpack.c.bf16 %v810, %v806
  %v844 = vpack.c.bf16 %v812, %v808
  %v877 = vunpack.c.l.b16 %v813
  %v878 = vunpack.c.l.b16 %v814
  %v879 = vunpack.c.h.b16 %v813
  %v880 = vunpack.c.h.b16 %v814
  %v881 = vunpack.c.l.b16 %v815
  %v882 = vunpack.c.l.b16 %v816
  %v883 = vunpack.c.h.b16 %v815
  %v884 = vunpack.c.h.b16 %v816
  %v885 = vunpack.c.l.b16 %v817
  %v886 = vunpack.c.l.b16 %v818
  %v887 = vunpack.c.h.b16 %v817
  %v888 = vunpack.c.h.b16 %v818
  %v889 = vunpack.c.l.b16 %v819
  %v890 = vunpack.c.l.b16 %v820
  %v891 = vunpack.c.h.b16 %v819
  %v892 = vunpack.c.h.b16 %v820
  %v893 = vunpack.c.l.b16 %v821
  %v894 = vunpack.c.l.b16 %v822
  %v895 = vunpack.c.h.b16 %v821
  %v896 = vunpack.c.h.b16 %v822
  %v897 = vunpack.c.l.b16 %v823
  %v898 = vunpack.c.l.b16 %v824
  %v899 = vunpack.c.h.b16 %v823
  %v900 = vunpack.c.h.b16 %v824
  %v901 = vunpack.c.l.b16 %v825
  %v902 = vunpack.c.l.b16 %v826
  %v903 = vunpack.c.h.b16 %v825
  %v904 = vunpack.c.h.b16 %v826
  %v905 = vunpack.c.l.b16 %v827
  %v906 = vunpack.c.l.b16 %v828
  %v907 = vunpack.c.h.b16 %v827
  %v908 = vunpack.c.h.b16 %v828
  %v909 = vunpack.c.l.b16 %v829
  %v910 = vunpack.c.l.b16 %v830
  %v911 = vunpack.c.h.b16 %v829
  %v912 = vunpack.c.h.b16 %v830
  %v913 = vunpack.c.l.b16 %v831
  %v914 = vunpack.c.l.b16 %v832
  %v915 = vunpack.c.h.b16 %v831
  %v916 = vunpack.c.h.b16 %v832
  %v917 = vunpack.c.l.b16 %v833
  %v918 = vunpack.c.l.b16 %v834
  %v919 = vunpack.c.h.b16 %v833
  %v920 = vunpack.c.h.b16 %v834
  %v921 = vunpack.c.l.b16 %v835
  %v922 = vunpack.c.l.b16 %v836
  %v923 = vunpack.c.h.b16 %v835
  %v924 = vunpack.c.h.b16 %v836
  %v925 = vunpack.c.l.b16 %v837
  %v926 = vunpack.c.l.b16 %v838
  %v927 = vunpack.c.h.b16 %v837
  %v928 = vunpack.c.h.b16 %v838
  %v929 = vunpack.c.l.b16 %v839
  %v930 = vunpack.c.l.b16 %v840
  %v931 = vunpack.c.h.b16 %v839
  %v932 = vunpack.c.h.b16 %v840
  %v933 = vunpack.c.l.b16 %v841
  %v934 = vunpack.c.l.b16 %v842
  %v935 = vunpack.c.h.b16 %v841
  %v936 = vunpack.c.h.b16 %v842
  %v937 = vunpack.c.l.b16 %v843
  %v938 = vunpack.c.l.b16 %v844
  %v939 = vunpack.c.h.b16 %v843
  %v940 = vunpack.c.h.b16 %v844
  %v941 = vpack.c.b16 %v878, %v877
  %v942 = vpack.c.b16 %v880, %v879
  %v943 = vpack.c.b16 %v882, %v881
  %v944 = vpack.c.b16 %v884, %v883
  %v945 = vpack.c.b16 %v886, %v885
  %v946 = vpack.c.b16 %v888, %v887
  %v947 = vpack.c.b16 %v890, %v889
  %v948 = vpack.c.b16 %v892, %v891
  %v949 = vpack.c.b16 %v894, %v893
  %v950 = vpack.c.b16 %v896, %v895
  %v951 = vpack.c.b16 %v898, %v897
  %v952 = vpack.c.b16 %v900, %v899
  %v953 = vpack.c.b16 %v902, %v901
  %v954 = vpack.c.b16 %v904, %v903
  %v955 = vpack.c.b16 %v906, %v905
  %v956 = vpack.c.b16 %v908, %v907
  %v957 = vpack.c.b16 %v910, %v909
  %v958 = vpack.c.b16 %v912, %v911
  %v959 = vpack.c.b16 %v914, %v913
  %v960 = vpack.c.b16 %v916, %v915
  %v961 = vpack.c.b16 %v918, %v917
  %v962 = vpack.c.b16 %v920, %v919
  %v963 = vpack.c.b16 %v922, %v921
  %v964 = vpack.c.b16 %v924, %v923
  %v965 = vpack.c.b16 %v926, %v925
  %v966 = vpack.c.b16 %v928, %v927
  %v967 = vpack.c.b16 %v930, %v929
  %v968 = vpack.c.b16 %v932, %v931
  %v969 = vpack.c.b16 %v934, %v933
  %v970 = vpack.c.b16 %v936, %v935
  %v971 = vpack.c.b16 %v938, %v937
  %v972 = vpack.c.b16 %v940, %v939
  %1005 = vst [vmem:[%s2] sm:$0xff] %v941
  %1006 = vst [vmem:[%s2 + $0x8] sm:$0xff] %v942
  %1007 = vst [vmem:[%s2 + $0x10] sm:$0xff] %v943
  %1008 = vst [vmem:[%s2 + $0x18] sm:$0xff] %v944
  %1009 = vst [vmem:[%s2 + $0x20] sm:$0xff] %v945
  %1010 = vst [vmem:[%s2 + $0x28] sm:$0xff] %v946
  %1011 = vst [vmem:[%s2 + $0x30] sm:$0xff] %v947
  %1012 = vst [vmem:[%s2 + $0x38] sm:$0xff] %v948
  %1013 = vst [vmem:[%s2 + $0x40] sm:$0xff] %v949
  %1014 = vst [vmem:[%s2 + $0x48] sm:$0xff] %v950
  %1015 = vst [vmem:[%s2 + $0x50] sm:$0xff] %v951
  %1016 = vst [vmem:[%s2 + $0x58] sm:$0xff] %v952
  %1017 = vst [vmem:[%s2 + $0x60] sm:$0xff] %v953
  %1018 = vst [vmem:[%s2 + $0x68] sm:$0xff] %v954
  %1019 = vst [vmem:[%s2 + $0x70] sm:$0xff] %v955
  %1020 = vst [vmem:[%s2 + $0x78] sm:$0xff] %v956
  %1021 = vst [vmem:[%s2 + $0x80] sm:$0xff] %v957
  %1022 = vst [vmem:[%s2 + $0x88] sm:$0xff] %v958
  %1023 = vst [vmem:[%s2 + $0x90] sm:$0xff] %v959
  %1024 = vst [vmem:[%s2 + $0x98] sm:$0xff] %v960
  %1025 = vst [vmem:[%s2 + $0xa0] sm:$0xff] %v961
  %1026 = vst [vmem:[%s2 + $0xa8] sm:$0xff] %v962
  %1027 = vst [vmem:[%s2 + $0xb0] sm:$0xff] %v963
  %1028 = vst [vmem:[%s2 + $0xb8] sm:$0xff] %v964
  %1029 = vst [vmem:[%s2 + $0xc0] sm:$0xff] %v965
  %1030 = vst [vmem:[%s2 + $0xc8] sm:$0xff] %v966
  %1031 = vst [vmem:[%s2 + $0xd0] sm:$0xff] %v967
  %1032 = vst [vmem:[%s2 + $0xd8] sm:$0xff] %v968
  %1033 = vst [vmem:[%s2 + $0xe0] sm:$0xff] %v969
  %1034 = vst [vmem:[%s2 + $0xe8] sm:$0xff] %v970
  %1035 = vst [vmem:[%s2 + $0xf0] sm:$0xff] %v971
  %1036 = vst [vmem:[%s2 + $0xf8] sm:$0xff] %v972
  // Predicated region
  $region10: #{digae_forward.13} parent=0 // pred_check
    _
  $region11: #{digae_forward.13} parent=0 // pred_check_branch
    %1038 = sbr.rel (0) target = $region13
  $region12: #{digae_forward.13} parent=0 // pred_region
    _
  $region13: #{digae_forward.13} parent=0 // pred_fallthru
    _
  // Predicated region
  $region14: #{digae_forward.13} parent=0 // pred_check
    _
  $region15: #{digae_forward.13} parent=0 // pred_check_branch
    %1040 = sbr.rel (0) target = $region17
  $region16: #{digae_forward.13} parent=0 // pred_region
    _
  $region17: #{digae_forward.13} parent=0 // pred_fallthru
    _

// kernel: digae_forward.12
$region0: #{digae_forward.12}
  #allocation0 [shape = 'u32[]', space=smem, size = 0x4, offset = 0x4, fixed_abs, tag = 'smem constant byte address 0x4 - core index']
  #allocation1 [shape = 'u32[144,128]{1,0:T(1,128)}', space=vmem, size = 0x12000, scoped, tag = 'internal scratch']
  #allocation2 [shape = 'f32[256,128]{1,0:T(8,128)}', space=vmem, size = 0x20000, scoped, tag = 'scratch operand']
  %s0 = inlined_call_operand.vmem [shape: bf16[256,256], index: 0, kind: input, shape index: {}]
  %s1 = inlined_call_operand.vmem [shape: bf16[256,128], index: 1, kind: input, shape index: {}]
  %s2 = inlined_call_operand.vmem [shape: bf16[256,128], index: 2, kind: output, shape index: {}]
  %s3 = sld [smem:[#allocation0]]
  $region26: #{digae_forward.12} parent=0
    _
  %s5 = ssub.s32 1, %s3
  %s6 = scalar_select 0, %s5, %s3
  // Predicated region
  $region2: #{digae_forward.12} parent=0 // pred_check
    _
  $region3: #{digae_forward.12} parent=0 // pred_check_branch
    %8 = sbr.rel (0) target = $region5
  $region4: #{digae_forward.12} parent=0 // pred_region
    _
  $region5: #{digae_forward.12} parent=0 // pred_fallthru
    _
  // Predicated region
  $region6: #{digae_forward.12} parent=0 // pred_check
    _
  $region7: #{digae_forward.12} parent=0 // pred_check_branch
    %10 = sbr.rel (0) target = $region9
  $region8: #{digae_forward.12} parent=0 // pred_region
    _
  $region9: #{digae_forward.12} parent=0 // pred_fallthru
    _
  %p12 = scmp.eq.s32.totalorder 0, 0
  // Predicated region
  $region10: #{digae_forward.12} parent=0 // pred_check
    %p13 = pneg %p12
  $region11: #{digae_forward.12} parent=0 // pred_check_branch
    %15 = sbr.rel (%p13) target = $region13
  $region12: #{digae_forward.12} parent=0 // pred_region
    %16 = vst [vmem:[#allocation2] sm:$0xff] 0.0
    %17 = vst [vmem:[#allocation2 + $0x8] sm:$0xff] 0.0
    %18 = vst [vmem:[#allocation2 + $0x10] sm:$0xff] 0.0
    %19 = vst [vmem:[#allocation2 + $0x18] sm:$0xff] 0.0
    %20 = vst [vmem:[#allocation2 + $0x20] sm:$0xff] 0.0
    %21 = vst [vmem:[#allocation2 + $0x28] sm:$0xff] 0.0
    %22 = vst [vmem:[#allocation2 + $0x30] sm:$0xff] 0.0
    %23 = vst [vmem:[#allocation2 + $0x38] sm:$0xff] 0.0
    %24 = vst [vmem:[#allocation2 + $0x40] sm:$0xff] 0.0
    %25 = vst [vmem:[#allocation2 + $0x48] sm:$0xff] 0.0
    %26 = vst [vmem:[#allocation2 + $0x50] sm:$0xff] 0.0
    %27 = vst [vmem:[#allocation2 + $0x58] sm:$0xff] 0.0
    %28 = vst [vmem:[#allocation2 + $0x60] sm:$0xff] 0.0
    %29 = vst [vmem:[#allocation2 + $0x68] sm:$0xff] 0.0
    %30 = vst [vmem:[#allocation2 + $0x70] sm:$0xff] 0.0
    %31 = vst [vmem:[#allocation2 + $0x78] sm:$0xff] 0.0
    %32 = vst [vmem:[#allocation2 + $0x80] sm:$0xff] 0.0
    %33 = vst [vmem:[#allocation2 + $0x88] sm:$0xff] 0.0
    %34 = vst [vmem:[#allocation2 + $0x90] sm:$0xff] 0.0
    %35 = vst [vmem:[#allocation2 + $0x98] sm:$0xff] 0.0
    %36 = vst [vmem:[#allocation2 + $0xa0] sm:$0xff] 0.0
    %37 = vst [vmem:[#allocation2 + $0xa8] sm:$0xff] 0.0
    %38 = vst [vmem:[#allocation2 + $0xb0] sm:$0xff] 0.0
    %39 = vst [vmem:[#allocation2 + $0xb8] sm:$0xff] 0.0
    %40 = vst [vmem:[#allocation2 + $0xc0] sm:$0xff] 0.0
    %41 = vst [vmem:[#allocation2 + $0xc8] sm:$0xff] 0.0
    %42 = vst [vmem:[#allocation2 + $0xd0] sm:$0xff] 0.0
    %43 = vst [vmem:[#allocation2 + $0xd8] sm:$0xff] 0.0
    %44 = vst [vmem:[#allocation2 + $0xe0] sm:$0xff] 0.0
    %45 = vst [vmem:[#allocation2 + $0xe8] sm:$0xff] 0.0
    %46 = vst [vmem:[#allocation2 + $0xf0] sm:$0xff] 0.0
    %47 = vst [vmem:[#allocation2 + $0xf8] sm:$0xff] 0.0
  $region13: #{digae_forward.12} parent=0 // pred_fallthru
    _
  %s48 = smul.u32 0, 256
  %s49 = sshra.s32 %s48, 3
  %s50 = sand.u32 %s48, 7
  %s51 = smul.addr %s49, 4
  %s52 = scalar_lea.vmem %s1, %s51
  %v53 = vld [vmem:[%s52] sm:$0xf]
  %v54 = vld [vmem:[%s52 + $0x4] sm:$0xf]
  %v55 = vld [vmem:[%s52 + $0x8] sm:$0xf]
  %v56 = vld [vmem:[%s52 + $0xc] sm:$0xf]
  %v57 = vld [vmem:[%s52 + $0x10] sm:$0xf]
  %v58 = vld [vmem:[%s52 + $0x14] sm:$0xf]
  %v59 = vld [vmem:[%s52 + $0x18] sm:$0xf]
  %v60 = vld [vmem:[%s52 + $0x1c] sm:$0xf]
  %v61 = vld [vmem:[%s52 + $0x20] sm:$0xf]
  %v62 = vld [vmem:[%s52 + $0x24] sm:$0xf]
  %v63 = vld [vmem:[%s52 + $0x28] sm:$0xf]
  %v64 = vld [vmem:[%s52 + $0x2c] sm:$0xf]
  %v65 = vld [vmem:[%s52 + $0x30] sm:$0xf]
  %v66 = vld [vmem:[%s52 + $0x34] sm:$0xf]
  %v67 = vld [vmem:[%s52 + $0x38] sm:$0xf]
  %v68 = vld [vmem:[%s52 + $0x3c] sm:$0xf]
  %v69 = vld [vmem:[%s52 + $0x40] sm:$0xf]
  %v70 = vld [vmem:[%s52 + $0x44] sm:$0xf]
  %v71 = vld [vmem:[%s52 + $0x48] sm:$0xf]
  %v72 = vld [vmem:[%s52 + $0x4c] sm:$0xf]
  %v73 = vld [vmem:[%s52 + $0x50] sm:$0xf]
  %v74 = vld [vmem:[%s52 + $0x54] sm:$0xf]
  %v75 = vld [vmem:[%s52 + $0x58] sm:$0xf]
  %v76 = vld [vmem:[%s52 + $0x5c] sm:$0xf]
  %v77 = vld [vmem:[%s52 + $0x60] sm:$0xf]
  %v78 = vld [vmem:[%s52 + $0x64] sm:$0xf]
  %v79 = vld [vmem:[%s52 + $0x68] sm:$0xf]
  %v80 = vld [vmem:[%s52 + $0x6c] sm:$0xf]
  %v81 = vld [vmem:[%s52 + $0x70] sm:$0xf]
  %v82 = vld [vmem:[%s52 + $0x74] sm:$0xf]
  %v83 = vld [vmem:[%s52 + $0x78] sm:$0xf]
  %v84 = vld [vmem:[%s52 + $0x7c] sm:$0xf]
  %v85 = vld [vmem:[#allocation2] sm:$0xff]
  %v86 = vld [vmem:[#allocation2 + $0x8] sm:$0xff]
  %v87 = vld [vmem:[#allocation2 + $0x10] sm:$0xff]
  %v88 = vld [vmem:[#allocation2 + $0x18] sm:$0xff]
  %v89 = vld [vmem:[#allocation2 + $0x20] sm:$0xff]
  %v90 = vld [vmem:[#allocation2 + $0x28] sm:$0xff]
  %v91 = vld [vmem:[#allocation2 + $0x30] sm:$0xff]
  %v92 = vld [vmem:[#allocation2 + $0x38] sm:$0xff]
  %v93 = vld [vmem:[#allocation2 + $0x40] sm:$0xff]
  %v94 = vld [vmem:[#allocation2 + $0x48] sm:$0xff]
  %v95 = vld [vmem:[#allocation2 + $0x50] sm:$0xff]
  %v96 = vld [vmem:[#allocation2 + $0x58] sm:$0xff]
  %v97 = vld [vmem:[#allocation2 + $0x60] sm:$0xff]
  %v98 = vld [vmem:[#allocation2 + $0x68] sm:$0xff]
  %v99 = vld [vmem:[#allocation2 + $0x70] sm:$0xff]
  %v100 = vld [vmem:[#allocation2 + $0x78] sm:$0xff]
  %v101 = vld [vmem:[#allocation2 + $0x80] sm:$0xff]
  %v102 = vld [vmem:[#allocation2 + $0x88] sm:$0xff]
  %v103 = vld [vmem:[#allocation2 + $0x90] sm:$0xff]
  %v104 = vld [vmem:[#allocation2 + $0x98] sm:$0xff]
  %v105 = vld [vmem:[#allocation2 + $0xa0] sm:$0xff]
  %v106 = vld [vmem:[#allocation2 + $0xa8] sm:$0xff]
  %v107 = vld [vmem:[#allocation2 + $0xb0] sm:$0xff]
  %v108 = vld [vmem:[#allocation2 + $0xb8] sm:$0xff]
  %v109 = vld [vmem:[#allocation2 + $0xc0] sm:$0xff]
  %v110 = vld [vmem:[#allocation2 + $0xc8] sm:$0xff]
  %v111 = vld [vmem:[#allocation2 + $0xd0] sm:$0xff]
  %v112 = vld [vmem:[#allocation2 + $0xd8] sm:$0xff]
  %v113 = vld [vmem:[#allocation2 + $0xe0] sm:$0xff]
  %v114 = vld [vmem:[#allocation2 + $0xe8] sm:$0xff]
  %v115 = vld [vmem:[#allocation2 + $0xf0] sm:$0xff]
  %v116 = vld [vmem:[#allocation2 + $0xf8] sm:$0xff]
  %v117 = vld [vmem:[%s0] sm:$0xff]
  %v118 = vld [vmem:[%s0 + $0x8] sm:$0xff]
  %v119 = vld [vmem:[%s0 + $0x10] sm:$0xff]
  %v120 = vld [vmem:[%s0 + $0x18] sm:$0xff]
  %v121 = vld [vmem:[%s0 + $0x20] sm:$0xff]
  %v122 = vld [vmem:[%s0 + $0x28] sm:$0xff]
  %v123 = vld [vmem:[%s0 + $0x30] sm:$0xff]
  %v124 = vld [vmem:[%s0 + $0x38] sm:$0xff]
  %v125 = vld [vmem:[%s0 + $0x40] sm:$0xff]
  %v126 = vld [vmem:[%s0 + $0x48] sm:$0xff]
  %v127 = vld [vmem:[%s0 + $0x50] sm:$0xff]
  %v128 = vld [vmem:[%s0 + $0x58] sm:$0xff]
  %v129 = vld [vmem:[%s0 + $0x60] sm:$0xff]
  %v130 = vld [vmem:[%s0 + $0x68] sm:$0xff]
  %v131 = vld [vmem:[%s0 + $0x70] sm:$0xff]
  %v132 = vld [vmem:[%s0 + $0x78] sm:$0xff]
  %v133 = vld [vmem:[%s0 + $0x80] sm:$0xff]
  %v134 = vld [vmem:[%s0 + $0x88] sm:$0xff]
  %v135 = vld [vmem:[%s0 + $0x90] sm:$0xff]
  %v136 = vld [vmem:[%s0 + $0x98] sm:$0xff]
  %v137 = vld [vmem:[%s0 + $0xa0] sm:$0xff]
  %v138 = vld [vmem:[%s0 + $0xa8] sm:$0xff]
  %v139 = vld [vmem:[%s0 + $0xb0] sm:$0xff]
  %v140 = vld [vmem:[%s0 + $0xb8] sm:$0xff]
  %v141 = vld [vmem:[%s0 + $0xc0] sm:$0xff]
  %v142 = vld [vmem:[%s0 + $0xc8] sm:$0xff]
  %v143 = vld [vmem:[%s0 + $0xd0] sm:$0xff]
  %v144 = vld [vmem:[%s0 + $0xd8] sm:$0xff]
  %v145 = vld [vmem:[%s0 + $0xe0] sm:$0xff]
  %v146 = vld [vmem:[%s0 + $0xe8] sm:$0xff]
  %v147 = vld [vmem:[%s0 + $0xf0] sm:$0xff]
  %v148 = vld [vmem:[%s0 + $0xf8] sm:$0xff]
  %v181 = vunpack.c.l.b16 %v117
  %v182 = vunpack.c.h.b16 %v117
  %v183 = vunpack.c.l.b16 %v118
  %v184 = vunpack.c.h.b16 %v118
  %v185 = vunpack.c.l.b16 %v119
  %v186 = vunpack.c.h.b16 %v119
  %v187 = vunpack.c.l.b16 %v120
  %v188 = vunpack.c.h.b16 %v120
  %v189 = vunpack.c.l.b16 %v121
  %v190 = vunpack.c.h.b16 %v121
  %v191 = vunpack.c.l.b16 %v122
  %v192 = vunpack.c.h.b16 %v122
  %v193 = vunpack.c.l.b16 %v123
  %v194 = vunpack.c.h.b16 %v123
  %v195 = vunpack.c.l.b16 %v124
  %v196 = vunpack.c.h.b16 %v124
  %v197 = vunpack.c.l.b16 %v125
  %v198 = vunpack.c.h.b16 %v125
  %v199 = vunpack.c.l.b16 %v126
  %v200 = vunpack.c.h.b16 %v126
  %v201 = vunpack.c.l.b16 %v127
  %v202 = vunpack.c.h.b16 %v127
  %v203 = vunpack.c.l.b16 %v128
  %v204 = vunpack.c.h.b16 %v128
  %v205 = vunpack.c.l.b16 %v129
  %v206 = vunpack.c.h.b16 %v129
  %v207 = vunpack.c.l.b16 %v130
  %v208 = vunpack.c.h.b16 %v130
  %v209 = vunpack.c.l.b16 %v131
  %v210 = vunpack.c.h.b16 %v131
  %v211 = vunpack.c.l.b16 %v132
  %v212 = vunpack.c.h.b16 %v132
  %v213 = vunpack.c.l.b16 %v133
  %v214 = vunpack.c.h.b16 %v133
  %v215 = vunpack.c.l.b16 %v134
  %v216 = vunpack.c.h.b16 %v134
  %v217 = vunpack.c.l.b16 %v135
  %v218 = vunpack.c.h.b16 %v135
  %v219 = vunpack.c.l.b16 %v136
  %v220 = vunpack.c.h.b16 %v136
  %v221 = vunpack.c.l.b16 %v137
  %v222 = vunpack.c.h.b16 %v137
  %v223 = vunpack.c.l.b16 %v138
  %v224 = vunpack.c.h.b16 %v138
  %v225 = vunpack.c.l.b16 %v139
  %v226 = vunpack.c.h.b16 %v139
  %v227 = vunpack.c.l.b16 %v140
  %v228 = vunpack.c.h.b16 %v140
  %v229 = vunpack.c.l.b16 %v141
  %v230 = vunpack.c.h.b16 %v141
  %v231 = vunpack.c.l.b16 %v142
  %v232 = vunpack.c.h.b16 %v142
  %v233 = vunpack.c.l.b16 %v143
  %v234 = vunpack.c.h.b16 %v143
  %v235 = vunpack.c.l.b16 %v144
  %v236 = vunpack.c.h.b16 %v144
  %v237 = vunpack.c.l.b16 %v145
  %v238 = vunpack.c.h.b16 %v145
  %v239 = vunpack.c.l.b16 %v146
  %v240 = vunpack.c.h.b16 %v146
  %v241 = vunpack.c.l.b16 %v147
  %v242 = vunpack.c.h.b16 %v147
  %v243 = vunpack.c.l.b16 %v148
  %v244 = vunpack.c.h.b16 %v148
  %v245 = vpack.c.b16 %v183, %v181
  %v246 = vpack.c.b16 %v184, %v182
  %v247 = vpack.c.b16 %v187, %v185
  %v248 = vpack.c.b16 %v188, %v186
  %v249 = vpack.c.b16 %v191, %v189
  %v250 = vpack.c.b16 %v192, %v190
  %v251 = vpack.c.b16 %v195, %v193
  %v252 = vpack.c.b16 %v196, %v194
  %v253 = vpack.c.b16 %v199, %v197
  %v254 = vpack.c.b16 %v200, %v198
  %v255 = vpack.c.b16 %v203, %v201
  %v256 = vpack.c.b16 %v204, %v202
  %v257 = vpack.c.b16 %v207, %v205
  %v258 = vpack.c.b16 %v208, %v206
  %v259 = vpack.c.b16 %v211, %v209
  %v260 = vpack.c.b16 %v212, %v210
  %v261 = vpack.c.b16 %v215, %v213
  %v262 = vpack.c.b16 %v216, %v214
  %v263 = vpack.c.b16 %v219, %v217
  %v264 = vpack.c.b16 %v220, %v218
  %v265 = vpack.c.b16 %v223, %v221
  %v266 = vpack.c.b16 %v224, %v222
  %v267 = vpack.c.b16 %v227, %v225
  %v268 = vpack.c.b16 %v228, %v226
  %v269 = vpack.c.b16 %v231, %v229
  %v270 = vpack.c.b16 %v232, %v230
  %v271 = vpack.c.b16 %v235, %v233
  %v272 = vpack.c.b16 %v236, %v234
  %v273 = vpack.c.b16 %v239, %v237
  %v274 = vpack.c.b16 %v240, %v238
  %v275 = vpack.c.b16 %v243, %v241
  %v276 = vpack.c.b16 %v244, %v242
  %v341 = vunpack.c.l.b16 %v53
  %v342 = vunpack.c.l.b16 %v54
  %v343 = vunpack.c.l.b16 %v55
  %v344 = vunpack.c.l.b16 %v56
  %v345 = vunpack.c.l.b16 %v57
  %v346 = vunpack.c.l.b16 %v58
  %v347 = vunpack.c.l.b16 %v59
  %v348 = vunpack.c.l.b16 %v60
  %v349 = vunpack.c.l.b16 %v61
  %v350 = vunpack.c.l.b16 %v62
  %v351 = vunpack.c.l.b16 %v63
  %v352 = vunpack.c.l.b16 %v64
  %v353 = vunpack.c.l.b16 %v65
  %v354 = vunpack.c.l.b16 %v66
  %v355 = vunpack.c.l.b16 %v67
  %v356 = vunpack.c.l.b16 %v68
  %v357 = vunpack.c.l.b16 %v69
  %v358 = vunpack.c.l.b16 %v70
  %v359 = vunpack.c.l.b16 %v71
  %v360 = vunpack.c.l.b16 %v72
  %v361 = vunpack.c.l.b16 %v73
  %v362 = vunpack.c.l.b16 %v74
  %v363 = vunpack.c.l.b16 %v75
  %v364 = vunpack.c.l.b16 %v76
  %v365 = vunpack.c.l.b16 %v77
  %v366 = vunpack.c.l.b16 %v78
  %v367 = vunpack.c.l.b16 %v79
  %v368 = vunpack.c.l.b16 %v80
  %v369 = vunpack.c.l.b16 %v81
  %v370 = vunpack.c.l.b16 %v82
  %v371 = vunpack.c.l.b16 %v83
  %v372 = vunpack.c.l.b16 %v84
  %v373 = vpack.c.b16 %v342, %v341
  %v374 = vpack.c.b16 %v344, %v343
  %v375 = vpack.c.b16 %v346, %v345
  %v376 = vpack.c.b16 %v348, %v347
  %v377 = vpack.c.b16 %v350, %v349
  %v378 = vpack.c.b16 %v352, %v351
  %v379 = vpack.c.b16 %v354, %v353
  %v380 = vpack.c.b16 %v356, %v355
  %v381 = vpack.c.b16 %v358, %v357
  %v382 = vpack.c.b16 %v360, %v359
  %v383 = vpack.c.b16 %v362, %v361
  %v384 = vpack.c.b16 %v364, %v363
  %v385 = vpack.c.b16 %v366, %v365
  %v386 = vpack.c.b16 %v368, %v367
  %v387 = vpack.c.b16 %v370, %v369
  %v388 = vpack.c.b16 %v372, %v371
  %405 = vmatprep.subr.bf16.mxu0 0
  %406 = vmatpush1.bf16.msra.mxu0 %v373
  %407 = vmatprep.subr.bf16.mxu0 0
  %408 = vmatpush1.bf16.msra.mxu0 %v374
  %409 = vmatprep.subr.bf16.mxu0 0
  %410 = vmatpush1.bf16.msra.mxu0 %v375
  %411 = vmatprep.subr.bf16.mxu0 0
  %412 = vmatpush1.bf16.msra.mxu0 %v376
  %413 = vmatprep.subr.bf16.mxu0 0
  %414 = vmatpush1.bf16.msra.mxu0 %v377
  %415 = vmatprep.subr.bf16.mxu0 0
  %416 = vmatpush1.bf16.msra.mxu0 %v378
  %417 = vmatprep.subr.bf16.mxu0 0
  %418 = vmatpush1.bf16.msra.mxu0 %v379
  %419 = vmatprep.subr.bf16.mxu0 0
  %420 = vmatpush1.bf16.msra.mxu0 %v380
  %421 = vmatprep.subr.bf16.mxu0 0
  %422 = vmatpush1.bf16.msra.mxu0 %v381
  %423 = vmatprep.subr.bf16.mxu0 0
  %424 = vmatpush1.bf16.msra.mxu0 %v382
  %425 = vmatprep.subr.bf16.mxu0 0
  %426 = vmatpush1.bf16.msra.mxu0 %v383
  %427 = vmatprep.subr.bf16.mxu0 0
  %428 = vmatpush1.bf16.msra.mxu0 %v384
  %429 = vmatprep.subr.bf16.mxu0 0
  %430 = vmatpush1.bf16.msra.mxu0 %v385
  %431 = vmatprep.subr.bf16.mxu0 0
  %432 = vmatpush1.bf16.msra.mxu0 %v386
  %433 = vmatprep.subr.bf16.mxu0 0
  %434 = vmatpush1.bf16.msra.mxu0 %v387
  %435 = vmatprep.subr.bf16.mxu0 0
  %436 = vmatpush1.bf16.msra.mxu0 %v388
  %437 = vmatprep.mubr.bf16.mxu0 %v246
  %438 = vmatmul.mubr.bf16.gmra.mrb[0].mxu0 %v245
  %v439 = vpop.f32.mrb[0].mxu0
  %v440 = vadd.f32 0.0, %v439
  %v441 = vpop.f32.mrb[0].mxu0
  %v442 = vpop.f32.mrb[0].mxu0
  %v443 = vadd.f32 0.0, %v442
  %v444 = vpop.f32.mrb[0].mxu0
  %445 = vmatprep.mubr.bf16.mxu0 %v248
  %446 = vmatmul.mubr.bf16.gmra.mrb[0].mxu0 %v247
  %v447 = vpop.f32.mrb[0].mxu0
  %v448 = vadd.f32 0.0, %v447
  %v449 = vpop.f32.mrb[0].mxu0
  %v450 = vpop.f32.mrb[0].mxu0
  %v451 = vadd.f32 0.0, %v450
  %v452 = vpop.f32.mrb[0].mxu0
  %453 = vmatprep.mubr.bf16.mxu0 %v250
  %454 = vmatmul.mubr.bf16.gmra.mrb[0].mxu0 %v249
  %v455 = vpop.f32.mrb[0].mxu0
  %v456 = vadd.f32 0.0, %v455
  %v457 = vpop.f32.mrb[0].mxu0
  %v458 = vpop.f32.mrb[0].mxu0
  %v459 = vadd.f32 0.0, %v458
  %v460 = vpop.f32.mrb[0].mxu0
  %461 = vmatprep.mubr.bf16.mxu0 %v252
  %462 = vmatmul.mubr.bf16.gmra.mrb[0].mxu0 %v251
  %v463 = vpop.f32.mrb[0].mxu0
  %v464 = vadd.f32 0.0, %v463
  %v465 = vpop.f32.mrb[0].mxu0
  %v466 = vpop.f32.mrb[0].mxu0
  %v467 = vadd.f32 0.0, %v466
  %v468 = vpop.f32.mrb[0].mxu0
  %469 = vmatprep.mubr.bf16.mxu0 %v254
  %470 = vmatmul.mubr.bf16.gmra.mrb[0].mxu0 %v253
  %v471 = vpop.f32.mrb[0].mxu0
  %v472 = vadd.f32 0.0, %v471
  %v473 = vpop.f32.mrb[0].mxu0
  %v474 = vpop.f32.mrb[0].mxu0
  %v475 = vadd.f32 0.0, %v474
  %v476 = vpop.f32.mrb[0].mxu0
  %477 = vmatprep.mubr.bf16.mxu0 %v256
  %478 = vmatmul.mubr.bf16.gmra.mrb[0].mxu0 %v255
  %v479 = vpop.f32.mrb[0].mxu0
  %v480 = vadd.f32 0.0, %v479
  %v481 = vpop.f32.mrb[0].mxu0
  %v482 = vpop.f32.mrb[0].mxu0
  %v483 = vadd.f32 0.0, %v482
  %v484 = vpop.f32.mrb[0].mxu0
  %485 = vmatprep.mubr.bf16.mxu0 %v258
  %486 = vmatmul.mubr.bf16.gmra.mrb[0].mxu0 %v257
  %v487 = vpop.f32.mrb[0].mxu0
  %v488 = vadd.f32 0.0, %v487
  %v489 = vpop.f32.mrb[0].mxu0
  %v490 = vpop.f32.mrb[0].mxu0
  %v491 = vadd.f32 0.0, %v490
  %v492 = vpop.f32.mrb[0].mxu0
  %493 = vmatprep.mubr.bf16.mxu0 %v260
  %494 = vmatmul.mubr.bf16.gmra.mrb[0].mxu0 %v259
  %v495 = vpop.f32.mrb[0].mxu0
  %v496 = vadd.f32 0.0, %v495
  %v497 = vpop.f32.mrb[0].mxu0
  %v498 = vpop.f32.mrb[0].mxu0
  %v499 = vadd.f32 0.0, %v498
  %v500 = vpop.f32.mrb[0].mxu0
  %501 = vmatprep.mubr.bf16.mxu0 %v262
  %502 = vmatmul.mubr.bf16.gmra.mrb[0].mxu0 %v261
  %v503 = vpop.f32.mrb[0].mxu0
  %v504 = vadd.f32 0.0, %v503
  %v505 = vpop.f32.mrb[0].mxu0
  %v506 = vpop.f32.mrb[0].mxu0
  %v507 = vadd.f32 0.0, %v506
  %v508 = vpop.f32.mrb[0].mxu0
  %509 = vmatprep.mubr.bf16.mxu0 %v264
  %510 = vmatmul.mubr.bf16.gmra.mrb[0].mxu0 %v263
  %v511 = vpop.f32.mrb[0].mxu0
  %v512 = vadd.f32 0.0, %v511
  %v513 = vpop.f32.mrb[0].mxu0
  %v514 = vpop.f32.mrb[0].mxu0
  %v515 = vadd.f32 0.0, %v514
  %v516 = vpop.f32.mrb[0].mxu0
  %517 = vmatprep.mubr.bf16.mxu0 %v266
  %518 = vmatmul.mubr.bf16.gmra.mrb[0].mxu0 %v265
  %v519 = vpop.f32.mrb[0].mxu0
  %v520 = vadd.f32 0.0, %v519
  %v521 = vpop.f32.mrb[0].mxu0
  %v522 = vpop.f32.mrb[0].mxu0
  %v523 = vadd.f32 0.0, %v522
  %v524 = vpop.f32.mrb[0].mxu0
  %525 = vmatprep.mubr.bf16.mxu0 %v268
  %526 = vmatmul.mubr.bf16.gmra.mrb[0].mxu0 %v267
  %v527 = vpop.f32.mrb[0].mxu0
  %v528 = vadd.f32 0.0, %v527
  %v529 = vpop.f32.mrb[0].mxu0
  %v530 = vpop.f32.mrb[0].mxu0
  %v531 = vadd.f32 0.0, %v530
  %v532 = vpop.f32.mrb[0].mxu0
  %533 = vmatprep.mubr.bf16.mxu0 %v270
  %534 = vmatmul.mubr.bf16.gmra.mrb[0].mxu0 %v269
  %v535 = vpop.f32.mrb[0].mxu0
  %v536 = vadd.f32 0.0, %v535
  %v537 = vpop.f32.mrb[0].mxu0
  %v538 = vpop.f32.mrb[0].mxu0
  %v539 = vadd.f32 0.0, %v538
  %v540 = vpop.f32.mrb[0].mxu0
  %541 = vmatprep.mubr.bf16.mxu0 %v272
  %542 = vmatmul.mubr.bf16.gmra.mrb[0].mxu0 %v271
  %v543 = vpop.f32.mrb[0].mxu0
  %v544 = vadd.f32 0.0, %v543
  %v545 = vpop.f32.mrb[0].mxu0
  %v546 = vpop.f32.mrb[0].mxu0
  %v547 = vadd.f32 0.0, %v546
  %v548 = vpop.f32.mrb[0].mxu0
  %549 = vmatprep.mubr.bf16.mxu0 %v274
  %550 = vmatmul.mubr.bf16.gmra.mrb[0].mxu0 %v273
  %v551 = vpop.f32.mrb[0].mxu0
  %v552 = vadd.f32 0.0, %v551
  %v553 = vpop.f32.mrb[0].mxu0
  %v554 = vpop.f32.mrb[0].mxu0
  %v555 = vadd.f32 0.0, %v554
  %v556 = vpop.f32.mrb[0].mxu0
  %557 = vmatprep.mubr.bf16.mxu0 %v276
  %558 = vmatmul.mubr.bf16.gmra.mrb[0].mxu0 %v275
  %v559 = vpop.f32.mrb[0].mxu0
  %v560 = vadd.f32 0.0, %v559
  %v561 = vpop.f32.mrb[0].mxu0
  %v562 = vpop.f32.mrb[0].mxu0
  %v563 = vadd.f32 0.0, %v562
  %v564 = vpop.f32.mrb[0].mxu0
  %565 = vdwg.mxu0
  %v566 = vadd.f32 %v85, %v440
  %v567 = vadd.f32 %v86, %v443
  %v568 = vadd.f32 %v87, %v448
  %v569 = vadd.f32 %v88, %v451
  %v570 = vadd.f32 %v89, %v456
  %v571 = vadd.f32 %v90, %v459
  %v572 = vadd.f32 %v91, %v464
  %v573 = vadd.f32 %v92, %v467
  %v574 = vadd.f32 %v93, %v472
  %v575 = vadd.f32 %v94, %v475
  %v576 = vadd.f32 %v95, %v480
  %v577 = vadd.f32 %v96, %v483
  %v578 = vadd.f32 %v97, %v488
  %v579 = vadd.f32 %v98, %v491
  %v580 = vadd.f32 %v99, %v496
  %v581 = vadd.f32 %v100, %v499
  %v582 = vadd.f32 %v101, %v504
  %v583 = vadd.f32 %v102, %v507
  %v584 = vadd.f32 %v103, %v512
  %v585 = vadd.f32 %v104, %v515
  %v586 = vadd.f32 %v105, %v520
  %v587 = vadd.f32 %v106, %v523
  %v588 = vadd.f32 %v107, %v528
  %v589 = vadd.f32 %v108, %v531
  %v590 = vadd.f32 %v109, %v536
  %v591 = vadd.f32 %v110, %v539
  %v592 = vadd.f32 %v111, %v544
  %v593 = vadd.f32 %v112, %v547
  %v594 = vadd.f32 %v113, %v552
  %v595 = vadd.f32 %v114, %v555
  %v596 = vadd.f32 %v115, %v560
  %v597 = vadd.f32 %v116, %v563
  %598 = vst [vmem:[#allocation2] sm:$0xff] %v566
  %599 = vst [vmem:[#allocation2 + $0x8] sm:$0xff] %v567
  %600 = vst [vmem:[#allocation2 + $0x10] sm:$0xff] %v568
  %601 = vst [vmem:[#allocation2 + $0x18] sm:$0xff] %v569
  %602 = vst [vmem:[#allocation2 + $0x20] sm:$0xff] %v570
  %603 = vst [vmem:[#allocation2 + $0x28] sm:$0xff] %v571
  %604 = vst [vmem:[#allocation2 + $0x30] sm:$0xff] %v572
  %605 = vst [vmem:[#allocation2 + $0x38] sm:$0xff] %v573
  %606 = vst [vmem:[#allocation2 + $0x40] sm:$0xff] %v574
  %607 = vst [vmem:[#allocation2 + $0x48] sm:$0xff] %v575
  %608 = vst [vmem:[#allocation2 + $0x50] sm:$0xff] %v576
  %609 = vst [vmem:[#allocation2 + $0x58] sm:$0xff] %v577
  %610 = vst [vmem:[#allocation2 + $0x60] sm:$0xff] %v578
  %611 = vst [vmem:[#allocation2 + $0x68] sm:$0xff] %v579
  %612 = vst [vmem:[#allocation2 + $0x70] sm:$0xff] %v580
  %613 = vst [vmem:[#allocation2 + $0x78] sm:$0xff] %v581
  %614 = vst [vmem:[#allocation2 + $0x80] sm:$0xff] %v582
  %615 = vst [vmem:[#allocation2 + $0x88] sm:$0xff] %v583
  %616 = vst [vmem:[#allocation2 + $0x90] sm:$0xff] %v584
  %617 = vst [vmem:[#allocation2 + $0x98] sm:$0xff] %v585
  %618 = vst [vmem:[#allocation2 + $0xa0] sm:$0xff] %v586
  %619 = vst [vmem:[#allocation2 + $0xa8] sm:$0xff] %v587
  %620 = vst [vmem:[#allocation2 + $0xb0] sm:$0xff] %v588
  %621 = vst [vmem:[#allocation2 + $0xb8] sm:$0xff] %v589
  %622 = vst [vmem:[#allocation2 + $0xc0] sm:$0xff] %v590
  %623 = vst [vmem:[#allocation2 + $0xc8] sm:$0xff] %v591
  %624 = vst [vmem:[#allocation2 + $0xd0] sm:$0xff] %v592
  %625 = vst [vmem:[#allocation2 + $0xd8] sm:$0xff] %v593
  %626 = vst [vmem:[#allocation2 + $0xe0] sm:$0xff] %v594
  %627 = vst [vmem:[#allocation2 + $0xe8] sm:$0xff] %v595
  %628 = vst [vmem:[#allocation2 + $0xf0] sm:$0xff] %v596
  %629 = vst [vmem:[#allocation2 + $0xf8] sm:$0xff] %v597
  // Predicated region
  $region14: #{digae_forward.12} parent=0 // pred_check
    %p630 = pneg %p12
  $region15: #{digae_forward.12} parent=0 // pred_check_branch
    %632 = sbr.rel (%p630) target = $region17
  $region16: #{digae_forward.12} parent=0 // pred_region
    %v633 = vld [vmem:[#allocation2] sm:$0xff]
    %v634 = vld [vmem:[#allocation2 + $0x8] sm:$0xff]
    %v635 = vld [vmem:[#allocation2 + $0x10] sm:$0xff]
    %v636 = vld [vmem:[#allocation2 + $0x18] sm:$0xff]
    %v637 = vld [vmem:[#allocation2 + $0x20] sm:$0xff]
    %v638 = vld [vmem:[#allocation2 + $0x28] sm:$0xff]
    %v639 = vld [vmem:[#allocation2 + $0x30] sm:$0xff]
    %v640 = vld [vmem:[#allocation2 + $0x38] sm:$0xff]
    %v641 = vld [vmem:[#allocation2 + $0x40] sm:$0xff]
    %v642 = vld [vmem:[#allocation2 + $0x48] sm:$0xff]
    %v643 = vld [vmem:[#allocation2 + $0x50] sm:$0xff]
    %v644 = vld [vmem:[#allocation2 + $0x58] sm:$0xff]
    %v645 = vld [vmem:[#allocation2 + $0x60] sm:$0xff]
    %v646 = vld [vmem:[#allocation2 + $0x68] sm:$0xff]
    %v647 = vld [vmem:[#allocation2 + $0x70] sm:$0xff]
    %v648 = vld [vmem:[#allocation2 + $0x78] sm:$0xff]
    %v649 = vld [vmem:[#allocation2 + $0x80] sm:$0xff]
    %v650 = vld [vmem:[#allocation2 + $0x88] sm:$0xff]
    %v651 = vld [vmem:[#allocation2 + $0x90] sm:$0xff]
    %v652 = vld [vmem:[#allocation2 + $0x98] sm:$0xff]
    %v653 = vld [vmem:[#allocation2 + $0xa0] sm:$0xff]
    %v654 = vld [vmem:[#allocation2 + $0xa8] sm:$0xff]
    %v655 = vld [vmem:[#allocation2 + $0xb0] sm:$0xff]
    %v656 = vld [vmem:[#allocation2 + $0xb8] sm:$0xff]
    %v657 = vld [vmem:[#allocation2 + $0xc0] sm:$0xff]
    %v658 = vld [vmem:[#allocation2 + $0xc8] sm:$0xff]
    %v659 = vld [vmem:[#allocation2 + $0xd0] sm:$0xff]
    %v660 = vld [vmem:[#allocation2 + $0xd8] sm:$0xff]
    %v661 = vld [vmem:[#allocation2 + $0xe0] sm:$0xff]
    %v662 = vld [vmem:[#allocation2 + $0xe8] sm:$0xff]
    %v663 = vld [vmem:[#allocation2 + $0xf0] sm:$0xff]
    %v664 = vld [vmem:[#allocation2 + $0xf8] sm:$0xff]
    %v665 = vpack.c.bf16 %v634, %v633
    %v666 = vpack.c.bf16 %v636, %v635
    %v667 = vpack.c.bf16 %v638, %v637
    %v668 = vpack.c.bf16 %v640, %v639
    %v669 = vpack.c.bf16 %v642, %v641
    %v670 = vpack.c.bf16 %v644, %v643
    %v671 = vpack.c.bf16 %v646, %v645
    %v672 = vpack.c.bf16 %v648, %v647
    %v673 = vpack.c.bf16 %v650, %v649
    %v674 = vpack.c.bf16 %v652, %v651
    %v675 = vpack.c.bf16 %v654, %v653
    %v676 = vpack.c.bf16 %v656, %v655
    %v677 = vpack.c.bf16 %v658, %v657
    %v678 = vpack.c.bf16 %v660, %v659
    %v679 = vpack.c.bf16 %v662, %v661
    %v680 = vpack.c.bf16 %v664, %v663
    %v697 = vunpack.c.l.b16 %v665
    %v698 = vunpack.c.h.b16 %v665
    %v699 = vunpack.c.l.b16 %v666
    %v700 = vunpack.c.h.b16 %v666
    %v701 = vunpack.c.l.b16 %v667
    %v702 = vunpack.c.h.b16 %v667
    %v703 = vunpack.c.l.b16 %v668
    %v704 = vunpack.c.h.b16 %v668
    %v705 = vunpack.c.l.b16 %v669
    %v706 = vunpack.c.h.b16 %v669
    %v707 = vunpack.c.l.b16 %v670
    %v708 = vunpack.c.h.b16 %v670
    %v709 = vunpack.c.l.b16 %v671
    %v710 = vunpack.c.h.b16 %v671
    %v711 = vunpack.c.l.b16 %v672
    %v712 = vunpack.c.h.b16 %v672
    %v713 = vunpack.c.l.b16 %v673
    %v714 = vunpack.c.h.b16 %v673
    %v715 = vunpack.c.l.b16 %v674
    %v716 = vunpack.c.h.b16 %v674
    %v717 = vunpack.c.l.b16 %v675
    %v718 = vunpack.c.h.b16 %v675
    %v719 = vunpack.c.l.b16 %v676
    %v720 = vunpack.c.h.b16 %v676
    %v721 = vunpack.c.l.b16 %v677
    %v722 = vunpack.c.h.b16 %v677
    %v723 = vunpack.c.l.b16 %v678
    %v724 = vunpack.c.h.b16 %v678
    %v725 = vunpack.c.l.b16 %v679
    %v726 = vunpack.c.h.b16 %v679
    %v727 = vunpack.c.l.b16 %v680
    %v728 = vunpack.c.h.b16 %v680
    %v729 = vpack.c.b16 %v697, %v697
    %v730 = vpack.c.b16 %v698, %v698
    %v731 = vpack.c.b16 %v699, %v699
    %v732 = vpack.c.b16 %v700, %v700
    %v733 = vpack.c.b16 %v701, %v701
    %v734 = vpack.c.b16 %v702, %v702
    %v735 = vpack.c.b16 %v703, %v703
    %v736 = vpack.c.b16 %v704, %v704
    %v737 = vpack.c.b16 %v705, %v705
    %v738 = vpack.c.b16 %v706, %v706
    %v739 = vpack.c.b16 %v707, %v707
    %v740 = vpack.c.b16 %v708, %v708
    %v741 = vpack.c.b16 %v709, %v709
    %v742 = vpack.c.b16 %v710, %v710
    %v743 = vpack.c.b16 %v711, %v711
    %v744 = vpack.c.b16 %v712, %v712
    %v745 = vpack.c.b16 %v713, %v713
    %v746 = vpack.c.b16 %v714, %v714
    %v747 = vpack.c.b16 %v715, %v715
    %v748 = vpack.c.b16 %v716, %v716
    %v749 = vpack.c.b16 %v717, %v717
    %v750 = vpack.c.b16 %v718, %v718
    %v751 = vpack.c.b16 %v719, %v719
    %v752 = vpack.c.b16 %v720, %v720
    %v753 = vpack.c.b16 %v721, %v721
    %v754 = vpack.c.b16 %v722, %v722
    %v755 = vpack.c.b16 %v723, %v723
    %v756 = vpack.c.b16 %v724, %v724
    %v757 = vpack.c.b16 %v725, %v725
    %v758 = vpack.c.b16 %v726, %v726
    %v759 = vpack.c.b16 %v727, %v727
    %v760 = vpack.c.b16 %v728, %v728
    %793 = vst [vmem:[%s2] sm:$0xf] %v729
    %794 = vst [vmem:[%s2 + $0x4] sm:$0xf] %v730
    %795 = vst [vmem:[%s2 + $0x8] sm:$0xf] %v731
    %796 = vst [vmem:[%s2 + $0xc] sm:$0xf] %v732
    %797 = vst [vmem:[%s2 + $0x10] sm:$0xf] %v733
    %798 = vst [vmem:[%s2 + $0x14] sm:$0xf] %v734
    %799 = vst [vmem:[%s2 + $0x18] sm:$0xf] %v735
    %800 = vst [vmem:[%s2 + $0x1c] sm:$0xf] %v736
    %801 = vst [vmem:[%s2 + $0x20] sm:$0xf] %v737
    %802 = vst [vmem:[%s2 + $0x24] sm:$0xf] %v738
    %803 = vst [vmem:[%s2 + $0x28] sm:$0xf] %v739
    %804 = vst [vmem:[%s2 + $0x2c] sm:$0xf] %v740
    %805 = vst [vmem:[%s2 + $0x30] sm:$0xf] %v741
    %806 = vst [vmem:[%s2 + $0x34] sm:$0xf] %v742
    %807 = vst [vmem:[%s2 + $0x38] sm:$0xf] %v743
    %808 = vst [vmem:[%s2 + $0x3c] sm:$0xf] %v744
    %809 = vst [vmem:[%s2 + $0x40] sm:$0xf] %v745
    %810 = vst [vmem:[%s2 + $0x44] sm:$0xf] %v746
    %811 = vst [vmem:[%s2 + $0x48] sm:$0xf] %v747
    %812 = vst [vmem:[%s2 + $0x4c] sm:$0xf] %v748
    %813 = vst [vmem:[%s2 + $0x50] sm:$0xf] %v749
    %814 = vst [vmem:[%s2 + $0x54] sm:$0xf] %v750
    %815 = vst [vmem:[%s2 + $0x58] sm:$0xf] %v751
    %816 = vst [vmem:[%s2 + $0x5c] sm:$0xf] %v752
    %817 = vst [vmem:[%s2 + $0x60] sm:$0xf] %v753
    %818 = vst [vmem:[%s2 + $0x64] sm:$0xf] %v754
    %819 = vst [vmem:[%s2 + $0x68] sm:$0xf] %v755
    %820 = vst [vmem:[%s2 + $0x6c] sm:$0xf] %v756
    %821 = vst [vmem:[%s2 + $0x70] sm:$0xf] %v757
    %822 = vst [vmem:[%s2 + $0x74] sm:$0xf] %v758
    %823 = vst [vmem:[%s2 + $0x78] sm:$0xf] %v759
    %824 = vst [vmem:[%s2 + $0x7c] sm:$0xf] %v760
  $region17: #{digae_forward.12} parent=0 // pred_fallthru
    _
  // Predicated region
  $region18: #{digae_forward.12} parent=0 // pred_check
    _
  $region19: #{digae_forward.12} parent=0 // pred_check_branch
    %826 = sbr.rel (0) target = $region21
  $region20: #{digae_forward.12} parent=0 // pred_region
    _
  $region21: #{digae_forward.12} parent=0 // pred_fallthru
    _
  // Predicated region
  $region22: #{digae_forward.12} parent=0 // pred_check
    _
  $region23: #{digae_forward.12} parent=0 // pred_check_branch
    %828 = sbr.rel (0) target = $region25
  $region24: #{digae_forward.12} parent=0 // pred_region
    _
  $region25: #{digae_forward.12} parent=0 // pred_fallthru
    _

</llo_original>
